<compile_context>
chip_gen: v7x
topology: tpu7x:2x2x1
jax: 0.10.0
libtpu: 0.0.40
codegen_flags: <defaults>
</compile_context>

<pallas_src>
import functools

import jax
import jax.numpy as jnp
import numpy as np
from jax.experimental import pallas as pl
from jax.experimental.pallas import tpu as pltpu


# ----------------------------------------------------------------------------
# Weight preprocessing (wrapper-side, runs once in XLA):
#   conv3x3 HWIO weights  ->  3 block-Toeplitz matrices over the width axis.
#   Wrow[kh][jj*Cin + c, j*Cout + o] = w[kh, kw, c, o] with jj = j + kw - 1;
#   out-of-range width taps are dropped, which is exactly SAME zero padding
#   along W (vertical SAME padding is handled with explicit zero halo rows).
# ----------------------------------------------------------------------------
def _row_toeplitz(w, width):
    kh_dim, kw_dim, cin, cout = w.shape
    sel = np.zeros((kw_dim, width, width), np.float32)
    for kw in range(kw_dim):
        for j in range(width):
            jj = j + kw - 1
            if 0 <= jj < width:
                sel[kw, jj, j] = 1.0
    sel = jnp.asarray(sel)
    mats = []
    for kh in range(kh_dim):
        m = jnp.zeros((width * cin, width * cout), jnp.float32)
        for kw in range(kw_dim):
            m = m + jnp.kron(sel[kw], w[kh, kw])
        mats.append(m)
    return jnp.stack(mats, axis=0)            # (3, W*Cin, W*Cout)


def _tile_bias(b, width):
    return jnp.tile(b, width).reshape(1, width * b.shape[0])   # (1, W*Cout)


# ----------------------------------------------------------------------------
# Fused kernel: one image per grid step, everything in VMEM.
#   activations are (rows, W*C) slabs; padded buffers have 1 zero halo row
#   at the top and bottom (rows 0 and H+1).
# ----------------------------------------------------------------------------
def _fused_kernel(x_ref,
                  w_enc_ref, b_enc_ref,
                  w_dec_ref, b_dec_ref,
                  w_stem_ref, b_stem_ref,
                  w_blk1_ref, b_blk1_ref,
                  w_blk2_ref, b_blk2_ref,
                  w_head_ref, b_head_ref,
                  o_ref,
                  hbuf, dbuf, sbuf, tbuf,
                  *, H, W):
    f32 = jnp.float32

    def conv(padded, w_ref, b_ref):
        # padded: (H+2, W*Cin) value with zero halo rows 0 and H+1.
        # w_ref : (3, W*Cin, W*Cout) block-Toeplitz weights, b_ref: (1, W*Cout).
        acc = jnp.dot(padded[0:H, :], w_ref[0], preferred_element_type=f32)
        acc = acc + jnp.dot(padded[1:H + 1, :], w_ref[1],
                            preferred_element_type=f32)
        acc = acc + jnp.dot(padded[2:H + 2, :], w_ref[2],
                            preferred_element_type=f32)
        return acc + b_ref[...]                         # (H, W*Cout)

    def store_padded(buf_ref, val):
        buf_ref[...] = jnp.zeros(buf_ref.shape, buf_ref.dtype)
        buf_ref[1:H + 1, :] = val

    xv = x_ref[0]                                       # (H+2, W*Cimg)

    # --- autoencoder:  h = relu(enc(x)); r = dec(h); d = r - x
    h = jnp.maximum(conv(xv, w_enc_ref, b_enc_ref), 0.0)
    store_padded(hbuf, h)
    r = conv(hbuf[...], w_dec_ref, b_dec_ref)
    store_padded(dbuf, r - xv[1:H + 1, :])

    # --- predicter (reduced ResNet): stem + one residual block
    s = jnp.maximum(conv(dbuf[...], w_stem_ref, b_stem_ref), 0.0)
    store_padded(sbuf, s)
    t = jnp.maximum(conv(sbuf[...], w_blk1_ref, b_blk1_ref), 0.0)
    store_padded(tbuf, t)
    u = jnp.maximum(conv(tbuf[...], w_blk2_ref, b_blk2_ref)
                    + sbuf[1:H + 1, :], 0.0)            # (H, W*Cfeat)

    # --- head: GAP + Linear + Sigmoid (pooling folded into w_head)
    row_sum = jnp.sum(u, axis=0, keepdims=True)         # (1, W*Cfeat)
    logits = jnp.dot(row_sum, w_head_ref[...], preferred_element_type=f32)
    logits = logits + b_head_ref[...]
    o_ref[...] = jax.nn.sigmoid(logits).reshape(o_ref.shape).astype(o_ref.dtype)


# ----------------------------------------------------------------------------
# Public entry point: accepts PyTorch-style NCHW input.
# ----------------------------------------------------------------------------
def inverse_encoder_predicter(x_nchw, p):
    N, C_img, H, W = x_nchw.shape
    C_ae = p["ae_enc_w"].shape[-1]
    C_f = p["stem_w"].shape[-1]
    L = p["fc_w"].shape[-1]

    # NCHW -> NHWC -> add 1-row vertical halo -> lane-dense (H+2, W*C) slabs.
    x = jnp.transpose(x_nchw, (0, 2, 3, 1))
    xf = jnp.pad(x, ((0, 0), (1, 1), (0, 0), (0, 0))).reshape(N, H + 2, W * C_img)

    w_enc, b_enc = _row_toeplitz(p["ae_enc_w"], W), _tile_bias(p["ae_enc_b"], W)
    w_dec, b_dec = _row_toeplitz(p["ae_dec_w"], W), _tile_bias(p["ae_dec_b"], W)
    w_stem, b_stem = _row_toeplitz(p["stem_w"], W), _tile_bias(p["stem_b"], W)
    w_blk1, b_blk1 = _row_toeplitz(p["blk1_w"], W), _tile_bias(p["blk1_b"], W)
    w_blk2, b_blk2 = _row_toeplitz(p["blk2_w"], W), _tile_bias(p["blk2_b"], W)
    # GAP folded into the fc weight: pooled @ fc == row_sum @ (tile(fc) / (H*W))
    w_head = jnp.tile(p["fc_w"], (W, 1)) * (1.0 / float(H * W))  # (W*Cf, L)
    b_head = p["fc_b"].reshape(1, L)

    def full_spec(a):
        nd = a.ndim
        return pl.BlockSpec(a.shape, lambda n: (0,) * nd)

    operands = (xf, w_enc, b_enc, w_dec, b_dec, w_stem, b_stem,
                w_blk1, b_blk1, w_blk2, b_blk2, w_head, b_head)
    in_specs = [pl.BlockSpec((1, H + 2, W * C_img), lambda n: (n, 0, 0))]
    in_specs += [full_spec(a) for a in operands[1:]]

    out = pl.pallas_call(
        functools.partial(_fused_kernel, H=H, W=W),
        out_shape=jax.ShapeDtypeStruct((N, 1, L), jnp.float32),
        grid_spec=pltpu.PrefetchScalarGridSpec(
            num_scalar_prefetch=0,
            grid=(N,),
            in_specs=in_specs,
            out_specs=pl.BlockSpec((1, 1, L), lambda n: (n, 0, 0)),
            scratch_shapes=[
                pltpu.VMEM((H + 2, W * C_ae), jnp.float32),   # AE hidden (padded)
                pltpu.VMEM((H + 2, W * C_img), jnp.float32),  # r - x     (padded)
                pltpu.VMEM((H + 2, W * C_f), jnp.float32),    # stem out  (padded)
                pltpu.VMEM((H + 2, W * C_f), jnp.float32),    # blk1 out  (padded)
            ]),
        compiler_params=pltpu.CompilerParams(
            dimension_semantics=("parallel",)),
    )(*operands)
    return out.reshape(N, L)


# ----------------------------------------------------------------------------
# Pure-JAX reference (for correctness check).
# ----------------------------------------------------------------------------
def _ref_conv(x, w, b, relu=False):
    y = jax.lax.conv_general_dilated(
        x, w, (1, 1), "SAME", dimension_numbers=("NHWC", "HWIO", "NHWC"))
    y = y + b[None, None, None, :]
    return jnp.maximum(y, 0.0) if relu else y


def reference_forward(x_nchw, p):
    x = jnp.transpose(x_nchw, (0, 2, 3, 1))
    h = _ref_conv(x, p["ae_enc_w"], p["ae_enc_b"], relu=True)
    r = _ref_conv(h, p["ae_dec_w"], p["ae_dec_b"])
    d = r - x
    s = _ref_conv(d, p["stem_w"], p["stem_b"], relu=True)
    t = _ref_conv(s, p["blk1_w"], p["blk1_b"], relu=True)
    u = jnp.maximum(_ref_conv(t, p["blk2_w"], p["blk2_b"]) + s, 0.0)
    pooled = jnp.mean(u, axis=(1, 2))
    return jax.nn.sigmoid(pooled @ p["fc_w"] + p["fc_b"][None, :])


if __name__ == "__main__":
    N, C_IMG, H, W = 2, 4, 16, 16          # input x: (N, C, H, W) like PyTorch NCHW
    C_AE, C_FEAT, LATENT = 8, 16, 30       # latent_dim=30 (module default)

    key = jax.random.PRNGKey(0)
    keys = jax.random.split(key, 14)

    def cw(k, cin, cout):
        return jax.random.normal(k, (3, 3, cin, cout), jnp.float32) * 0.1

    params = {
        "ae_enc_w": cw(keys[0], C_IMG, C_AE),
        "ae_enc_b": jax.random.normal(keys[1], (C_AE,), jnp.float32) * 0.01,
        "ae_dec_w": cw(keys[2], C_AE, C_IMG),
        "ae_dec_b": jax.random.normal(keys[3], (C_IMG,), jnp.float32) * 0.01,
        "stem_w":   cw(keys[4], C_IMG, C_FEAT),
        "stem_b":   jax.random.normal(keys[5], (C_FEAT,), jnp.float32) * 0.01,
        "blk1_w":   cw(keys[6], C_FEAT, C_FEAT),
        "blk1_b":   jax.random.normal(keys[7], (C_FEAT,), jnp.float32) * 0.01,
        "blk2_w":   cw(keys[8], C_FEAT, C_FEAT),
        "blk2_b":   jax.random.normal(keys[9], (C_FEAT,), jnp.float32) * 0.01,
        "fc_w":     jax.random.normal(keys[10], (C_FEAT, LATENT), jnp.float32) * 0.1,
        "fc_b":     jax.random.normal(keys[11], (LATENT,), jnp.float32) * 0.01,
    }

    x = jax.random.normal(keys[12], (N, C_IMG, H, W), jnp.float32)

    out = inverse_encoder_predicter(x, params)
    out = jax.block_until_ready(out)

    ref = jax.block_until_ready(reference_forward(x, params))
    assert out.shape == (N, LATENT)
    assert bool(jnp.all(jnp.isfinite(out)))
    np.testing.assert_allclose(np.asarray(out), np.asarray(ref), rtol=1e-4, atol=1e-4)

    print("KERNEL_OK")
</pallas_src>

<mosaic_0001>
module attributes {stable_mosaic.version = 11 : i64} {
  func.func @_fused_kernel(%arg0: i32, %arg1: memref<1x18x64xf32, #tpu.memory_space<vmem>>, %arg2: memref<3x64x128xf32, #tpu.memory_space<vmem>>, %arg3: memref<1x128xf32, #tpu.memory_space<vmem>>, %arg4: memref<3x128x64xf32, #tpu.memory_space<vmem>>, %arg5: memref<1x64xf32, #tpu.memory_space<vmem>>, %arg6: memref<3x64x256xf32, #tpu.memory_space<vmem>>, %arg7: memref<1x256xf32, #tpu.memory_space<vmem>>, %arg8: memref<3x256x256xf32, #tpu.memory_space<vmem>>, %arg9: memref<1x256xf32, #tpu.memory_space<vmem>>, %arg10: memref<3x256x256xf32, #tpu.memory_space<vmem>>, %arg11: memref<1x256xf32, #tpu.memory_space<vmem>>, %arg12: memref<256x30xf32, #tpu.memory_space<vmem>>, %arg13: memref<1x30xf32, #tpu.memory_space<vmem>>, %arg14: memref<1x1x30xf32, #tpu.memory_space<vmem>>, %arg15: memref<18x128xf32, #tpu.memory_space<vmem>>, %arg16: memref<18x64xf32, #tpu.memory_space<vmem>>, %arg17: memref<18x256xf32, #tpu.memory_space<vmem>>, %arg18: memref<18x256xf32, #tpu.memory_space<vmem>>) attributes {dimension_semantics = [#tpu.dimension_semantics<parallel>], iteration_bounds = array<i64: 2>, scalar_prefetch = 0 : i64, scratch_operands = 4 : i64, tpu.core_type = #tpu.core_type<tc>, window_params = [{transform_indices = @transform_0, window_bounds = array<i64: 1, 18, 64>}, {pipeline_mode = #tpu.pipeline_mode<synchronous>, transform_indices = @transform_1, window_bounds = array<i64: 3, 64, 128>}, {pipeline_mode = #tpu.pipeline_mode<synchronous>, transform_indices = @transform_2, window_bounds = array<i64: 1, 128>}, {pipeline_mode = #tpu.pipeline_mode<synchronous>, transform_indices = @transform_3, window_bounds = array<i64: 3, 128, 64>}, {pipeline_mode = #tpu.pipeline_mode<synchronous>, transform_indices = @transform_4, window_bounds = array<i64: 1, 64>}, {pipeline_mode = #tpu.pipeline_mode<synchronous>, transform_indices = @transform_5, window_bounds = array<i64: 3, 64, 256>}, {pipeline_mode = #tpu.pipeline_mode<synchronous>, transform_indices = @transform_6, window_bounds = array<i64: 1, 256>}, {pipeline_mode = #tpu.pipeline_mode<synchronous>, transform_indices = @transform_7, window_bounds = array<i64: 3, 256, 256>}, {pipeline_mode = #tpu.pipeline_mode<synchronous>, transform_indices = @transform_8, window_bounds = array<i64: 1, 256>}, {pipeline_mode = #tpu.pipeline_mode<synchronous>, transform_indices = @transform_9, window_bounds = array<i64: 3, 256, 256>}, {pipeline_mode = #tpu.pipeline_mode<synchronous>, transform_indices = @transform_10, window_bounds = array<i64: 1, 256>}, {pipeline_mode = #tpu.pipeline_mode<synchronous>, transform_indices = @transform_11, window_bounds = array<i64: 256, 30>}, {pipeline_mode = #tpu.pipeline_mode<synchronous>, transform_indices = @transform_12, window_bounds = array<i64: 1, 30>}, {transform_indices = @transform_13, window_bounds = array<i64: 1, 1, 30>}]} {
    %c0 = arith.constant 0 : index
    %c0_0 = arith.constant 0 : index
    %c0_1 = arith.constant 0 : index
    %0 = vector.load %arg1[%c0, %c0_0, %c0_1] : memref<1x18x64xf32, #tpu.memory_space<vmem>>, vector<1x18x64xf32>
    %1 = vector.shape_cast %0 : vector<1x18x64xf32> to vector<18x64xf32>
    %2 = vector.extract_strided_slice %1 {offsets = [0, 0], sizes = [16, 64], strides = [1, 1]} : vector<18x64xf32> to vector<16x64xf32>
    %c0_2 = arith.constant 0 : index
    %c0_3 = arith.constant 0 : index
    %c0_4 = arith.constant 0 : index
    %3 = vector.load %arg2[%c0_2, %c0_3, %c0_4] : memref<3x64x128xf32, #tpu.memory_space<vmem>>, vector<1x64x128xf32>
    %4 = vector.shape_cast %3 : vector<1x64x128xf32> to vector<64x128xf32>
    %cst = arith.constant dense<0.000000e+00> : vector<16x128xf32>
    %5 = tpu.matmul %2, %4, %cst {dimension_numbers = #tpu.dot_dimension_numbers<[1], [0], [0], [1], [0, 0, 1, 1], [], []>} : vector<16x64xf32>, vector<64x128xf32>, vector<16x128xf32> -> vector<16x128xf32>
    %6 = vector.extract_strided_slice %1 {offsets = [1, 0], sizes = [16, 64], strides = [1, 1]} : vector<18x64xf32> to vector<16x64xf32>
    %c1 = arith.constant 1 : index
    %c0_5 = arith.constant 0 : index
    %c0_6 = arith.constant 0 : index
    %7 = vector.load %arg2[%c1, %c0_5, %c0_6] : memref<3x64x128xf32, #tpu.memory_space<vmem>>, vector<1x64x128xf32>
    %8 = vector.shape_cast %7 : vector<1x64x128xf32> to vector<64x128xf32>
    %cst_7 = arith.constant dense<0.000000e+00> : vector<16x128xf32>
    %9 = tpu.matmul %6, %8, %cst_7 {dimension_numbers = #tpu.dot_dimension_numbers<[1], [0], [0], [1], [0, 0, 1, 1], [], []>} : vector<16x64xf32>, vector<64x128xf32>, vector<16x128xf32> -> vector<16x128xf32>
    %10 = arith.addf %5, %9 : vector<16x128xf32>
    %11 = vector.extract_strided_slice %1 {offsets = [2, 0], sizes = [16, 64], strides = [1, 1]} : vector<18x64xf32> to vector<16x64xf32>
    %c2 = arith.constant 2 : index
    %c0_8 = arith.constant 0 : index
    %c0_9 = arith.constant 0 : index
    %12 = vector.load %arg2[%c2, %c0_8, %c0_9] : memref<3x64x128xf32, #tpu.memory_space<vmem>>, vector<1x64x128xf32>
    %13 = vector.shape_cast %12 : vector<1x64x128xf32> to vector<64x128xf32>
    %cst_10 = arith.constant dense<0.000000e+00> : vector<16x128xf32>
    %14 = tpu.matmul %11, %13, %cst_10 {dimension_numbers = #tpu.dot_dimension_numbers<[1], [0], [0], [1], [0, 0, 1, 1], [], []>} : vector<16x64xf32>, vector<64x128xf32>, vector<16x128xf32> -> vector<16x128xf32>
    %15 = arith.addf %10, %14 : vector<16x128xf32>
    %c0_11 = arith.constant 0 : index
    %c0_12 = arith.constant 0 : index
    %16 = vector.load %arg3[%c0_11, %c0_12] : memref<1x128xf32, #tpu.memory_space<vmem>>, vector<1x128xf32>
    %17 = vector.broadcast %16 : vector<1x128xf32> to vector<16x128xf32>
    %18 = arith.addf %15, %17 : vector<16x128xf32>
    %cst_13 = arith.constant 0.000000e+00 : f32
    %19 = vector.broadcast %cst_13 : f32 to vector<16x128xf32>
    %20 = arith.maximumf %18, %19 : vector<16x128xf32>
    %cst_14 = arith.constant 0.000000e+00 : f32
    %21 = vector.broadcast %cst_14 : f32 to vector<18x128xf32>
    %c0_15 = arith.constant 0 : index
    %c0_16 = arith.constant 0 : index
    %22 = vector.load %arg15[%c0_15, %c0_16] : memref<18x128xf32, #tpu.memory_space<vmem>>, vector<18x128xf32>
    tpu.vector_store %arg15[%c0_15, %c0_16], %21 {strides = array<i32>} : memref<18x128xf32, #tpu.memory_space<vmem>>, vector<18x128xf32>,
    %c1_17 = arith.constant 1 : index
    %c0_18 = arith.constant 0 : index
    %23 = vector.load %arg15[%c1_17, %c0_18] : memref<18x128xf32, #tpu.memory_space<vmem>>, vector<16x128xf32>
    tpu.vector_store %arg15[%c1_17, %c0_18], %20 {strides = array<i32>} : memref<18x128xf32, #tpu.memory_space<vmem>>, vector<16x128xf32>,
    %c0_19 = arith.constant 0 : index
    %c0_20 = arith.constant 0 : index
    %24 = vector.load %arg15[%c0_19, %c0_20] : memref<18x128xf32, #tpu.memory_space<vmem>>, vector<18x128xf32>
    %25 = vector.extract_strided_slice %24 {offsets = [0, 0], sizes = [16, 128], strides = [1, 1]} : vector<18x128xf32> to vector<16x128xf32>
    %c0_21 = arith.constant 0 : index
    %c0_22 = arith.constant 0 : index
    %c0_23 = arith.constant 0 : index
    %26 = vector.load %arg4[%c0_21, %c0_22, %c0_23] : memref<3x128x64xf32, #tpu.memory_space<vmem>>, vector<1x128x64xf32>
    %27 = vector.shape_cast %26 : vector<1x128x64xf32> to vector<128x64xf32>
    %cst_24 = arith.constant dense<0.000000e+00> : vector<16x64xf32>
    %28 = tpu.matmul %25, %27, %cst_24 {dimension_numbers = #tpu.dot_dimension_numbers<[1], [0], [0], [1], [0, 0, 1, 1], [], []>} : vector<16x128xf32>, vector<128x64xf32>, vector<16x64xf32> -> vector<16x64xf32>
    %29 = vector.extract_strided_slice %24 {offsets = [1, 0], sizes = [16, 128], strides = [1, 1]} : vector<18x128xf32> to vector<16x128xf32>
    %c1_25 = arith.constant 1 : index
    %c0_26 = arith.constant 0 : index
    %c0_27 = arith.constant 0 : index
    %30 = vector.load %arg4[%c1_25, %c0_26, %c0_27] : memref<3x128x64xf32, #tpu.memory_space<vmem>>, vector<1x128x64xf32>
    %31 = vector.shape_cast %30 : vector<1x128x64xf32> to vector<128x64xf32>
    %cst_28 = arith.constant dense<0.000000e+00> : vector<16x64xf32>
    %32 = tpu.matmul %29, %31, %cst_28 {dimension_numbers = #tpu.dot_dimension_numbers<[1], [0], [0], [1], [0, 0, 1, 1], [], []>} : vector<16x128xf32>, vector<128x64xf32>, vector<16x64xf32> -> vector<16x64xf32>
    %33 = arith.addf %28, %32 : vector<16x64xf32>
    %34 = vector.extract_strided_slice %24 {offsets = [2, 0], sizes = [16, 128], strides = [1, 1]} : vector<18x128xf32> to vector<16x128xf32>
    %c2_29 = arith.constant 2 : index
    %c0_30 = arith.constant 0 : index
    %c0_31 = arith.constant 0 : index
    %35 = vector.load %arg4[%c2_29, %c0_30, %c0_31] : memref<3x128x64xf32, #tpu.memory_space<vmem>>, vector<1x128x64xf32>
    %36 = vector.shape_cast %35 : vector<1x128x64xf32> to vector<128x64xf32>
    %cst_32 = arith.constant dense<0.000000e+00> : vector<16x64xf32>
    %37 = tpu.matmul %34, %36, %cst_32 {dimension_numbers = #tpu.dot_dimension_numbers<[1], [0], [0], [1], [0, 0, 1, 1], [], []>} : vector<16x128xf32>, vector<128x64xf32>, vector<16x64xf32> -> vector<16x64xf32>
    %38 = arith.addf %33, %37 : vector<16x64xf32>
    %c0_33 = arith.constant 0 : index
    %c0_34 = arith.constant 0 : index
    %39 = vector.load %arg5[%c0_33, %c0_34] : memref<1x64xf32, #tpu.memory_space<vmem>>, vector<1x64xf32>
    %40 = vector.broadcast %39 : vector<1x64xf32> to vector<16x64xf32>
    %41 = arith.addf %38, %40 : vector<16x64xf32>
    %42 = vector.extract_strided_slice %1 {offsets = [1, 0], sizes = [16, 64], strides = [1, 1]} : vector<18x64xf32> to vector<16x64xf32>
    %43 = arith.subf %41, %42 : vector<16x64xf32>
    %cst_35 = arith.constant 0.000000e+00 : f32
    %44 = vector.broadcast %cst_35 : f32 to vector<18x64xf32>
    %c0_36 = arith.constant 0 : index
    %c0_37 = arith.constant 0 : index
    %45 = vector.load %arg16[%c0_36, %c0_37] : memref<18x64xf32, #tpu.memory_space<vmem>>, vector<18x64xf32>
    tpu.vector_store %arg16[%c0_36, %c0_37], %44 {strides = array<i32>} : memref<18x64xf32, #tpu.memory_space<vmem>>, vector<18x64xf32>,
    %c1_38 = arith.constant 1 : index
    %c0_39 = arith.constant 0 : index
    %46 = vector.load %arg16[%c1_38, %c0_39] : memref<18x64xf32, #tpu.memory_space<vmem>>, vector<16x64xf32>
    tpu.vector_store %arg16[%c1_38, %c0_39], %43 {strides = array<i32>} : memref<18x64xf32, #tpu.memory_space<vmem>>, vector<16x64xf32>,
    %c0_40 = arith.constant 0 : index
    %c0_41 = arith.constant 0 : index
    %47 = vector.load %arg16[%c0_40, %c0_41] : memref<18x64xf32, #tpu.memory_space<vmem>>, vector<18x64xf32>
    %48 = vector.extract_strided_slice %47 {offsets = [0, 0], sizes = [16, 64], strides = [1, 1]} : vector<18x64xf32> to vector<16x64xf32>
    %c0_42 = arith.constant 0 : index
    %c0_43 = arith.constant 0 : index
    %c0_44 = arith.constant 0 : index
    %49 = vector.load %arg6[%c0_42, %c0_43, %c0_44] : memref<3x64x256xf32, #tpu.memory_space<vmem>>, vector<1x64x256xf32>
    %50 = vector.shape_cast %49 : vector<1x64x256xf32> to vector<64x256xf32>
    %cst_45 = arith.constant dense<0.000000e+00> : vector<16x256xf32>
    %51 = tpu.matmul %48, %50, %cst_45 {dimension_numbers = #tpu.dot_dimension_numbers<[1], [0], [0], [1], [0, 0, 1, 1], [], []>} : vector<16x64xf32>, vector<64x256xf32>, vector<16x256xf32> -> vector<16x256xf32>
    %52 = vector.extract_strided_slice %47 {offsets = [1, 0], sizes = [16, 64], strides = [1, 1]} : vector<18x64xf32> to vector<16x64xf32>
    %c1_46 = arith.constant 1 : index
    %c0_47 = arith.constant 0 : index
    %c0_48 = arith.constant 0 : index
    %53 = vector.load %arg6[%c1_46, %c0_47, %c0_48] : memref<3x64x256xf32, #tpu.memory_space<vmem>>, vector<1x64x256xf32>
    %54 = vector.shape_cast %53 : vector<1x64x256xf32> to vector<64x256xf32>
    %cst_49 = arith.constant dense<0.000000e+00> : vector<16x256xf32>
    %55 = tpu.matmul %52, %54, %cst_49 {dimension_numbers = #tpu.dot_dimension_numbers<[1], [0], [0], [1], [0, 0, 1, 1], [], []>} : vector<16x64xf32>, vector<64x256xf32>, vector<16x256xf32> -> vector<16x256xf32>
    %56 = arith.addf %51, %55 : vector<16x256xf32>
    %57 = vector.extract_strided_slice %47 {offsets = [2, 0], sizes = [16, 64], strides = [1, 1]} : vector<18x64xf32> to vector<16x64xf32>
    %c2_50 = arith.constant 2 : index
    %c0_51 = arith.constant 0 : index
    %c0_52 = arith.constant 0 : index
    %58 = vector.load %arg6[%c2_50, %c0_51, %c0_52] : memref<3x64x256xf32, #tpu.memory_space<vmem>>, vector<1x64x256xf32>
    %59 = vector.shape_cast %58 : vector<1x64x256xf32> to vector<64x256xf32>
    %cst_53 = arith.constant dense<0.000000e+00> : vector<16x256xf32>
    %60 = tpu.matmul %57, %59, %cst_53 {dimension_numbers = #tpu.dot_dimension_numbers<[1], [0], [0], [1], [0, 0, 1, 1], [], []>} : vector<16x64xf32>, vector<64x256xf32>, vector<16x256xf32> -> vector<16x256xf32>
    %61 = arith.addf %56, %60 : vector<16x256xf32>
    %c0_54 = arith.constant 0 : index
    %c0_55 = arith.constant 0 : index
    %62 = vector.load %arg7[%c0_54, %c0_55] : memref<1x256xf32, #tpu.memory_space<vmem>>, vector<1x256xf32>
    %63 = vector.broadcast %62 : vector<1x256xf32> to vector<16x256xf32>
    %64 = arith.addf %61, %63 : vector<16x256xf32>
    %cst_56 = arith.constant 0.000000e+00 : f32
    %65 = vector.broadcast %cst_56 : f32 to vector<16x256xf32>
    %66 = arith.maximumf %64, %65 : vector<16x256xf32>
    %cst_57 = arith.constant 0.000000e+00 : f32
    %67 = vector.broadcast %cst_57 : f32 to vector<18x256xf32>
    %c0_58 = arith.constant 0 : index
    %c0_59 = arith.constant 0 : index
    %68 = vector.load %arg17[%c0_58, %c0_59] : memref<18x256xf32, #tpu.memory_space<vmem>>, vector<18x256xf32>
    tpu.vector_store %arg17[%c0_58, %c0_59], %67 {strides = array<i32>} : memref<18x256xf32, #tpu.memory_space<vmem>>, vector<18x256xf32>,
    %c1_60 = arith.constant 1 : index
    %c0_61 = arith.constant 0 : index
    %69 = vector.load %arg17[%c1_60, %c0_61] : memref<18x256xf32, #tpu.memory_space<vmem>>, vector<16x256xf32>
    tpu.vector_store %arg17[%c1_60, %c0_61], %66 {strides = array<i32>} : memref<18x256xf32, #tpu.memory_space<vmem>>, vector<16x256xf32>,
    %c0_62 = arith.constant 0 : index
    %c0_63 = arith.constant 0 : index
    %70 = vector.load %arg17[%c0_62, %c0_63] : memref<18x256xf32, #tpu.memory_space<vmem>>, vector<18x256xf32>
    %71 = vector.extract_strided_slice %70 {offsets = [0, 0], sizes = [16, 256], strides = [1, 1]} : vector<18x256xf32> to vector<16x256xf32>
    %c0_64 = arith.constant 0 : index
    %c0_65 = arith.constant 0 : index
    %c0_66 = arith.constant 0 : index
    %72 = vector.load %arg8[%c0_64, %c0_65, %c0_66] : memref<3x256x256xf32, #tpu.memory_space<vmem>>, vector<1x256x256xf32>
    %73 = vector.shape_cast %72 : vector<1x256x256xf32> to vector<256x256xf32>
    %cst_67 = arith.constant dense<0.000000e+00> : vector<16x256xf32>
    %74 = tpu.matmul %71, %73, %cst_67 {dimension_numbers = #tpu.dot_dimension_numbers<[1], [0], [0], [1], [0, 0, 1, 1], [], []>} : vector<16x256xf32>, vector<256x256xf32>, vector<16x256xf32> -> vector<16x256xf32>
    %75 = vector.extract_strided_slice %70 {offsets = [1, 0], sizes = [16, 256], strides = [1, 1]} : vector<18x256xf32> to vector<16x256xf32>
    %c1_68 = arith.constant 1 : index
    %c0_69 = arith.constant 0 : index
    %c0_70 = arith.constant 0 : index
    %76 = vector.load %arg8[%c1_68, %c0_69, %c0_70] : memref<3x256x256xf32, #tpu.memory_space<vmem>>, vector<1x256x256xf32>
    %77 = vector.shape_cast %76 : vector<1x256x256xf32> to vector<256x256xf32>
    %cst_71 = arith.constant dense<0.000000e+00> : vector<16x256xf32>
    %78 = tpu.matmul %75, %77, %cst_71 {dimension_numbers = #tpu.dot_dimension_numbers<[1], [0], [0], [1], [0, 0, 1, 1], [], []>} : vector<16x256xf32>, vector<256x256xf32>, vector<16x256xf32> -> vector<16x256xf32>
    %79 = arith.addf %74, %78 : vector<16x256xf32>
    %80 = vector.extract_strided_slice %70 {offsets = [2, 0], sizes = [16, 256], strides = [1, 1]} : vector<18x256xf32> to vector<16x256xf32>
    %c2_72 = arith.constant 2 : index
    %c0_73 = arith.constant 0 : index
    %c0_74 = arith.constant 0 : index
    %81 = vector.load %arg8[%c2_72, %c0_73, %c0_74] : memref<3x256x256xf32, #tpu.memory_space<vmem>>, vector<1x256x256xf32>
    %82 = vector.shape_cast %81 : vector<1x256x256xf32> to vector<256x256xf32>
    %cst_75 = arith.constant dense<0.000000e+00> : vector<16x256xf32>
    %83 = tpu.matmul %80, %82, %cst_75 {dimension_numbers = #tpu.dot_dimension_numbers<[1], [0], [0], [1], [0, 0, 1, 1], [], []>} : vector<16x256xf32>, vector<256x256xf32>, vector<16x256xf32> -> vector<16x256xf32>
    %84 = arith.addf %79, %83 : vector<16x256xf32>
    %c0_76 = arith.constant 0 : index
    %c0_77 = arith.constant 0 : index
    %85 = vector.load %arg9[%c0_76, %c0_77] : memref<1x256xf32, #tpu.memory_space<vmem>>, vector<1x256xf32>
    %86 = vector.broadcast %85 : vector<1x256xf32> to vector<16x256xf32>
    %87 = arith.addf %84, %86 : vector<16x256xf32>
    %cst_78 = arith.constant 0.000000e+00 : f32
    %88 = vector.broadcast %cst_78 : f32 to vector<16x256xf32>
    %89 = arith.maximumf %87, %88 : vector<16x256xf32>
    %cst_79 = arith.constant 0.000000e+00 : f32
    %90 = vector.broadcast %cst_79 : f32 to vector<18x256xf32>
    %c0_80 = arith.constant 0 : index
    %c0_81 = arith.constant 0 : index
    %91 = vector.load %arg18[%c0_80, %c0_81] : memref<18x256xf32, #tpu.memory_space<vmem>>, vector<18x256xf32>
    tpu.vector_store %arg18[%c0_80, %c0_81], %90 {strides = array<i32>} : memref<18x256xf32, #tpu.memory_space<vmem>>, vector<18x256xf32>,
    %c1_82 = arith.constant 1 : index
    %c0_83 = arith.constant 0 : index
    %92 = vector.load %arg18[%c1_82, %c0_83] : memref<18x256xf32, #tpu.memory_space<vmem>>, vector<16x256xf32>
    tpu.vector_store %arg18[%c1_82, %c0_83], %89 {strides = array<i32>} : memref<18x256xf32, #tpu.memory_space<vmem>>, vector<16x256xf32>,
    %c0_84 = arith.constant 0 : index
    %c0_85 = arith.constant 0 : index
    %93 = vector.load %arg18[%c0_84, %c0_85] : memref<18x256xf32, #tpu.memory_space<vmem>>, vector<18x256xf32>
    %94 = vector.extract_strided_slice %93 {offsets = [0, 0], sizes = [16, 256], strides = [1, 1]} : vector<18x256xf32> to vector<16x256xf32>
    %c0_86 = arith.constant 0 : index
    %c0_87 = arith.constant 0 : index
    %c0_88 = arith.constant 0 : index
    %95 = vector.load %arg10[%c0_86, %c0_87, %c0_88] : memref<3x256x256xf32, #tpu.memory_space<vmem>>, vector<1x256x256xf32>
    %96 = vector.shape_cast %95 : vector<1x256x256xf32> to vector<256x256xf32>
    %cst_89 = arith.constant dense<0.000000e+00> : vector<16x256xf32>
    %97 = tpu.matmul %94, %96, %cst_89 {dimension_numbers = #tpu.dot_dimension_numbers<[1], [0], [0], [1], [0, 0, 1, 1], [], []>} : vector<16x256xf32>, vector<256x256xf32>, vector<16x256xf32> -> vector<16x256xf32>
    %98 = vector.extract_strided_slice %93 {offsets = [1, 0], sizes = [16, 256], strides = [1, 1]} : vector<18x256xf32> to vector<16x256xf32>
    %c1_90 = arith.constant 1 : index
    %c0_91 = arith.constant 0 : index
    %c0_92 = arith.constant 0 : index
    %99 = vector.load %arg10[%c1_90, %c0_91, %c0_92] : memref<3x256x256xf32, #tpu.memory_space<vmem>>, vector<1x256x256xf32>
    %100 = vector.shape_cast %99 : vector<1x256x256xf32> to vector<256x256xf32>
    %cst_93 = arith.constant dense<0.000000e+00> : vector<16x256xf32>
    %101 = tpu.matmul %98, %100, %cst_93 {dimension_numbers = #tpu.dot_dimension_numbers<[1], [0], [0], [1], [0, 0, 1, 1], [], []>} : vector<16x256xf32>, vector<256x256xf32>, vector<16x256xf32> -> vector<16x256xf32>
    %102 = arith.addf %97, %101 : vector<16x256xf32>
    %103 = vector.extract_strided_slice %93 {offsets = [2, 0], sizes = [16, 256], strides = [1, 1]} : vector<18x256xf32> to vector<16x256xf32>
    %c2_94 = arith.constant 2 : index
    %c0_95 = arith.constant 0 : index
    %c0_96 = arith.constant 0 : index
    %104 = vector.load %arg10[%c2_94, %c0_95, %c0_96] : memref<3x256x256xf32, #tpu.memory_space<vmem>>, vector<1x256x256xf32>
    %105 = vector.shape_cast %104 : vector<1x256x256xf32> to vector<256x256xf32>
    %cst_97 = arith.constant dense<0.000000e+00> : vector<16x256xf32>
    %106 = tpu.matmul %103, %105, %cst_97 {dimension_numbers = #tpu.dot_dimension_numbers<[1], [0], [0], [1], [0, 0, 1, 1], [], []>} : vector<16x256xf32>, vector<256x256xf32>, vector<16x256xf32> -> vector<16x256xf32>
    %107 = arith.addf %102, %106 : vector<16x256xf32>
    %c0_98 = arith.constant 0 : index
    %c0_99 = arith.constant 0 : index
    %108 = vector.load %arg11[%c0_98, %c0_99] : memref<1x256xf32, #tpu.memory_space<vmem>>, vector<1x256xf32>
    %109 = vector.broadcast %108 : vector<1x256xf32> to vector<16x256xf32>
    %110 = arith.addf %107, %109 : vector<16x256xf32>
    %c1_100 = arith.constant 1 : index
    %c0_101 = arith.constant 0 : index
    %111 = vector.load %arg17[%c1_100, %c0_101] : memref<18x256xf32, #tpu.memory_space<vmem>>, vector<16x256xf32>
    %112 = arith.addf %110, %111 : vector<16x256xf32>
    %cst_102 = arith.constant 0.000000e+00 : f32
    %113 = vector.broadcast %cst_102 : f32 to vector<16x256xf32>
    %114 = arith.maximumf %112, %113 : vector<16x256xf32>
    %cst_103 = arith.constant dense<0.000000e+00> : vector<256xf32>
    %115 = vector.multi_reduction <add>, %114, %cst_103 [0] : vector<16x256xf32> to vector<256xf32>
    %116 = vector.shape_cast %115 : vector<256xf32> to vector<1x256xf32>
    %c0_104 = arith.constant 0 : index
    %c0_105 = arith.constant 0 : index
    %117 = vector.load %arg12[%c0_104, %c0_105] : memref<256x30xf32, #tpu.memory_space<vmem>>, vector<256x30xf32>
    %cst_106 = arith.constant dense<0.000000e+00> : vector<1x30xf32>
    %118 = tpu.matmul %116, %117, %cst_106 {dimension_numbers = #tpu.dot_dimension_numbers<[1], [0], [0], [1], [0, 0, 1, 1], [], []>} : vector<1x256xf32>, vector<256x30xf32>, vector<1x30xf32> -> vector<1x30xf32>
    %c0_107 = arith.constant 0 : index
    %c0_108 = arith.constant 0 : index
    %119 = vector.load %arg13[%c0_107, %c0_108] : memref<1x30xf32, #tpu.memory_space<vmem>>, vector<1x30xf32>
    %120 = arith.addf %118, %119 : vector<1x30xf32>
    %121 = arith.negf %120 : vector<1x30xf32>
    %122 = math.exp %121 : vector<1x30xf32>
    %cst_109 = arith.constant 1.000000e+00 : f32
    %123 = vector.broadcast %cst_109 : f32 to vector<1x30xf32>
    %124 = arith.addf %123, %122 : vector<1x30xf32>
    %125 = arith.divf %123, %124 : vector<1x30xf32>
    %126 = vector.shape_cast %125 : vector<1x30xf32> to vector<1x1x30xf32>
    %c0_110 = arith.constant 0 : index
    %c0_111 = arith.constant 0 : index
    %c0_112 = arith.constant 0 : index
    %127 = vector.load %arg14[%c0_110, %c0_111, %c0_112] : memref<1x1x30xf32, #tpu.memory_space<vmem>>, vector<1x1x30xf32>
    tpu.vector_store %arg14[%c0_110, %c0_111, %c0_112], %126 {strides = array<i32>} : memref<1x1x30xf32, #tpu.memory_space<vmem>>, vector<1x1x30xf32>,
    return
  }
  func.func @transform_0(%arg0: i32) -> (i32, i32, i32) {
    %c0_i32 = arith.constant 0 : i32
    %c0_i32_0 = arith.constant 0 : i32
    %c0_i32_1 = arith.constant 0 : i32
    return %arg0, %c0_i32, %c0_i32_0 : i32, i32, i32
  }
  func.func @transform_1(%arg0: i32) -> (i32, i32, i32) {
    %c0_i32 = arith.constant 0 : i32
    %c0_i32_0 = arith.constant 0 : i32
    %c0_i32_1 = arith.constant 0 : i32
    %c0_i32_2 = arith.constant 0 : i32
    return %c0_i32, %c0_i32_0, %c0_i32_1 : i32, i32, i32
  }
  func.func @transform_2(%arg0: i32) -> (i32, i32) {
    %c0_i32 = arith.constant 0 : i32
    %c0_i32_0 = arith.constant 0 : i32
    %c0_i32_1 = arith.constant 0 : i32
    return %c0_i32, %c0_i32_0 : i32, i32
  }
  func.func @transform_3(%arg0: i32) -> (i32, i32, i32) {
    %c0_i32 = arith.constant 0 : i32
    %c0_i32_0 = arith.constant 0 : i32
    %c0_i32_1 = arith.constant 0 : i32
    %c0_i32_2 = arith.constant 0 : i32
    return %c0_i32, %c0_i32_0, %c0_i32_1 : i32, i32, i32
  }
  func.func @transform_4(%arg0: i32) -> (i32, i32) {
    %c0_i32 = arith.constant 0 : i32
    %c0_i32_0 = arith.constant 0 : i32
    %c0_i32_1 = arith.constant 0 : i32
    return %c0_i32, %c0_i32_0 : i32, i32
  }
  func.func @transform_5(%arg0: i32) -> (i32, i32, i32) {
    %c0_i32 = arith.constant 0 : i32
    %c0_i32_0 = arith.constant 0 : i32
    %c0_i32_1 = arith.constant 0 : i32
    %c0_i32_2 = arith.constant 0 : i32
    return %c0_i32, %c0_i32_0, %c0_i32_1 : i32, i32, i32
  }
  func.func @transform_6(%arg0: i32) -> (i32, i32) {
    %c0_i32 = arith.constant 0 : i32
    %c0_i32_0 = arith.constant 0 : i32
    %c0_i32_1 = arith.constant 0 : i32
    return %c0_i32, %c0_i32_0 : i32, i32
  }
  func.func @transform_7(%arg0: i32) -> (i32, i32, i32) {
    %c0_i32 = arith.constant 0 : i32
    %c0_i32_0 = arith.constant 0 : i32
    %c0_i32_1 = arith.constant 0 : i32
    %c0_i32_2 = arith.constant 0 : i32
    return %c0_i32, %c0_i32_0, %c0_i32_1 : i32, i32, i32
  }
  func.func @transform_8(%arg0: i32) -> (i32, i32) {
    %c0_i32 = arith.constant 0 : i32
    %c0_i32_0 = arith.constant 0 : i32
    %c0_i32_1 = arith.constant 0 : i32
    return %c0_i32, %c0_i32_0 : i32, i32
  }
  func.func @transform_9(%arg0: i32) -> (i32, i32, i32) {
    %c0_i32 = arith.constant 0 : i32
    %c0_i32_0 = arith.constant 0 : i32
    %c0_i32_1 = arith.constant 0 : i32
    %c0_i32_2 = arith.constant 0 : i32
    return %c0_i32, %c0_i32_0, %c0_i32_1 : i32, i32, i32
  }
  func.func @transform_10(%arg0: i32) -> (i32, i32) {
    %c0_i32 = arith.constant 0 : i32
    %c0_i32_0 = arith.constant 0 : i32
    %c0_i32_1 = arith.constant 0 : i32
    return %c0_i32, %c0_i32_0 : i32, i32
  }
  func.func @transform_11(%arg0: i32) -> (i32, i32) {
    %c0_i32 = arith.constant 0 : i32
    %c0_i32_0 = arith.constant 0 : i32
    %c0_i32_1 = arith.constant 0 : i32
    return %c0_i32, %c0_i32_0 : i32, i32
  }
  func.func @transform_12(%arg0: i32) -> (i32, i32) {
    %c0_i32 = arith.constant 0 : i32
    %c0_i32_0 = arith.constant 0 : i32
    %c0_i32_1 = arith.constant 0 : i32
    return %c0_i32, %c0_i32_0 : i32, i32
  }
  func.func @transform_13(%arg0: i32) -> (i32, i32, i32) {
    %c0_i32 = arith.constant 0 : i32
    %c0_i32_0 = arith.constant 0 : i32
    %c0_i32_1 = arith.constant 0 : i32
    return %arg0, %c0_i32, %c0_i32_0 : i32, i32, i32
  }
}

</mosaic_0001>

<llo_original>
// kernel: tpu_custom_call.1
$region0: #{tpu_custom_call.1}
  #allocation0 [shape = 'u32[]', space=smem, size = 0x4, offset = 0x4, fixed_abs, tag = 'smem constant byte address 0x4 - core index']
  #allocation1 [shape = 'u32[144,128]{1,0:T(1,128)}', space=vmem, size = 0x12000, scoped, tag = 'internal scratch']
  #allocation2 [shape = 'f32[18,128]{1,0:T(8,128)}', space=vmem, size = 0x3000, scoped, tag = 'scratch operand']
  #allocation3 [shape = 'f32[18,64]{1,0:T(8,128)}', space=vmem, size = 0x3000, scoped, tag = 'scratch operand']
  #allocation4 [shape = 'f32[18,256]{1,0:T(8,128)}', space=vmem, size = 0x6000, scoped, tag = 'scratch operand']
  #allocation5 [shape = 'f32[18,256]{1,0:T(8,128)}', space=vmem, size = 0x6000, scoped, tag = 'scratch operand']
  %s0 = inlined_call_operand.vmem [shape: f32[2,18,64], index: 0, kind: input, shape index: {}]
  %s1 = inlined_call_operand.vmem [shape: f32[3,64,128], index: 1, kind: input, shape index: {}]
  %s2 = inlined_call_operand.vmem [shape: f32[1,128], index: 2, kind: input, shape index: {}]
  %s3 = inlined_call_operand.vmem [shape: f32[3,128,64], index: 3, kind: input, shape index: {}]
  %s4 = inlined_call_operand.vmem [shape: f32[1,64], index: 4, kind: input, shape index: {}]
  %s5 = inlined_call_operand.vmem [shape: f32[3,64,256], index: 5, kind: input, shape index: {}]
  %s6 = inlined_call_operand.vmem [shape: f32[1,256], index: 6, kind: input, shape index: {}]
  %s7 = inlined_call_operand.hbm [shape: f32[3,256,256], index: 7, kind: input, shape index: {}]
  %s8 = inlined_call_operand.vmem [shape: f32[1,256], index: 8, kind: input, shape index: {}]
  %s9 = inlined_call_operand.hbm [shape: f32[3,256,256], index: 9, kind: input, shape index: {}]
  %s10 = inlined_call_operand.vmem [shape: f32[1,256], index: 10, kind: input, shape index: {}]
  %s11 = inlined_call_operand.vmem [shape: f32[256,30], index: 11, kind: input, shape index: {}]
  %s12 = inlined_call_operand.vmem [shape: f32[1,30], index: 12, kind: input, shape index: {}]
  %s13 = inlined_call_operand.hbm [shape: f32[2,1,30], index: 13, kind: output, shape index: {}]
  %s14 = sld [smem:[#allocation0]]
  $region93: #{tpu_custom_call.1} parent=0
    _
  %s16 = ssub.s32 1, %s14
  %s17 = scalar_select 0, %s16, %s14
  $region1: #{tpu_custom_call.1} parent=0
    #allocation6 [shape = 'u8[786432]{0}', space=vmem, size = 0xc0000, scoped, tag = 'input window, operand 7, single buffered']
    #allocation7 [shape = 's32[2]{0}', space=sflag, size = 0x8, scoped, tag = 'scoped memory for tpu_custom_call.1']
    #allocation8 [shape = 's32[2]{0}', space=sflag, size = 0x8, scoped, tag = 'scoped memory for tpu_custom_call.1']
    #allocation9 [shape = 'u8[786432]{0}', space=vmem, size = 0xc0000, scoped, tag = 'input window, operand 9, single buffered']
    #allocation10 [shape = 's32[1]{0}', space=sflag, size = 0x4, scoped, tag = 'scoped memory for tpu_custom_call.1']
    #allocation11 [shape = 'u8[1024]{0}', space=vmem, size = 0x400, scoped, tag = 'output window, operand 0']
    %18 = vsyncpa [#allocation7], 0
    %19 = vsyncpa [#allocation10], 0
    %20 = vsyncpa [#allocation8], 0
    %s21 = scalar_lea.sflag [#allocation8], 1
    %22 = vsyncpa %s21, 0
    loop: start=0, step=1, limit=4
    $region2: #{tpu_custom_call.1} parent=1 // loop_pre_header
      _
    $region3: #{tpu_custom_call.1} parent=1 // loop_header
      %s24 = sphi 0, %s28
      %p25 = scmp.ge.s32.totalorder %s24, 4
      %s34 = sphi 0, %s36
      %s37 = sphi 0, %s34
      %s38 = sphi 0, %s37
      %s54 = sphi 0, %s38
      %s58 = sphi 0, %s58
      %s60 = sphi 0, %s58
      %s61 = sphi 0, %s60
      %s75 = sphi 0, %s61
      %s79 = sphi 0, %s79
      %s81 = sphi 0, %s79
      %s82 = sphi 0, %s81
      %s96 = sphi 0, %s82
      %s100 = sphi 0, %s100
      %s102 = sphi 0, %s100
      %s103 = sphi 0, %s102
      %s117 = sphi 0, %s103
      %s121 = sphi 0, %s121
      %s123 = sphi 0, %s121
      %s124 = sphi 0, %s123
      %s138 = sphi 0, %s124
      %s142 = sphi 0, %s142
      %s144 = sphi 0, %s142
      %s145 = sphi 0, %s144
      %s159 = sphi 0, %s145
      %s163 = sphi 0, %s163
      %s165 = sphi 0, %s163
      %s166 = sphi 0, %s165
      %s180 = sphi 0, %s166
      %s184 = sphi 0, %s184
      %s186 = sphi 0, %s184
      %s187 = sphi 0, %s186
      %s201 = sphi 0, %s187
      %s205 = sphi 0, %s205
      %s207 = sphi 0, %s205
      %s208 = sphi 0, %s207
      %s222 = sphi 0, %s208
      %s226 = sphi 0, %s226
      %s228 = sphi 0, %s226
      %s229 = sphi 0, %s228
      %s243 = sphi 0, %s229
      %s247 = sphi 0, %s247
      %s249 = sphi 0, %s247
      %s250 = sphi 0, %s249
      %s264 = sphi 0, %s250
      %s268 = sphi 0, %s268
      %s270 = sphi 0, %s268
      %s271 = sphi 0, %s270
      %s285 = sphi 0, %s271
      %s289 = sphi 0, %s289
      %s291 = sphi 0, %s289
      %s292 = sphi 0, %s291
      %s306 = sphi 0, %s292
      %s312 = sphi 0, %s314
      %s315 = sphi 0, %s312
      %s316 = sphi 0, %s315
      %s332 = sphi 0, %s316
    $region4: #{tpu_custom_call.1} parent=1 // loop_header_branch
      %27 = sbr.rel (%p25) target = $region8
    $region5: #{tpu_custom_call.1} parent=1 // loop_body
      %s29 = ssub.s32 %s24, 1
      %s30 = ssub.s32 %s24, 2
      %s31 = sadd.s32 %s24, 1
      %s32 = ssub.s32 %s24, %s31
      %p33 = scmp.eq.s32.totalorder %s32, 0
      %s35 = sadd.s32 %s34, 1
      %s36 = scalar_select %p33, %s34, %s35
      %p39 = pneg %p33
      %p40 = scmp.eq.s32.totalorder %s24, 1
      %p41 = por %p39, %p40
      %p42 = scmp.ne.s32.totalorder %s34, %s37
      %p43 = scmp.eq.s32.totalorder %s24, 0
      %p44 = por %p42, %p43
      %p45 = scmp.ne.s32.totalorder %s34, %s37
      %p46 = scmp.eq.s32.totalorder %s29, 1
      %p47 = por %p45, %p46
      %p48 = scmp.ne.s32.totalorder %s37, %s38
      %p49 = scmp.eq.s32.totalorder %s29, 0
      %p50 = por %p48, %p49
      %p51 = scmp.ne.s32.totalorder %s37, %s38
      %p52 = scmp.eq.s32.totalorder %s30, 1
      %p53 = por %p51, %p52
      %p55 = scmp.ne.s32.totalorder %s38, %s54
      %p56 = scmp.eq.s32.totalorder %s30, 0
      %p57 = por %p55, %p56
      %s59 = sadd.s32 %s58, 1
      %p62 = scmp.eq.s32.totalorder %s24, 1
      %p63 = scmp.ne.s32.totalorder %s58, %s60
      %p64 = scmp.eq.s32.totalorder %s24, 0
      %p65 = por %p63, %p64
      %p66 = scmp.ne.s32.totalorder %s58, %s60
      %p67 = scmp.eq.s32.totalorder %s29, 1
      %p68 = por %p66, %p67
      %p69 = scmp.ne.s32.totalorder %s60, %s61
      %p70 = scmp.eq.s32.totalorder %s29, 0
      %p71 = por %p69, %p70
      %p72 = scmp.ne.s32.totalorder %s60, %s61
      %p73 = scmp.eq.s32.totalorder %s30, 1
      %p74 = por %p72, %p73
      %p76 = scmp.ne.s32.totalorder %s61, %s75
      %p77 = scmp.eq.s32.totalorder %s30, 0
      %p78 = por %p76, %p77
      %s80 = sadd.s32 %s79, 1
      %p83 = scmp.eq.s32.totalorder %s24, 1
      %p84 = scmp.ne.s32.totalorder %s79, %s81
      %p85 = scmp.eq.s32.totalorder %s24, 0
      %p86 = por %p84, %p85
      %p87 = scmp.ne.s32.totalorder %s79, %s81
      %p88 = scmp.eq.s32.totalorder %s29, 1
      %p89 = por %p87, %p88
      %p90 = scmp.ne.s32.totalorder %s81, %s82
      %p91 = scmp.eq.s32.totalorder %s29, 0
      %p92 = por %p90, %p91
      %p93 = scmp.ne.s32.totalorder %s81, %s82
      %p94 = scmp.eq.s32.totalorder %s30, 1
      %p95 = por %p93, %p94
      %p97 = scmp.ne.s32.totalorder %s82, %s96
      %p98 = scmp.eq.s32.totalorder %s30, 0
      %p99 = por %p97, %p98
      %s101 = sadd.s32 %s100, 1
      %p104 = scmp.eq.s32.totalorder %s24, 1
      %p105 = scmp.ne.s32.totalorder %s100, %s102
      %p106 = scmp.eq.s32.totalorder %s24, 0
      %p107 = por %p105, %p106
      %p108 = scmp.ne.s32.totalorder %s100, %s102
      %p109 = scmp.eq.s32.totalorder %s29, 1
      %p110 = por %p108, %p109
      %p111 = scmp.ne.s32.totalorder %s102, %s103
      %p112 = scmp.eq.s32.totalorder %s29, 0
      %p113 = por %p111, %p112
      %p114 = scmp.ne.s32.totalorder %s102, %s103
      %p115 = scmp.eq.s32.totalorder %s30, 1
      %p116 = por %p114, %p115
      %p118 = scmp.ne.s32.totalorder %s103, %s117
      %p119 = scmp.eq.s32.totalorder %s30, 0
      %p120 = por %p118, %p119
      %s122 = sadd.s32 %s121, 1
      %p125 = scmp.eq.s32.totalorder %s24, 1
      %p126 = scmp.ne.s32.totalorder %s121, %s123
      %p127 = scmp.eq.s32.totalorder %s24, 0
      %p128 = por %p126, %p127
      %p129 = scmp.ne.s32.totalorder %s121, %s123
      %p130 = scmp.eq.s32.totalorder %s29, 1
      %p131 = por %p129, %p130
      %p132 = scmp.ne.s32.totalorder %s123, %s124
      %p133 = scmp.eq.s32.totalorder %s29, 0
      %p134 = por %p132, %p133
      %p135 = scmp.ne.s32.totalorder %s123, %s124
      %p136 = scmp.eq.s32.totalorder %s30, 1
      %p137 = por %p135, %p136
      %p139 = scmp.ne.s32.totalorder %s124, %s138
      %p140 = scmp.eq.s32.totalorder %s30, 0
      %p141 = por %p139, %p140
      %s143 = sadd.s32 %s142, 1
      %p146 = scmp.eq.s32.totalorder %s24, 1
      %p147 = scmp.ne.s32.totalorder %s142, %s144
      %p148 = scmp.eq.s32.totalorder %s24, 0
      %p149 = por %p147, %p148
      %p150 = scmp.ne.s32.totalorder %s142, %s144
      %p151 = scmp.eq.s32.totalorder %s29, 1
      %p152 = por %p150, %p151
      %p153 = scmp.ne.s32.totalorder %s144, %s145
      %p154 = scmp.eq.s32.totalorder %s29, 0
      %p155 = por %p153, %p154
      %p156 = scmp.ne.s32.totalorder %s144, %s145
      %p157 = scmp.eq.s32.totalorder %s30, 1
      %p158 = por %p156, %p157
      %p160 = scmp.ne.s32.totalorder %s145, %s159
      %p161 = scmp.eq.s32.totalorder %s30, 0
      %p162 = por %p160, %p161
      %s164 = sadd.s32 %s163, 1
      %p167 = scmp.eq.s32.totalorder %s24, 1
      %p168 = scmp.ne.s32.totalorder %s163, %s165
      %p169 = scmp.eq.s32.totalorder %s24, 0
      %p170 = por %p168, %p169
      %p171 = scmp.ne.s32.totalorder %s163, %s165
      %p172 = scmp.eq.s32.totalorder %s29, 1
      %p173 = por %p171, %p172
      %p174 = scmp.ne.s32.totalorder %s165, %s166
      %p175 = scmp.eq.s32.totalorder %s29, 0
      %p176 = por %p174, %p175
      %p177 = scmp.ne.s32.totalorder %s165, %s166
      %p178 = scmp.eq.s32.totalorder %s30, 1
      %p179 = por %p177, %p178
      %p181 = scmp.ne.s32.totalorder %s166, %s180
      %p182 = scmp.eq.s32.totalorder %s30, 0
      %p183 = por %p181, %p182
      %s185 = sadd.s32 %s184, 1
      %p188 = scmp.eq.s32.totalorder %s24, 1
      %p189 = scmp.ne.s32.totalorder %s184, %s186
      %p190 = scmp.eq.s32.totalorder %s24, 0
      %p191 = por %p189, %p190
      %p192 = scmp.ne.s32.totalorder %s184, %s186
      %p193 = scmp.eq.s32.totalorder %s29, 1
      %p194 = por %p192, %p193
      %p195 = scmp.ne.s32.totalorder %s186, %s187
      %p196 = scmp.eq.s32.totalorder %s29, 0
      %p197 = por %p195, %p196
      %p198 = scmp.ne.s32.totalorder %s186, %s187
      %p199 = scmp.eq.s32.totalorder %s30, 1
      %p200 = por %p198, %p199
      %p202 = scmp.ne.s32.totalorder %s187, %s201
      %p203 = scmp.eq.s32.totalorder %s30, 0
      %p204 = por %p202, %p203
      %s206 = sadd.s32 %s205, 1
      %p209 = scmp.eq.s32.totalorder %s24, 1
      %p210 = scmp.ne.s32.totalorder %s205, %s207
      %p211 = scmp.eq.s32.totalorder %s24, 0
      %p212 = por %p210, %p211
      %p213 = scmp.ne.s32.totalorder %s205, %s207
      %p214 = scmp.eq.s32.totalorder %s29, 1
      %p215 = por %p213, %p214
      %p216 = scmp.ne.s32.totalorder %s207, %s208
      %p217 = scmp.eq.s32.totalorder %s29, 0
      %p218 = por %p216, %p217
      %p219 = scmp.ne.s32.totalorder %s207, %s208
      %p220 = scmp.eq.s32.totalorder %s30, 1
      %p221 = por %p219, %p220
      %p223 = scmp.ne.s32.totalorder %s208, %s222
      %p224 = scmp.eq.s32.totalorder %s30, 0
      %p225 = por %p223, %p224
      %s227 = sadd.s32 %s226, 1
      %p230 = scmp.eq.s32.totalorder %s24, 1
      %p231 = scmp.ne.s32.totalorder %s226, %s228
      %p232 = scmp.eq.s32.totalorder %s24, 0
      %p233 = por %p231, %p232
      %p234 = scmp.ne.s32.totalorder %s226, %s228
      %p235 = scmp.eq.s32.totalorder %s29, 1
      %p236 = por %p234, %p235
      %p237 = scmp.ne.s32.totalorder %s228, %s229
      %p238 = scmp.eq.s32.totalorder %s29, 0
      %p239 = por %p237, %p238
      %p240 = scmp.ne.s32.totalorder %s228, %s229
      %p241 = scmp.eq.s32.totalorder %s30, 1
      %p242 = por %p240, %p241
      %p244 = scmp.ne.s32.totalorder %s229, %s243
      %p245 = scmp.eq.s32.totalorder %s30, 0
      %p246 = por %p244, %p245
      %s248 = sadd.s32 %s247, 1
      %p251 = scmp.eq.s32.totalorder %s24, 1
      %p252 = scmp.ne.s32.totalorder %s247, %s249
      %p253 = scmp.eq.s32.totalorder %s24, 0
      %p254 = por %p252, %p253
      %p255 = scmp.ne.s32.totalorder %s247, %s249
      %p256 = scmp.eq.s32.totalorder %s29, 1
      %p257 = por %p255, %p256
      %p258 = scmp.ne.s32.totalorder %s249, %s250
      %p259 = scmp.eq.s32.totalorder %s29, 0
      %p260 = por %p258, %p259
      %p261 = scmp.ne.s32.totalorder %s249, %s250
      %p262 = scmp.eq.s32.totalorder %s30, 1
      %p263 = por %p261, %p262
      %p265 = scmp.ne.s32.totalorder %s250, %s264
      %p266 = scmp.eq.s32.totalorder %s30, 0
      %p267 = por %p265, %p266
      %s269 = sadd.s32 %s268, 1
      %p272 = scmp.eq.s32.totalorder %s24, 1
      %p273 = scmp.ne.s32.totalorder %s268, %s270
      %p274 = scmp.eq.s32.totalorder %s24, 0
      %p275 = por %p273, %p274
      %p276 = scmp.ne.s32.totalorder %s268, %s270
      %p277 = scmp.eq.s32.totalorder %s29, 1
      %p278 = por %p276, %p277
      %p279 = scmp.ne.s32.totalorder %s270, %s271
      %p280 = scmp.eq.s32.totalorder %s29, 0
      %p281 = por %p279, %p280
      %p282 = scmp.ne.s32.totalorder %s270, %s271
      %p283 = scmp.eq.s32.totalorder %s30, 1
      %p284 = por %p282, %p283
      %p286 = scmp.ne.s32.totalorder %s271, %s285
      %p287 = scmp.eq.s32.totalorder %s30, 0
      %p288 = por %p286, %p287
      %s290 = sadd.s32 %s289, 1
      %p293 = scmp.eq.s32.totalorder %s24, 1
      %p294 = scmp.ne.s32.totalorder %s289, %s291
      %p295 = scmp.eq.s32.totalorder %s24, 0
      %p296 = por %p294, %p295
      %p297 = scmp.ne.s32.totalorder %s289, %s291
      %p298 = scmp.eq.s32.totalorder %s29, 1
      %p299 = por %p297, %p298
      %p300 = scmp.ne.s32.totalorder %s291, %s292
      %p301 = scmp.eq.s32.totalorder %s29, 0
      %p302 = por %p300, %p301
      %p303 = scmp.ne.s32.totalorder %s291, %s292
      %p304 = scmp.eq.s32.totalorder %s30, 1
      %p305 = por %p303, %p304
      %p307 = scmp.ne.s32.totalorder %s292, %s306
      %p308 = scmp.eq.s32.totalorder %s30, 0
      %p309 = por %p307, %p308
      %s310 = ssub.s32 %s24, %s31
      %p311 = scmp.eq.s32.totalorder %s310, 0
      %s313 = sadd.s32 %s312, 1
      %s314 = scalar_select %p311, %s312, %s313
      %p317 = pneg %p311
      %p318 = scmp.eq.s32.totalorder %s24, 1
      %p319 = por %p317, %p318
      %p320 = scmp.ne.s32.totalorder %s312, %s315
      %p321 = scmp.eq.s32.totalorder %s24, 0
      %p322 = por %p320, %p321
      %p323 = scmp.ne.s32.totalorder %s312, %s315
      %p324 = scmp.eq.s32.totalorder %s29, 1
      %p325 = por %p323, %p324
      %p326 = scmp.ne.s32.totalorder %s315, %s316
      %p327 = scmp.eq.s32.totalorder %s29, 0
      %p328 = por %p326, %p327
      %p329 = scmp.ne.s32.totalorder %s315, %s316
      %p330 = scmp.eq.s32.totalorder %s30, 1
      %p331 = por %p329, %p330
      %p333 = scmp.ne.s32.totalorder %s316, %s332
      %p334 = scmp.eq.s32.totalorder %s30, 0
      %p335 = por %p333, %p334
      %p336 = scmp.le.s32.totalorder 1, %s24
      %p337 = scmp.lt.s32.totalorder %s24, 3
      %p338 = pnand %p336, %p337
      %p339 = pneg %p338
      // Predicated region
      $region9: #{tpu_custom_call.1} parent=5 // pred_check
        _
      $region10: #{tpu_custom_call.1} parent=5 // pred_check_branch
        %341 = sbr.rel (%p338) target = $region12
      $region11: #{tpu_custom_call.1} parent=5 // pred_region
        %s342 = ssub.s32 %s24, 1
        // Predicated region
        $region13: #{tpu_custom_call.1} parent=11 // pred_check
          %p343 = pneg %p71
        $region14: #{tpu_custom_call.1} parent=11 // pred_check_branch
          %345 = sbr.rel (%p343) target = $region16
        $region15: #{tpu_custom_call.1} parent=11 // pred_region
          _
        $region16: #{tpu_custom_call.1} parent=11 // pred_fallthru
          _
        // Predicated region
        $region17: #{tpu_custom_call.1} parent=11 // pred_check
          %p346 = pneg %p92
        $region18: #{tpu_custom_call.1} parent=11 // pred_check_branch
          %348 = sbr.rel (%p346) target = $region20
        $region19: #{tpu_custom_call.1} parent=11 // pred_region
          _
        $region20: #{tpu_custom_call.1} parent=11 // pred_fallthru
          _
        // Predicated region
        $region21: #{tpu_custom_call.1} parent=11 // pred_check
          %p349 = pneg %p113
        $region22: #{tpu_custom_call.1} parent=11 // pred_check_branch
          %351 = sbr.rel (%p349) target = $region24
        $region23: #{tpu_custom_call.1} parent=11 // pred_region
          _
        $region24: #{tpu_custom_call.1} parent=11 // pred_fallthru
          _
        // Predicated region
        $region25: #{tpu_custom_call.1} parent=11 // pred_check
          %p352 = pneg %p134
        $region26: #{tpu_custom_call.1} parent=11 // pred_check_branch
          %354 = sbr.rel (%p352) target = $region28
        $region27: #{tpu_custom_call.1} parent=11 // pred_region
          _
        $region28: #{tpu_custom_call.1} parent=11 // pred_fallthru
          _
        // Predicated region
        $region29: #{tpu_custom_call.1} parent=11 // pred_check
          %p355 = pneg %p155
        $region30: #{tpu_custom_call.1} parent=11 // pred_check_branch
          %357 = sbr.rel (%p355) target = $region32
        $region31: #{tpu_custom_call.1} parent=11 // pred_region
          _
        $region32: #{tpu_custom_call.1} parent=11 // pred_fallthru
          _
        // Predicated region
        $region33: #{tpu_custom_call.1} parent=11 // pred_check
          %p358 = pneg %p176
        $region34: #{tpu_custom_call.1} parent=11 // pred_check_branch
          %360 = sbr.rel (%p358) target = $region36
        $region35: #{tpu_custom_call.1} parent=11 // pred_region
          _
        $region36: #{tpu_custom_call.1} parent=11 // pred_fallthru
          _
        // Predicated region
        $region37: #{tpu_custom_call.1} parent=11 // pred_check
          %p361 = pneg %p197
        $region38: #{tpu_custom_call.1} parent=11 // pred_check_branch
          %363 = sbr.rel (%p361) target = $region40
        $region39: #{tpu_custom_call.1} parent=11 // pred_region
          %s365 = ssub.s32 24576, 24576
          %366 = vsyncadd [#allocation7], %s365
          %s367 = sshll.u32 [#allocation6], 4
          %s368 = int_to_ptr.vmem [resolvable:$true] %s367
          %373 = dma.hbm_to_vmem [thread:$0]  %s7, 24576, %s368, [#allocation7], 256, 256, 16
        $region40: #{tpu_custom_call.1} parent=11 // pred_fallthru
          _
        // Predicated region
        $region41: #{tpu_custom_call.1} parent=11 // pred_check
          %p374 = pneg %p218
        $region42: #{tpu_custom_call.1} parent=11 // pred_check_branch
          %376 = sbr.rel (%p374) target = $region44
        $region43: #{tpu_custom_call.1} parent=11 // pred_region
          _
        $region44: #{tpu_custom_call.1} parent=11 // pred_fallthru
          _
        // Predicated region
        $region45: #{tpu_custom_call.1} parent=11 // pred_check
          %p377 = pneg %p239
        $region46: #{tpu_custom_call.1} parent=11 // pred_check_branch
          %379 = sbr.rel (%p377) target = $region48
        $region47: #{tpu_custom_call.1} parent=11 // pred_region
          %s381 = ssub.s32 24576, 24576
          %382 = vsyncadd [#allocation10], %s381
          %s383 = sshll.u32 [#allocation9], 4
          %s384 = int_to_ptr.vmem [resolvable:$true] %s383
          %389 = dma.hbm_to_vmem [thread:$0]  %s9, 24576, %s384, [#allocation10], 256, 256, 16
        $region48: #{tpu_custom_call.1} parent=11 // pred_fallthru
          _
        // Predicated region
        $region49: #{tpu_custom_call.1} parent=11 // pred_check
          %p390 = pneg %p260
        $region50: #{tpu_custom_call.1} parent=11 // pred_check_branch
          %392 = sbr.rel (%p390) target = $region52
        $region51: #{tpu_custom_call.1} parent=11 // pred_region
          _
        $region52: #{tpu_custom_call.1} parent=11 // pred_fallthru
          _
        // Predicated region
        $region53: #{tpu_custom_call.1} parent=11 // pred_check
          %p393 = pneg %p281
        $region54: #{tpu_custom_call.1} parent=11 // pred_check_branch
          %395 = sbr.rel (%p393) target = $region56
        $region55: #{tpu_custom_call.1} parent=11 // pred_region
          _
        $region56: #{tpu_custom_call.1} parent=11 // pred_fallthru
          _
        // Predicated region
        $region57: #{tpu_custom_call.1} parent=11 // pred_check
          %p396 = pneg %p302
        $region58: #{tpu_custom_call.1} parent=11 // pred_check_branch
          %398 = sbr.rel (%p396) target = $region60
        $region59: #{tpu_custom_call.1} parent=11 // pred_region
          _
        $region60: #{tpu_custom_call.1} parent=11 // pred_fallthru
          _
      $region12: #{tpu_custom_call.1} parent=5 // pred_fallthru
        _
      %p399 = scmp.lt.s32.totalorder %s24, 2
      // Predicated region
      $region61: #{tpu_custom_call.1} parent=5 // pred_check
        %p400 = pneg %p399
      $region62: #{tpu_custom_call.1} parent=5 // pred_check_branch
        %402 = sbr.rel (%p400) target = $region64
      $region63: #{tpu_custom_call.1} parent=5 // pred_region
        // Predicated region
        $region65: #{tpu_custom_call.1} parent=63 // pred_check
          %p403 = pneg %p44
        $region66: #{tpu_custom_call.1} parent=63 // pred_check_branch
          %405 = sbr.rel (%p403) target = $region68
        $region67: #{tpu_custom_call.1} parent=63 // pred_region
          %p406 = scmp.lt.s32.totalorder %s24, 1
          %s407 = scalar_select %p406, %s24, 1
          %s408 = smul.addr %s407, 3
          %s409 = smul.addr %s408, 8
          %s410 = scalar_lea.vmem %s0, %s409
        $region68: #{tpu_custom_call.1} parent=63 // pred_fallthru
          _
      $region64: #{tpu_custom_call.1} parent=5 // pred_fallthru
        _
      %p411 = scmp.le.s32.totalorder 1, %s24
      %p412 = scmp.lt.s32.totalorder %s24, 3
      %p413 = pnand %p411, %p412
      %p414 = pneg %p413
      // Predicated region
      $region69: #{tpu_custom_call.1} parent=5 // pred_check
        _
      $region70: #{tpu_custom_call.1} parent=5 // pred_check_branch
        %416 = sbr.rel (%p413) target = $region72
      $region71: #{tpu_custom_call.1} parent=5 // pred_region
        %s417 = ssub.s32 %s24, 1
        // Predicated region
        $region73: #{tpu_custom_call.1} parent=71 // pred_check
          %p418 = pneg %p197
        $region74: #{tpu_custom_call.1} parent=71 // pred_check_branch
          %420 = sbr.rel (%p418) target = $region76
        $region75: #{tpu_custom_call.1} parent=71 // pred_region
          %421 = dma.done [#allocation7], 24576
        $region76: #{tpu_custom_call.1} parent=71 // pred_fallthru
          _
        // Predicated region
        $region77: #{tpu_custom_call.1} parent=71 // pred_check
          %p422 = pneg %p239
        $region78: #{tpu_custom_call.1} parent=71 // pred_check_branch
          %424 = sbr.rel (%p422) target = $region80
        $region79: #{tpu_custom_call.1} parent=71 // pred_region
          %425 = dma.done [#allocation10], 24576
        $region80: #{tpu_custom_call.1} parent=71 // pred_fallthru
          _
        %p426 = scmp.lt.s32.totalorder %s29, 1
        %s427 = scalar_select %p426, %s29, 1
        %s428 = smul.addr %s427, 3
        %s429 = smul.addr %s428, 8
        %s430 = scalar_lea.vmem %s0, %s429
        %p431 = pneg %p50
        %p432 = pneg %p47
        %p433 = pneg %p71
        %p434 = pneg %p68
        %p435 = pneg %p92
        %p436 = pneg %p89
        %p437 = pneg %p113
        %p438 = pneg %p110
        %p439 = pneg %p134
        %p440 = pneg %p131
        %p441 = pneg %p155
        %p442 = pneg %p152
        %p443 = pneg %p176
        %p444 = pneg %p173
        %p445 = pneg %p197
        %p446 = pneg %p194
        %p447 = pneg %p218
        %p448 = pneg %p215
        %p449 = pneg %p239
        %p450 = pneg %p236
        %p451 = pneg %p260
        %p452 = pneg %p257
        %p453 = pneg %p281
        %p454 = pneg %p278
        %p455 = pneg %p302
        %p456 = pneg %p299
        %p457 = pneg %p328
        %p458 = pneg %p325
        %s459 = sand.u32 %s315, 1
        %s460 = scalar_lea.sflag [#allocation8], %s459
        %s461 = sand.u32 %s315, 1
        %s462 = scalar_lea.vmem [#allocation11], %s461
        %p463 = scmp.lt.s32.totalorder %s29, 1
        %s464 = scalar_select %p463, %s29, 1
        %s465 = smul.addr %s464, 3
        %s466 = smul.addr %s465, 8
        %s467 = scalar_lea.vmem %s0, %s466
        %v468 = vld [vmem:[%s467] sm:$0xff]
        %v469 = vld [vmem:[%s467 + $0x8] sm:$0xff]
        %v470 = vld [vmem:[%s467 + $0x10] sm:$0x3]
        %v471 = vld [vmem:[%s1] sm:$0xff]
        %v472 = vld [vmem:[%s1 + $0x8] sm:$0xff]
        %v473 = vld [vmem:[%s1 + $0x10] sm:$0xff]
        %v474 = vld [vmem:[%s1 + $0x18] sm:$0xff]
        %v475 = vld [vmem:[%s1 + $0x20] sm:$0xff]
        %v476 = vld [vmem:[%s1 + $0x28] sm:$0xff]
        %v477 = vld [vmem:[%s1 + $0x30] sm:$0xff]
        %v478 = vld [vmem:[%s1 + $0x38] sm:$0xff]
        %s479 = scalar_lea.vmem %s1, 64
        %v480 = vld [vmem:[%s479] sm:$0xff]
        %v481 = vld [vmem:[%s479 + $0x8] sm:$0xff]
        %v482 = vld [vmem:[%s479 + $0x10] sm:$0xff]
        %v483 = vld [vmem:[%s479 + $0x18] sm:$0xff]
        %v484 = vld [vmem:[%s479 + $0x20] sm:$0xff]
        %v485 = vld [vmem:[%s479 + $0x28] sm:$0xff]
        %v486 = vld [vmem:[%s479 + $0x30] sm:$0xff]
        %v487 = vld [vmem:[%s479 + $0x38] sm:$0xff]
        %vm491 = vcmask 1046528
        %v492 = vrot.slane %v468, 1
        %v493 = vrot.slane %v469, 1
        %v494 = vsel %vm491, %v492, %v493
        %v495 = vrot.slane %v470, 1
        %v496 = vsel %vm491, %v493, %v495
        %vm497 = vcmask 523264
        %v498 = vsel %vm497, %v494, 0
        %v500 = vsel %vm497, %v496, 0
        %502 = vmatprep.subr.mxu0 0.0
        %503 = vmatpush1.msra.mxu0 %v480
        %504 = vmatprep.subr.mxu0 0.0
        %505 = vmatpush1.msra.mxu0 %v481
        %506 = vmatprep.subr.mxu0 0.0
        %507 = vmatpush1.msra.mxu0 %v482
        %508 = vmatprep.subr.mxu0 0.0
        %509 = vmatpush1.msra.mxu0 %v483
        %510 = vmatprep.subr.mxu0 0.0
        %511 = vmatpush1.msra.mxu0 %v484
        %512 = vmatprep.subr.mxu0 0.0
        %513 = vmatpush1.msra.mxu0 %v485
        %514 = vmatprep.subr.mxu0 0.0
        %515 = vmatpush1.msra.mxu0 %v486
        %516 = vmatprep.subr.mxu0 0.0
        %517 = vmatpush1.msra.mxu0 %v487
        %518 = vmatprep.subr.mxu0 0.0
        %519 = vmatpush1.msra.mxu0 0.0
        %520 = vmatprep.subr.mxu0 0.0
        %521 = vmatpush1.msra.mxu0 0.0
        %522 = vmatprep.subr.mxu0 0.0
        %523 = vmatpush1.msra.mxu0 0.0
        %524 = vmatprep.subr.mxu0 0.0
        %525 = vmatpush1.msra.mxu0 0.0
        %526 = vmatprep.subr.mxu0 0.0
        %527 = vmatpush1.msra.mxu0 0.0
        %528 = vmatprep.subr.mxu0 0.0
        %529 = vmatpush1.msra.mxu0 0.0
        %530 = vmatprep.subr.mxu0 0.0
        %531 = vmatpush1.msra.mxu0 0.0
        %532 = vmatprep.subr.mxu0 0.0
        %533 = vmatpush1.msra.mxu0 0.0
        %534 = vmatprep.subr.mxu0 0.0
        %535 = vmatpush1.msra.mxu0 0.0
        %536 = vmatprep.subr.mxu0 0.0
        %537 = vmatpush1.msra.mxu0 0.0
        %538 = vmatprep.subr.mxu0 0.0
        %539 = vmatpush1.msra.mxu0 0.0
        %540 = vmatprep.subr.mxu0 0.0
        %541 = vmatpush1.msra.mxu0 0.0
        %542 = vmatprep.subr.mxu0 0.0
        %543 = vmatpush1.msra.mxu0 0.0
        %544 = vmatprep.subr.mxu0 0.0
        %545 = vmatpush1.msra.mxu0 0.0
        %546 = vmatprep.subr.mxu0 0.0
        %547 = vmatpush1.msra.mxu0 0.0
        %548 = vmatprep.subr.mxu0 0.0
        %549 = vmatpush1.msra.mxu0 0.0
        %550 = vmatprep.subr.mxu0 0.0
        %551 = vmatpush1.msra.mxu0 0.0
        %552 = vmatprep.subr.mxu0 0.0
        %553 = vmatpush1.msra.mxu0 0.0
        %554 = vmatprep.subr.mxu0 0.0
        %555 = vmatpush1.msra.mxu0 0.0
        %556 = vmatprep.subr.mxu0 0.0
        %557 = vmatpush1.msra.mxu0 0.0
        %558 = vmatprep.subr.mxu0 0.0
        %559 = vmatpush1.msra.mxu0 0.0
        %560 = vmatprep.subr.mxu0 0.0
        %561 = vmatpush1.msra.mxu0 0.0
        %562 = vmatprep.subr.mxu0 0.0
        %563 = vmatpush1.msra.mxu0 0.0
        %564 = vmatprep.subr.mxu0 0.0
        %565 = vmatpush1.msra.mxu0 0.0
        %566 = vmatprep.mubr.f32.mxu0 0.0
        %567 = vmatmul.mubr.f32.gmra.mrb[0].mxu0 %v498
        %v568 = vpop.f32.mrb[0].mxu0
        %v569 = vadd.f32 0.0, %v568
        %v570 = vpop.f32.mrb[0].mxu0
        %571 = vmatprep.mubr.f32.mxu0 0.0
        %572 = vmatmul.mubr.f32.gmra.mrb[0].mxu0 %v500
        %v573 = vpop.f32.mrb[0].mxu0
        %v574 = vadd.f32 0.0, %v573
        %v575 = vpop.f32.mrb[0].mxu0
        %576 = vdwg.mxu0
        %v577 = vsel %vm497, %v468, 0
        %v579 = vsel %vm497, %v469, 0
        %581 = vmatprep.subr.mxu0 0.0
        %582 = vmatpush1.msra.mxu0 %v471
        %583 = vmatprep.subr.mxu0 0.0
        %584 = vmatpush1.msra.mxu0 %v472
        %585 = vmatprep.subr.mxu0 0.0
        %586 = vmatpush1.msra.mxu0 %v473
        %587 = vmatprep.subr.mxu0 0.0
        %588 = vmatpush1.msra.mxu0 %v474
        %589 = vmatprep.subr.mxu0 0.0
        %590 = vmatpush1.msra.mxu0 %v475
        %591 = vmatprep.subr.mxu0 0.0
        %592 = vmatpush1.msra.mxu0 %v476
        %593 = vmatprep.subr.mxu0 0.0
        %594 = vmatpush1.msra.mxu0 %v477
        %595 = vmatprep.subr.mxu0 0.0
        %596 = vmatpush1.msra.mxu0 %v478
        %597 = vmatprep.subr.mxu0 0.0
        %598 = vmatpush1.msra.mxu0 0.0
        %599 = vmatprep.subr.mxu0 0.0
        %600 = vmatpush1.msra.mxu0 0.0
        %601 = vmatprep.subr.mxu0 0.0
        %602 = vmatpush1.msra.mxu0 0.0
        %603 = vmatprep.subr.mxu0 0.0
        %604 = vmatpush1.msra.mxu0 0.0
        %605 = vmatprep.subr.mxu0 0.0
        %606 = vmatpush1.msra.mxu0 0.0
        %607 = vmatprep.subr.mxu0 0.0
        %608 = vmatpush1.msra.mxu0 0.0
        %609 = vmatprep.subr.mxu0 0.0
        %610 = vmatpush1.msra.mxu0 0.0
        %611 = vmatprep.subr.mxu0 0.0
        %612 = vmatpush1.msra.mxu0 0.0
        %613 = vmatprep.subr.mxu0 0.0
        %614 = vmatpush1.msra.mxu0 0.0
        %615 = vmatprep.subr.mxu0 0.0
        %616 = vmatpush1.msra.mxu0 0.0
        %617 = vmatprep.subr.mxu0 0.0
        %618 = vmatpush1.msra.mxu0 0.0
        %619 = vmatprep.subr.mxu0 0.0
        %620 = vmatpush1.msra.mxu0 0.0
        %621 = vmatprep.subr.mxu0 0.0
        %622 = vmatpush1.msra.mxu0 0.0
        %623 = vmatprep.subr.mxu0 0.0
        %624 = vmatpush1.msra.mxu0 0.0
        %625 = vmatprep.subr.mxu0 0.0
        %626 = vmatpush1.msra.mxu0 0.0
        %627 = vmatprep.subr.mxu0 0.0
        %628 = vmatpush1.msra.mxu0 0.0
        %629 = vmatprep.subr.mxu0 0.0
        %630 = vmatpush1.msra.mxu0 0.0
        %631 = vmatprep.subr.mxu0 0.0
        %632 = vmatpush1.msra.mxu0 0.0
        %633 = vmatprep.subr.mxu0 0.0
        %634 = vmatpush1.msra.mxu0 0.0
        %635 = vmatprep.subr.mxu0 0.0
        %636 = vmatpush1.msra.mxu0 0.0
        %637 = vmatprep.subr.mxu0 0.0
        %638 = vmatpush1.msra.mxu0 0.0
        %639 = vmatprep.subr.mxu0 0.0
        %640 = vmatpush1.msra.mxu0 0.0
        %641 = vmatprep.subr.mxu0 0.0
        %642 = vmatpush1.msra.mxu0 0.0
        %643 = vmatprep.subr.mxu0 0.0
        %644 = vmatpush1.msra.mxu0 0.0
        %645 = vmatprep.mubr.f32.mxu0 0.0
        %646 = vmatmul.mubr.f32.gmra.mrb[0].mxu0 %v577
        %v647 = vpop.f32.mrb[0].mxu0
        %v648 = vadd.f32 %v569, %v647
        %v649 = vpop.f32.mrb[0].mxu0
        %650 = vmatprep.mubr.f32.mxu0 0.0
        %651 = vmatmul.mubr.f32.gmra.mrb[0].mxu0 %v579
        %v652 = vpop.f32.mrb[0].mxu0
        %v653 = vadd.f32 %v574, %v652
        %v654 = vpop.f32.mrb[0].mxu0
        %655 = vdwg.mxu0
        %s656 = scalar_lea.vmem %s1, 128
        %v657 = vld [vmem:[%s656] sm:$0xff]
        %v658 = vld [vmem:[%s656 + $0x8] sm:$0xff]
        %v659 = vld [vmem:[%s656 + $0x10] sm:$0xff]
        %v660 = vld [vmem:[%s656 + $0x18] sm:$0xff]
        %v661 = vld [vmem:[%s656 + $0x20] sm:$0xff]
        %v662 = vld [vmem:[%s656 + $0x28] sm:$0xff]
        %v663 = vld [vmem:[%s656 + $0x30] sm:$0xff]
        %v664 = vld [vmem:[%s656 + $0x38] sm:$0xff]
        %vm665 = vcmask 1045504
        %v666 = vrot.slane %v468, 2
        %v667 = vrot.slane %v469, 2
        %v668 = vsel %vm665, %v666, %v667
        %v669 = vrot.slane %v470, 2
        %v670 = vsel %vm665, %v667, %v669
        %v671 = vsel %vm497, %v668, 0
        %v673 = vsel %vm497, %v670, 0
        %675 = vmatprep.subr.mxu0 0.0
        %676 = vmatpush1.msra.mxu0 %v657
        %677 = vmatprep.subr.mxu0 0.0
        %678 = vmatpush1.msra.mxu0 %v658
        %679 = vmatprep.subr.mxu0 0.0
        %680 = vmatpush1.msra.mxu0 %v659
        %681 = vmatprep.subr.mxu0 0.0
        %682 = vmatpush1.msra.mxu0 %v660
        %683 = vmatprep.subr.mxu0 0.0
        %684 = vmatpush1.msra.mxu0 %v661
        %685 = vmatprep.subr.mxu0 0.0
        %686 = vmatpush1.msra.mxu0 %v662
        %687 = vmatprep.subr.mxu0 0.0
        %688 = vmatpush1.msra.mxu0 %v663
        %689 = vmatprep.subr.mxu0 0.0
        %690 = vmatpush1.msra.mxu0 %v664
        %691 = vmatprep.subr.mxu0 0.0
        %692 = vmatpush1.msra.mxu0 0.0
        %693 = vmatprep.subr.mxu0 0.0
        %694 = vmatpush1.msra.mxu0 0.0
        %695 = vmatprep.subr.mxu0 0.0
        %696 = vmatpush1.msra.mxu0 0.0
        %697 = vmatprep.subr.mxu0 0.0
        %698 = vmatpush1.msra.mxu0 0.0
        %699 = vmatprep.subr.mxu0 0.0
        %700 = vmatpush1.msra.mxu0 0.0
        %701 = vmatprep.subr.mxu0 0.0
        %702 = vmatpush1.msra.mxu0 0.0
        %703 = vmatprep.subr.mxu0 0.0
        %704 = vmatpush1.msra.mxu0 0.0
        %705 = vmatprep.subr.mxu0 0.0
        %706 = vmatpush1.msra.mxu0 0.0
        %707 = vmatprep.subr.mxu0 0.0
        %708 = vmatpush1.msra.mxu0 0.0
        %709 = vmatprep.subr.mxu0 0.0
        %710 = vmatpush1.msra.mxu0 0.0
        %711 = vmatprep.subr.mxu0 0.0
        %712 = vmatpush1.msra.mxu0 0.0
        %713 = vmatprep.subr.mxu0 0.0
        %714 = vmatpush1.msra.mxu0 0.0
        %715 = vmatprep.subr.mxu0 0.0
        %716 = vmatpush1.msra.mxu0 0.0
        %717 = vmatprep.subr.mxu0 0.0
        %718 = vmatpush1.msra.mxu0 0.0
        %719 = vmatprep.subr.mxu0 0.0
        %720 = vmatpush1.msra.mxu0 0.0
        %721 = vmatprep.subr.mxu0 0.0
        %722 = vmatpush1.msra.mxu0 0.0
        %723 = vmatprep.subr.mxu0 0.0
        %724 = vmatpush1.msra.mxu0 0.0
        %725 = vmatprep.subr.mxu0 0.0
        %726 = vmatpush1.msra.mxu0 0.0
        %727 = vmatprep.subr.mxu0 0.0
        %728 = vmatpush1.msra.mxu0 0.0
        %729 = vmatprep.subr.mxu0 0.0
        %730 = vmatpush1.msra.mxu0 0.0
        %731 = vmatprep.subr.mxu0 0.0
        %732 = vmatpush1.msra.mxu0 0.0
        %733 = vmatprep.subr.mxu0 0.0
        %734 = vmatpush1.msra.mxu0 0.0
        %735 = vmatprep.subr.mxu0 0.0
        %736 = vmatpush1.msra.mxu0 0.0
        %737 = vmatprep.subr.mxu0 0.0
        %738 = vmatpush1.msra.mxu0 0.0
        %739 = vmatprep.mubr.f32.mxu0 0.0
        %740 = vmatmul.mubr.f32.gmra.mrb[0].mxu0 %v671
        %v741 = vpop.f32.mrb[0].mxu0
        %v742 = vadd.f32 0.0, %v741
        %v743 = vpop.f32.mrb[0].mxu0
        %744 = vmatprep.mubr.f32.mxu0 0.0
        %745 = vmatmul.mubr.f32.gmra.mrb[0].mxu0 %v673
        %v746 = vpop.f32.mrb[0].mxu0
        %v747 = vadd.f32 0.0, %v746
        %v748 = vpop.f32.mrb[0].mxu0
        %749 = vdwg.mxu0
        %v750 = vadd.f32 %v648, %v742
        %v751 = vadd.f32 %v653, %v747
        %v752 = vld [vmem:[%s2] sm:$0x1]
        %v754 = vlaneseq
        %v755 = vshrl.u32 %v754, 7
        %v756 = vsub.s32 0, %v755
        %v757 = vrot.slane %v752, %v756
        %v759 = vadd.f32 %v750, %v757
        %v760 = vadd.f32 %v751, %v757
        %v761 = vmax.f32 %v759, 0.0
        %v762 = vmax.f32 %v760, 0.0
        %763 = vst [vmem:[#allocation2] sm:$0xff] 0.0
        %764 = vst [vmem:[#allocation2 + $0x8] sm:$0xff] 0.0
        %765 = vst [vmem:[#allocation2 + $0x10] sm:$0x3] 0.0
        %766 = vst [vmem:[#allocation2 + $0x1] sm:$0xff] %v761
        %767 = vst [vmem:[#allocation2 + $0x9] sm:$0xff] %v762
        %v768 = vld [vmem:[#allocation2] sm:$0xff]
        %v769 = vld [vmem:[#allocation2 + $0x8] sm:$0xff]
        %v770 = vld [vmem:[#allocation2 + $0x10] sm:$0x3]
        %v771 = vld [vmem:[%s3] sm:$0xff]
        %v772 = vld [vmem:[%s3 + $0x8] sm:$0xff]
        %v773 = vld [vmem:[%s3 + $0x10] sm:$0xff]
        %v774 = vld [vmem:[%s3 + $0x18] sm:$0xff]
        %v775 = vld [vmem:[%s3 + $0x20] sm:$0xff]
        %v776 = vld [vmem:[%s3 + $0x28] sm:$0xff]
        %v777 = vld [vmem:[%s3 + $0x30] sm:$0xff]
        %v778 = vld [vmem:[%s3 + $0x38] sm:$0xff]
        %v779 = vld [vmem:[%s3 + $0x40] sm:$0xff]
        %v780 = vld [vmem:[%s3 + $0x48] sm:$0xff]
        %v781 = vld [vmem:[%s3 + $0x50] sm:$0xff]
        %v782 = vld [vmem:[%s3 + $0x58] sm:$0xff]
        %v783 = vld [vmem:[%s3 + $0x60] sm:$0xff]
        %v784 = vld [vmem:[%s3 + $0x68] sm:$0xff]
        %v785 = vld [vmem:[%s3 + $0x70] sm:$0xff]
        %v786 = vld [vmem:[%s3 + $0x78] sm:$0xff]
        %s787 = scalar_lea.vmem %s3, 128
        %v788 = vld [vmem:[%s787] sm:$0xff]
        %v789 = vld [vmem:[%s787 + $0x8] sm:$0xff]
        %v790 = vld [vmem:[%s787 + $0x10] sm:$0xff]
        %v791 = vld [vmem:[%s787 + $0x18] sm:$0xff]
        %v792 = vld [vmem:[%s787 + $0x20] sm:$0xff]
        %v793 = vld [vmem:[%s787 + $0x28] sm:$0xff]
        %v794 = vld [vmem:[%s787 + $0x30] sm:$0xff]
        %v795 = vld [vmem:[%s787 + $0x38] sm:$0xff]
        %v796 = vld [vmem:[%s787 + $0x40] sm:$0xff]
        %v797 = vld [vmem:[%s787 + $0x48] sm:$0xff]
        %v798 = vld [vmem:[%s787 + $0x50] sm:$0xff]
        %v799 = vld [vmem:[%s787 + $0x58] sm:$0xff]
        %v800 = vld [vmem:[%s787 + $0x60] sm:$0xff]
        %v801 = vld [vmem:[%s787 + $0x68] sm:$0xff]
        %v802 = vld [vmem:[%s787 + $0x70] sm:$0xff]
        %v803 = vld [vmem:[%s787 + $0x78] sm:$0xff]
        %v807 = vrot.slane %v768, 1
        %v808 = vrot.slane %v769, 1
        %v809 = vsel %vm491, %v807, %v808
        %v810 = vrot.slane %v770, 1
        %v811 = vsel %vm491, %v808, %v810
        %814 = vmatprep.subr.mxu0 0.0
        %815 = vmatpush1.msra.mxu0 %v788
        %816 = vmatprep.subr.mxu0 0.0
        %817 = vmatpush1.msra.mxu0 %v789
        %818 = vmatprep.subr.mxu0 0.0
        %819 = vmatpush1.msra.mxu0 %v790
        %820 = vmatprep.subr.mxu0 0.0
        %821 = vmatpush1.msra.mxu0 %v791
        %822 = vmatprep.subr.mxu0 0.0
        %823 = vmatpush1.msra.mxu0 %v792
        %824 = vmatprep.subr.mxu0 0.0
        %825 = vmatpush1.msra.mxu0 %v793
        %826 = vmatprep.subr.mxu0 0.0
        %827 = vmatpush1.msra.mxu0 %v794
        %828 = vmatprep.subr.mxu0 0.0
        %829 = vmatpush1.msra.mxu0 %v795
        %830 = vmatprep.subr.mxu0 0.0
        %831 = vmatpush1.msra.mxu0 %v796
        %832 = vmatprep.subr.mxu0 0.0
        %833 = vmatpush1.msra.mxu0 %v797
        %834 = vmatprep.subr.mxu0 0.0
        %835 = vmatpush1.msra.mxu0 %v798
        %836 = vmatprep.subr.mxu0 0.0
        %837 = vmatpush1.msra.mxu0 %v799
        %838 = vmatprep.subr.mxu0 0.0
        %839 = vmatpush1.msra.mxu0 %v800
        %840 = vmatprep.subr.mxu0 0.0
        %841 = vmatpush1.msra.mxu0 %v801
        %842 = vmatprep.subr.mxu0 0.0
        %843 = vmatpush1.msra.mxu0 %v802
        %844 = vmatprep.subr.mxu0 0.0
        %845 = vmatpush1.msra.mxu0 %v803
        %846 = vmatprep.subr.mxu0 0.0
        %847 = vmatpush1.msra.mxu0 0.0
        %848 = vmatprep.subr.mxu0 0.0
        %849 = vmatpush1.msra.mxu0 0.0
        %850 = vmatprep.subr.mxu0 0.0
        %851 = vmatpush1.msra.mxu0 0.0
        %852 = vmatprep.subr.mxu0 0.0
        %853 = vmatpush1.msra.mxu0 0.0
        %854 = vmatprep.subr.mxu0 0.0
        %855 = vmatpush1.msra.mxu0 0.0
        %856 = vmatprep.subr.mxu0 0.0
        %857 = vmatpush1.msra.mxu0 0.0
        %858 = vmatprep.subr.mxu0 0.0
        %859 = vmatpush1.msra.mxu0 0.0
        %860 = vmatprep.subr.mxu0 0.0
        %861 = vmatpush1.msra.mxu0 0.0
        %862 = vmatprep.subr.mxu0 0.0
        %863 = vmatpush1.msra.mxu0 0.0
        %864 = vmatprep.subr.mxu0 0.0
        %865 = vmatpush1.msra.mxu0 0.0
        %866 = vmatprep.subr.mxu0 0.0
        %867 = vmatpush1.msra.mxu0 0.0
        %868 = vmatprep.subr.mxu0 0.0
        %869 = vmatpush1.msra.mxu0 0.0
        %870 = vmatprep.subr.mxu0 0.0
        %871 = vmatpush1.msra.mxu0 0.0
        %872 = vmatprep.subr.mxu0 0.0
        %873 = vmatpush1.msra.mxu0 0.0
        %874 = vmatprep.subr.mxu0 0.0
        %875 = vmatpush1.msra.mxu0 0.0
        %876 = vmatprep.subr.mxu0 0.0
        %877 = vmatpush1.msra.mxu0 0.0
        %878 = vmatprep.mubr.f32.mxu0 0.0
        %879 = vmatmul.mubr.f32.gmra.mrb[0].mxu0 %v809
        %v880 = vpop.f32.mrb[0].mxu0
        %v881 = vadd.f32 0.0, %v880
        %v882 = vpop.f32.mrb[0].mxu0
        %883 = vmatprep.mubr.f32.mxu0 0.0
        %884 = vmatmul.mubr.f32.gmra.mrb[0].mxu0 %v811
        %v885 = vpop.f32.mrb[0].mxu0
        %v886 = vadd.f32 0.0, %v885
        %v887 = vpop.f32.mrb[0].mxu0
        %888 = vdwg.mxu0
        %889 = vmatprep.subr.mxu0 0.0
        %890 = vmatpush1.msra.mxu0 %v771
        %891 = vmatprep.subr.mxu0 0.0
        %892 = vmatpush1.msra.mxu0 %v772
        %893 = vmatprep.subr.mxu0 0.0
        %894 = vmatpush1.msra.mxu0 %v773
        %895 = vmatprep.subr.mxu0 0.0
        %896 = vmatpush1.msra.mxu0 %v774
        %897 = vmatprep.subr.mxu0 0.0
        %898 = vmatpush1.msra.mxu0 %v775
        %899 = vmatprep.subr.mxu0 0.0
        %900 = vmatpush1.msra.mxu0 %v776
        %901 = vmatprep.subr.mxu0 0.0
        %902 = vmatpush1.msra.mxu0 %v777
        %903 = vmatprep.subr.mxu0 0.0
        %904 = vmatpush1.msra.mxu0 %v778
        %905 = vmatprep.subr.mxu0 0.0
        %906 = vmatpush1.msra.mxu0 %v779
        %907 = vmatprep.subr.mxu0 0.0
        %908 = vmatpush1.msra.mxu0 %v780
        %909 = vmatprep.subr.mxu0 0.0
        %910 = vmatpush1.msra.mxu0 %v781
        %911 = vmatprep.subr.mxu0 0.0
        %912 = vmatpush1.msra.mxu0 %v782
        %913 = vmatprep.subr.mxu0 0.0
        %914 = vmatpush1.msra.mxu0 %v783
        %915 = vmatprep.subr.mxu0 0.0
        %916 = vmatpush1.msra.mxu0 %v784
        %917 = vmatprep.subr.mxu0 0.0
        %918 = vmatpush1.msra.mxu0 %v785
        %919 = vmatprep.subr.mxu0 0.0
        %920 = vmatpush1.msra.mxu0 %v786
        %921 = vmatprep.subr.mxu0 0.0
        %922 = vmatpush1.msra.mxu0 0.0
        %923 = vmatprep.subr.mxu0 0.0
        %924 = vmatpush1.msra.mxu0 0.0
        %925 = vmatprep.subr.mxu0 0.0
        %926 = vmatpush1.msra.mxu0 0.0
        %927 = vmatprep.subr.mxu0 0.0
        %928 = vmatpush1.msra.mxu0 0.0
        %929 = vmatprep.subr.mxu0 0.0
        %930 = vmatpush1.msra.mxu0 0.0
        %931 = vmatprep.subr.mxu0 0.0
        %932 = vmatpush1.msra.mxu0 0.0
        %933 = vmatprep.subr.mxu0 0.0
        %934 = vmatpush1.msra.mxu0 0.0
        %935 = vmatprep.subr.mxu0 0.0
        %936 = vmatpush1.msra.mxu0 0.0
        %937 = vmatprep.subr.mxu0 0.0
        %938 = vmatpush1.msra.mxu0 0.0
        %939 = vmatprep.subr.mxu0 0.0
        %940 = vmatpush1.msra.mxu0 0.0
        %941 = vmatprep.subr.mxu0 0.0
        %942 = vmatpush1.msra.mxu0 0.0
        %943 = vmatprep.subr.mxu0 0.0
        %944 = vmatpush1.msra.mxu0 0.0
        %945 = vmatprep.subr.mxu0 0.0
        %946 = vmatpush1.msra.mxu0 0.0
        %947 = vmatprep.subr.mxu0 0.0
        %948 = vmatpush1.msra.mxu0 0.0
        %949 = vmatprep.subr.mxu0 0.0
        %950 = vmatpush1.msra.mxu0 0.0
        %951 = vmatprep.subr.mxu0 0.0
        %952 = vmatpush1.msra.mxu0 0.0
        %953 = vmatprep.mubr.f32.mxu0 0.0
        %954 = vmatmul.mubr.f32.gmra.mrb[0].mxu0 %v768
        %v955 = vpop.f32.mrb[0].mxu0
        %v956 = vadd.f32 %v881, %v955
        %v957 = vpop.f32.mrb[0].mxu0
        %958 = vmatprep.mubr.f32.mxu0 0.0
        %959 = vmatmul.mubr.f32.gmra.mrb[0].mxu0 %v769
        %v960 = vpop.f32.mrb[0].mxu0
        %v961 = vadd.f32 %v886, %v960
        %v962 = vpop.f32.mrb[0].mxu0
        %963 = vdwg.mxu0
        %s964 = scalar_lea.vmem %s3, 256
        %v965 = vld [vmem:[%s964] sm:$0xff]
        %v966 = vld [vmem:[%s964 + $0x8] sm:$0xff]
        %v967 = vld [vmem:[%s964 + $0x10] sm:$0xff]
        %v968 = vld [vmem:[%s964 + $0x18] sm:$0xff]
        %v969 = vld [vmem:[%s964 + $0x20] sm:$0xff]
        %v970 = vld [vmem:[%s964 + $0x28] sm:$0xff]
        %v971 = vld [vmem:[%s964 + $0x30] sm:$0xff]
        %v972 = vld [vmem:[%s964 + $0x38] sm:$0xff]
        %v973 = vld [vmem:[%s964 + $0x40] sm:$0xff]
        %v974 = vld [vmem:[%s964 + $0x48] sm:$0xff]
        %v975 = vld [vmem:[%s964 + $0x50] sm:$0xff]
        %v976 = vld [vmem:[%s964 + $0x58] sm:$0xff]
        %v977 = vld [vmem:[%s964 + $0x60] sm:$0xff]
        %v978 = vld [vmem:[%s964 + $0x68] sm:$0xff]
        %v979 = vld [vmem:[%s964 + $0x70] sm:$0xff]
        %v980 = vld [vmem:[%s964 + $0x78] sm:$0xff]
        %v981 = vrot.slane %v768, 2
        %v982 = vrot.slane %v769, 2
        %v983 = vsel %vm665, %v981, %v982
        %v984 = vrot.slane %v770, 2
        %v985 = vsel %vm665, %v982, %v984
        %988 = vmatprep.subr.mxu0 0.0
        %989 = vmatpush1.msra.mxu0 %v965
        %990 = vmatprep.subr.mxu0 0.0
        %991 = vmatpush1.msra.mxu0 %v966
        %992 = vmatprep.subr.mxu0 0.0
        %993 = vmatpush1.msra.mxu0 %v967
        %994 = vmatprep.subr.mxu0 0.0
        %995 = vmatpush1.msra.mxu0 %v968
        %996 = vmatprep.subr.mxu0 0.0
        %997 = vmatpush1.msra.mxu0 %v969
        %998 = vmatprep.subr.mxu0 0.0
        %999 = vmatpush1.msra.mxu0 %v970
        %1000 = vmatprep.subr.mxu0 0.0
        %1001 = vmatpush1.msra.mxu0 %v971
        %1002 = vmatprep.subr.mxu0 0.0
        %1003 = vmatpush1.msra.mxu0 %v972
        %1004 = vmatprep.subr.mxu0 0.0
        %1005 = vmatpush1.msra.mxu0 %v973
        %1006 = vmatprep.subr.mxu0 0.0
        %1007 = vmatpush1.msra.mxu0 %v974
        %1008 = vmatprep.subr.mxu0 0.0
        %1009 = vmatpush1.msra.mxu0 %v975
        %1010 = vmatprep.subr.mxu0 0.0
        %1011 = vmatpush1.msra.mxu0 %v976
        %1012 = vmatprep.subr.mxu0 0.0
        %1013 = vmatpush1.msra.mxu0 %v977
        %1014 = vmatprep.subr.mxu0 0.0
        %1015 = vmatpush1.msra.mxu0 %v978
        %1016 = vmatprep.subr.mxu0 0.0
        %1017 = vmatpush1.msra.mxu0 %v979
        %1018 = vmatprep.subr.mxu0 0.0
        %1019 = vmatpush1.msra.mxu0 %v980
        %1020 = vmatprep.subr.mxu0 0.0
        %1021 = vmatpush1.msra.mxu0 0.0
        %1022 = vmatprep.subr.mxu0 0.0
        %1023 = vmatpush1.msra.mxu0 0.0
        %1024 = vmatprep.subr.mxu0 0.0
        %1025 = vmatpush1.msra.mxu0 0.0
        %1026 = vmatprep.subr.mxu0 0.0
        %1027 = vmatpush1.msra.mxu0 0.0
        %1028 = vmatprep.subr.mxu0 0.0
        %1029 = vmatpush1.msra.mxu0 0.0
        %1030 = vmatprep.subr.mxu0 0.0
        %1031 = vmatpush1.msra.mxu0 0.0
        %1032 = vmatprep.subr.mxu0 0.0
        %1033 = vmatpush1.msra.mxu0 0.0
        %1034 = vmatprep.subr.mxu0 0.0
        %1035 = vmatpush1.msra.mxu0 0.0
        %1036 = vmatprep.subr.mxu0 0.0
        %1037 = vmatpush1.msra.mxu0 0.0
        %1038 = vmatprep.subr.mxu0 0.0
        %1039 = vmatpush1.msra.mxu0 0.0
        %1040 = vmatprep.subr.mxu0 0.0
        %1041 = vmatpush1.msra.mxu0 0.0
        %1042 = vmatprep.subr.mxu0 0.0
        %1043 = vmatpush1.msra.mxu0 0.0
        %1044 = vmatprep.subr.mxu0 0.0
        %1045 = vmatpush1.msra.mxu0 0.0
        %1046 = vmatprep.subr.mxu0 0.0
        %1047 = vmatpush1.msra.mxu0 0.0
        %1048 = vmatprep.subr.mxu0 0.0
        %1049 = vmatpush1.msra.mxu0 0.0
        %1050 = vmatprep.subr.mxu0 0.0
        %1051 = vmatpush1.msra.mxu0 0.0
        %1052 = vmatprep.mubr.f32.mxu0 0.0
        %1053 = vmatmul.mubr.f32.gmra.mrb[0].mxu0 %v983
        %v1054 = vpop.f32.mrb[0].mxu0
        %v1055 = vadd.f32 0.0, %v1054
        %v1056 = vpop.f32.mrb[0].mxu0
        %1057 = vmatprep.mubr.f32.mxu0 0.0
        %1058 = vmatmul.mubr.f32.gmra.mrb[0].mxu0 %v985
        %v1059 = vpop.f32.mrb[0].mxu0
        %v1060 = vadd.f32 0.0, %v1059
        %v1061 = vpop.f32.mrb[0].mxu0
        %1062 = vdwg.mxu0
        %v1063 = vadd.f32 %v956, %v1055
        %v1064 = vadd.f32 %v961, %v1060
        %v1065 = vld [vmem:[%s4] sm:$0x1]
        %v1067 = vlaneseq
        %v1068 = vshrl.u32 %v1067, 7
        %v1069 = vsub.s32 0, %v1068
        %v1070 = vrot.slane %v1065, %v1069
        %v1072 = vadd.f32 %v1063, %v1070
        %v1073 = vadd.f32 %v1064, %v1070
        %v1076 = vsub.f32 %v1072, %v494
        %v1077 = vsub.f32 %v1073, %v496
        %1078 = vst.msk [vmem:[#allocation3] sm:$0xff] %vm497, 0.0
        %1079 = vst.msk [vmem:[#allocation3 + $0x8] sm:$0xff] %vm497, 0.0
        %vm1080 = vcmask 517120
        %1081 = vst.msk [vmem:[#allocation3 + $0x10] sm:$0x3] %vm1080, 0.0
        %1082 = vst.msk [vmem:[#allocation3 + $0x1] sm:$0xff] %vm497, %v1076
        %1083 = vst.msk [vmem:[#allocation3 + $0x9] sm:$0xff] %vm497, %v1077
        %v1084 = vld [vmem:[#allocation3] sm:$0xff]
        %v1085 = vld [vmem:[#allocation3 + $0x8] sm:$0xff]
        %v1086 = vld [vmem:[#allocation3 + $0x10] sm:$0x3]
        %v1087 = vld [vmem:[%s5] sm:$0xff]
        %v1088 = vld [vmem:[%s5 + $0x8] sm:$0xff]
        %v1089 = vld [vmem:[%s5 + $0x10] sm:$0xff]
        %v1090 = vld [vmem:[%s5 + $0x18] sm:$0xff]
        %v1091 = vld [vmem:[%s5 + $0x20] sm:$0xff]
        %v1092 = vld [vmem:[%s5 + $0x28] sm:$0xff]
        %v1093 = vld [vmem:[%s5 + $0x30] sm:$0xff]
        %v1094 = vld [vmem:[%s5 + $0x38] sm:$0xff]
        %v1095 = vld [vmem:[%s5 + $0x40] sm:$0xff]
        %v1096 = vld [vmem:[%s5 + $0x48] sm:$0xff]
        %v1097 = vld [vmem:[%s5 + $0x50] sm:$0xff]
        %v1098 = vld [vmem:[%s5 + $0x58] sm:$0xff]
        %v1099 = vld [vmem:[%s5 + $0x60] sm:$0xff]
        %v1100 = vld [vmem:[%s5 + $0x68] sm:$0xff]
        %v1101 = vld [vmem:[%s5 + $0x70] sm:$0xff]
        %v1102 = vld [vmem:[%s5 + $0x78] sm:$0xff]
        %s1103 = scalar_lea.vmem %s5, 128
        %v1104 = vld [vmem:[%s1103] sm:$0xff]
        %v1105 = vld [vmem:[%s1103 + $0x8] sm:$0xff]
        %v1106 = vld [vmem:[%s1103 + $0x10] sm:$0xff]
        %v1107 = vld [vmem:[%s1103 + $0x18] sm:$0xff]
        %v1108 = vld [vmem:[%s1103 + $0x20] sm:$0xff]
        %v1109 = vld [vmem:[%s1103 + $0x28] sm:$0xff]
        %v1110 = vld [vmem:[%s1103 + $0x30] sm:$0xff]
        %v1111 = vld [vmem:[%s1103 + $0x38] sm:$0xff]
        %v1112 = vld [vmem:[%s1103 + $0x40] sm:$0xff]
        %v1113 = vld [vmem:[%s1103 + $0x48] sm:$0xff]
        %v1114 = vld [vmem:[%s1103 + $0x50] sm:$0xff]
        %v1115 = vld [vmem:[%s1103 + $0x58] sm:$0xff]
        %v1116 = vld [vmem:[%s1103 + $0x60] sm:$0xff]
        %v1117 = vld [vmem:[%s1103 + $0x68] sm:$0xff]
        %v1118 = vld [vmem:[%s1103 + $0x70] sm:$0xff]
        %v1119 = vld [vmem:[%s1103 + $0x78] sm:$0xff]
        %v1123 = vrot.slane %v1084, 1
        %v1124 = vrot.slane %v1085, 1
        %v1125 = vsel %vm491, %v1123, %v1124
        %v1126 = vrot.slane %v1086, 1
        %v1127 = vsel %vm491, %v1124, %v1126
        %v1128 = vsel %vm497, %v1125, 0
        %v1130 = vsel %vm497, %v1127, 0
        %1132 = vmatprep.subr.mxu0 %v1105
        %1133 = vmatpush1.msra.mxu0 %v1104
        %1134 = vmatprep.subr.mxu0 %v1107
        %1135 = vmatpush1.msra.mxu0 %v1106
        %1136 = vmatprep.subr.mxu0 %v1109
        %1137 = vmatpush1.msra.mxu0 %v1108
        %1138 = vmatprep.subr.mxu0 %v1111
        %1139 = vmatpush1.msra.mxu0 %v1110
        %1140 = vmatprep.subr.mxu0 %v1113
        %1141 = vmatpush1.msra.mxu0 %v1112
        %1142 = vmatprep.subr.mxu0 %v1115
        %1143 = vmatpush1.msra.mxu0 %v1114
        %1144 = vmatprep.subr.mxu0 %v1117
        %1145 = vmatpush1.msra.mxu0 %v1116
        %1146 = vmatprep.subr.mxu0 %v1119
        %1147 = vmatpush1.msra.mxu0 %v1118
        %1148 = vmatprep.subr.mxu0 0.0
        %1149 = vmatpush1.msra.mxu0 0.0
        %1150 = vmatprep.subr.mxu0 0.0
        %1151 = vmatpush1.msra.mxu0 0.0
        %1152 = vmatprep.subr.mxu0 0.0
        %1153 = vmatpush1.msra.mxu0 0.0
        %1154 = vmatprep.subr.mxu0 0.0
        %1155 = vmatpush1.msra.mxu0 0.0
        %1156 = vmatprep.subr.mxu0 0.0
        %1157 = vmatpush1.msra.mxu0 0.0
        %1158 = vmatprep.subr.mxu0 0.0
        %1159 = vmatpush1.msra.mxu0 0.0
        %1160 = vmatprep.subr.mxu0 0.0
        %1161 = vmatpush1.msra.mxu0 0.0
        %1162 = vmatprep.subr.mxu0 0.0
        %1163 = vmatpush1.msra.mxu0 0.0
        %1164 = vmatprep.subr.mxu0 0.0
        %1165 = vmatpush1.msra.mxu0 0.0
        %1166 = vmatprep.subr.mxu0 0.0
        %1167 = vmatpush1.msra.mxu0 0.0
        %1168 = vmatprep.subr.mxu0 0.0
        %1169 = vmatpush1.msra.mxu0 0.0
        %1170 = vmatprep.subr.mxu0 0.0
        %1171 = vmatpush1.msra.mxu0 0.0
        %1172 = vmatprep.subr.mxu0 0.0
        %1173 = vmatpush1.msra.mxu0 0.0
        %1174 = vmatprep.subr.mxu0 0.0
        %1175 = vmatpush1.msra.mxu0 0.0
        %1176 = vmatprep.subr.mxu0 0.0
        %1177 = vmatpush1.msra.mxu0 0.0
        %1178 = vmatprep.subr.mxu0 0.0
        %1179 = vmatpush1.msra.mxu0 0.0
        %1180 = vmatprep.subr.mxu0 0.0
        %1181 = vmatpush1.msra.mxu0 0.0
        %1182 = vmatprep.subr.mxu0 0.0
        %1183 = vmatpush1.msra.mxu0 0.0
        %1184 = vmatprep.subr.mxu0 0.0
        %1185 = vmatpush1.msra.mxu0 0.0
        %1186 = vmatprep.subr.mxu0 0.0
        %1187 = vmatpush1.msra.mxu0 0.0
        %1188 = vmatprep.subr.mxu0 0.0
        %1189 = vmatpush1.msra.mxu0 0.0
        %1190 = vmatprep.subr.mxu0 0.0
        %1191 = vmatpush1.msra.mxu0 0.0
        %1192 = vmatprep.subr.mxu0 0.0
        %1193 = vmatpush1.msra.mxu0 0.0
        %1194 = vmatprep.subr.mxu0 0.0
        %1195 = vmatpush1.msra.mxu0 0.0
        %1196 = vmatprep.mubr.f32.mxu0 0.0
        %1197 = vmatmul.mubr.f32.gmra.mrb[0].mxu0 %v1128
        %v1198 = vpop.f32.mrb[0].mxu0
        %v1199 = vadd.f32 0.0, %v1198
        %v1200 = vpop.f32.mrb[0].mxu0
        %v1201 = vadd.f32 0.0, %v1200
        %1202 = vmatprep.mubr.f32.mxu0 0.0
        %1203 = vmatmul.mubr.f32.gmra.mrb[0].mxu0 %v1130
        %v1204 = vpop.f32.mrb[0].mxu0
        %v1205 = vadd.f32 0.0, %v1204
        %v1206 = vpop.f32.mrb[0].mxu0
        %v1207 = vadd.f32 0.0, %v1206
        %1208 = vdwg.mxu0
        %v1209 = vsel %vm497, %v1084, 0
        %v1211 = vsel %vm497, %v1085, 0
        %1213 = vmatprep.subr.mxu0 %v1088
        %1214 = vmatpush1.msra.mxu0 %v1087
        %1215 = vmatprep.subr.mxu0 %v1090
        %1216 = vmatpush1.msra.mxu0 %v1089
        %1217 = vmatprep.subr.mxu0 %v1092
        %1218 = vmatpush1.msra.mxu0 %v1091
        %1219 = vmatprep.subr.mxu0 %v1094
        %1220 = vmatpush1.msra.mxu0 %v1093
        %1221 = vmatprep.subr.mxu0 %v1096
        %1222 = vmatpush1.msra.mxu0 %v1095
        %1223 = vmatprep.subr.mxu0 %v1098
        %1224 = vmatpush1.msra.mxu0 %v1097
        %1225 = vmatprep.subr.mxu0 %v1100
        %1226 = vmatpush1.msra.mxu0 %v1099
        %1227 = vmatprep.subr.mxu0 %v1102
        %1228 = vmatpush1.msra.mxu0 %v1101
        %1229 = vmatprep.subr.mxu0 0.0
        %1230 = vmatpush1.msra.mxu0 0.0
        %1231 = vmatprep.subr.mxu0 0.0
        %1232 = vmatpush1.msra.mxu0 0.0
        %1233 = vmatprep.subr.mxu0 0.0
        %1234 = vmatpush1.msra.mxu0 0.0
        %1235 = vmatprep.subr.mxu0 0.0
        %1236 = vmatpush1.msra.mxu0 0.0
        %1237 = vmatprep.subr.mxu0 0.0
        %1238 = vmatpush1.msra.mxu0 0.0
        %1239 = vmatprep.subr.mxu0 0.0
        %1240 = vmatpush1.msra.mxu0 0.0
        %1241 = vmatprep.subr.mxu0 0.0
        %1242 = vmatpush1.msra.mxu0 0.0
        %1243 = vmatprep.subr.mxu0 0.0
        %1244 = vmatpush1.msra.mxu0 0.0
        %1245 = vmatprep.subr.mxu0 0.0
        %1246 = vmatpush1.msra.mxu0 0.0
        %1247 = vmatprep.subr.mxu0 0.0
        %1248 = vmatpush1.msra.mxu0 0.0
        %1249 = vmatprep.subr.mxu0 0.0
        %1250 = vmatpush1.msra.mxu0 0.0
        %1251 = vmatprep.subr.mxu0 0.0
        %1252 = vmatpush1.msra.mxu0 0.0
        %1253 = vmatprep.subr.mxu0 0.0
        %1254 = vmatpush1.msra.mxu0 0.0
        %1255 = vmatprep.subr.mxu0 0.0
        %1256 = vmatpush1.msra.mxu0 0.0
        %1257 = vmatprep.subr.mxu0 0.0
        %1258 = vmatpush1.msra.mxu0 0.0
        %1259 = vmatprep.subr.mxu0 0.0
        %1260 = vmatpush1.msra.mxu0 0.0
        %1261 = vmatprep.subr.mxu0 0.0
        %1262 = vmatpush1.msra.mxu0 0.0
        %1263 = vmatprep.subr.mxu0 0.0
        %1264 = vmatpush1.msra.mxu0 0.0
        %1265 = vmatprep.subr.mxu0 0.0
        %1266 = vmatpush1.msra.mxu0 0.0
        %1267 = vmatprep.subr.mxu0 0.0
        %1268 = vmatpush1.msra.mxu0 0.0
        %1269 = vmatprep.subr.mxu0 0.0
        %1270 = vmatpush1.msra.mxu0 0.0
        %1271 = vmatprep.subr.mxu0 0.0
        %1272 = vmatpush1.msra.mxu0 0.0
        %1273 = vmatprep.subr.mxu0 0.0
        %1274 = vmatpush1.msra.mxu0 0.0
        %1275 = vmatprep.subr.mxu0 0.0
        %1276 = vmatpush1.msra.mxu0 0.0
        %1277 = vmatprep.mubr.f32.mxu0 0.0
        %1278 = vmatmul.mubr.f32.gmra.mrb[0].mxu0 %v1209
        %v1279 = vpop.f32.mrb[0].mxu0
        %v1280 = vadd.f32 %v1199, %v1279
        %v1281 = vpop.f32.mrb[0].mxu0
        %v1282 = vadd.f32 %v1201, %v1281
        %1283 = vmatprep.mubr.f32.mxu0 0.0
        %1284 = vmatmul.mubr.f32.gmra.mrb[0].mxu0 %v1211
        %v1285 = vpop.f32.mrb[0].mxu0
        %v1286 = vadd.f32 %v1205, %v1285
        %v1287 = vpop.f32.mrb[0].mxu0
        %v1288 = vadd.f32 %v1207, %v1287
        %1289 = vdwg.mxu0
        %s1290 = scalar_lea.vmem %s5, 256
        %v1291 = vld [vmem:[%s1290] sm:$0xff]
        %v1292 = vld [vmem:[%s1290 + $0x8] sm:$0xff]
        %v1293 = vld [vmem:[%s1290 + $0x10] sm:$0xff]
        %v1294 = vld [vmem:[%s1290 + $0x18] sm:$0xff]
        %v1295 = vld [vmem:[%s1290 + $0x20] sm:$0xff]
        %v1296 = vld [vmem:[%s1290 + $0x28] sm:$0xff]
        %v1297 = vld [vmem:[%s1290 + $0x30] sm:$0xff]
        %v1298 = vld [vmem:[%s1290 + $0x38] sm:$0xff]
        %v1299 = vld [vmem:[%s1290 + $0x40] sm:$0xff]
        %v1300 = vld [vmem:[%s1290 + $0x48] sm:$0xff]
        %v1301 = vld [vmem:[%s1290 + $0x50] sm:$0xff]
        %v1302 = vld [vmem:[%s1290 + $0x58] sm:$0xff]
        %v1303 = vld [vmem:[%s1290 + $0x60] sm:$0xff]
        %v1304 = vld [vmem:[%s1290 + $0x68] sm:$0xff]
        %v1305 = vld [vmem:[%s1290 + $0x70] sm:$0xff]
        %v1306 = vld [vmem:[%s1290 + $0x78] sm:$0xff]
        %v1307 = vrot.slane %v1084, 2
        %v1308 = vrot.slane %v1085, 2
        %v1309 = vsel %vm665, %v1307, %v1308
        %v1310 = vrot.slane %v1086, 2
        %v1311 = vsel %vm665, %v1308, %v1310
        %v1312 = vsel %vm497, %v1309, 0
        %v1314 = vsel %vm497, %v1311, 0
        %1316 = vmatprep.subr.mxu0 %v1292
        %1317 = vmatpush1.msra.mxu0 %v1291
        %1318 = vmatprep.subr.mxu0 %v1294
        %1319 = vmatpush1.msra.mxu0 %v1293
        %1320 = vmatprep.subr.mxu0 %v1296
        %1321 = vmatpush1.msra.mxu0 %v1295
        %1322 = vmatprep.subr.mxu0 %v1298
        %1323 = vmatpush1.msra.mxu0 %v1297
        %1324 = vmatprep.subr.mxu0 %v1300
        %1325 = vmatpush1.msra.mxu0 %v1299
        %1326 = vmatprep.subr.mxu0 %v1302
        %1327 = vmatpush1.msra.mxu0 %v1301
        %1328 = vmatprep.subr.mxu0 %v1304
        %1329 = vmatpush1.msra.mxu0 %v1303
        %1330 = vmatprep.subr.mxu0 %v1306
        %1331 = vmatpush1.msra.mxu0 %v1305
        %1332 = vmatprep.subr.mxu0 0.0
        %1333 = vmatpush1.msra.mxu0 0.0
        %1334 = vmatprep.subr.mxu0 0.0
        %1335 = vmatpush1.msra.mxu0 0.0
        %1336 = vmatprep.subr.mxu0 0.0
        %1337 = vmatpush1.msra.mxu0 0.0
        %1338 = vmatprep.subr.mxu0 0.0
        %1339 = vmatpush1.msra.mxu0 0.0
        %1340 = vmatprep.subr.mxu0 0.0
        %1341 = vmatpush1.msra.mxu0 0.0
        %1342 = vmatprep.subr.mxu0 0.0
        %1343 = vmatpush1.msra.mxu0 0.0
        %1344 = vmatprep.subr.mxu0 0.0
        %1345 = vmatpush1.msra.mxu0 0.0
        %1346 = vmatprep.subr.mxu0 0.0
        %1347 = vmatpush1.msra.mxu0 0.0
        %1348 = vmatprep.subr.mxu0 0.0
        %1349 = vmatpush1.msra.mxu0 0.0
        %1350 = vmatprep.subr.mxu0 0.0
        %1351 = vmatpush1.msra.mxu0 0.0
        %1352 = vmatprep.subr.mxu0 0.0
        %1353 = vmatpush1.msra.mxu0 0.0
        %1354 = vmatprep.subr.mxu0 0.0
        %1355 = vmatpush1.msra.mxu0 0.0
        %1356 = vmatprep.subr.mxu0 0.0
        %1357 = vmatpush1.msra.mxu0 0.0
        %1358 = vmatprep.subr.mxu0 0.0
        %1359 = vmatpush1.msra.mxu0 0.0
        %1360 = vmatprep.subr.mxu0 0.0
        %1361 = vmatpush1.msra.mxu0 0.0
        %1362 = vmatprep.subr.mxu0 0.0
        %1363 = vmatpush1.msra.mxu0 0.0
        %1364 = vmatprep.subr.mxu0 0.0
        %1365 = vmatpush1.msra.mxu0 0.0
        %1366 = vmatprep.subr.mxu0 0.0
        %1367 = vmatpush1.msra.mxu0 0.0
        %1368 = vmatprep.subr.mxu0 0.0
        %1369 = vmatpush1.msra.mxu0 0.0
        %1370 = vmatprep.subr.mxu0 0.0
        %1371 = vmatpush1.msra.mxu0 0.0
        %1372 = vmatprep.subr.mxu0 0.0
        %1373 = vmatpush1.msra.mxu0 0.0
        %1374 = vmatprep.subr.mxu0 0.0
        %1375 = vmatpush1.msra.mxu0 0.0
        %1376 = vmatprep.subr.mxu0 0.0
        %1377 = vmatpush1.msra.mxu0 0.0
        %1378 = vmatprep.subr.mxu0 0.0
        %1379 = vmatpush1.msra.mxu0 0.0
        %1380 = vmatprep.mubr.f32.mxu0 0.0
        %1381 = vmatmul.mubr.f32.gmra.mrb[0].mxu0 %v1312
        %v1382 = vpop.f32.mrb[0].mxu0
        %v1383 = vadd.f32 0.0, %v1382
        %v1384 = vpop.f32.mrb[0].mxu0
        %v1385 = vadd.f32 0.0, %v1384
        %1386 = vmatprep.mubr.f32.mxu0 0.0
        %1387 = vmatmul.mubr.f32.gmra.mrb[0].mxu0 %v1314
        %v1388 = vpop.f32.mrb[0].mxu0
        %v1389 = vadd.f32 0.0, %v1388
        %v1390 = vpop.f32.mrb[0].mxu0
        %v1391 = vadd.f32 0.0, %v1390
        %1392 = vdwg.mxu0
        %v1393 = vadd.f32 %v1280, %v1383
        %v1394 = vadd.f32 %v1282, %v1385
        %v1395 = vadd.f32 %v1286, %v1389
        %v1396 = vadd.f32 %v1288, %v1391
        %v1397 = vld [vmem:[%s6] sm:$0x3]
        %v1399 = vlaneseq
        %v1400 = vshrl.u32 %v1399, 7
        %v1401 = vsub.s32 0, %v1400
        %v1402 = vrot.slane %v1397, %v1401
        %v1403 = vlaneseq
        %v1404 = vshrl.u32 %v1403, 7
        %v1405 = vsub.s32 1, %v1404
        %v1406 = vrot.slane %v1397, %v1405
        %v1409 = vadd.f32 %v1393, %v1402
        %v1410 = vadd.f32 %v1394, %v1406
        %v1411 = vadd.f32 %v1395, %v1402
        %v1412 = vadd.f32 %v1396, %v1406
        %v1413 = vmax.f32 %v1409, 0.0
        %v1414 = vmax.f32 %v1410, 0.0
        %v1415 = vmax.f32 %v1411, 0.0
        %v1416 = vmax.f32 %v1412, 0.0
        %1417 = vst [vmem:[#allocation4] sm:$0xff] 0.0
        %1418 = vst [vmem:[#allocation4 + $0x8] sm:$0xff] 0.0
        %1419 = vst [vmem:[#allocation4 + $0x10] sm:$0xff] 0.0
        %1420 = vst [vmem:[#allocation4 + $0x18] sm:$0xff] 0.0
        %1421 = vst [vmem:[#allocation4 + $0x20] sm:$0x3] 0.0
        %1422 = vst [vmem:[#allocation4 + $0x28] sm:$0x3] 0.0
        %vm1427 = vcmask 1040384
        %v1428 = vrot.slane %v1413, 7
        %v1429 = vrot.slane %v1414, 7
        %v1430 = vrot.slane %v1415, 7
        %v1431 = vsel %vm1427, %v1428, %v1430
        %v1432 = vrot.slane %v1416, 7
        %v1433 = vsel %vm1427, %v1429, %v1432
        %1440 = vst [vmem:[#allocation4] sm:$0xfe] %v1428
        %1441 = vst [vmem:[#allocation4 + $0x8] sm:$0xfe] %v1429
        %1442 = vst [vmem:[#allocation4 + $0x10] sm:$0xff] %v1431
        %1443 = vst [vmem:[#allocation4 + $0x18] sm:$0xff] %v1433
        %1444 = vst [vmem:[#allocation4 + $0x20] sm:$0x1] %v1430
        %1445 = vst [vmem:[#allocation4 + $0x28] sm:$0x1] %v1432
        %v1446 = vld [vmem:[#allocation4] sm:$0xff]
        %v1447 = vld [vmem:[#allocation4 + $0x8] sm:$0xff]
        %v1448 = vld [vmem:[#allocation4 + $0x10] sm:$0xff]
        %v1449 = vld [vmem:[#allocation4 + $0x18] sm:$0xff]
        %v1450 = vld [vmem:[#allocation4 + $0x20] sm:$0x3]
        %v1451 = vld [vmem:[#allocation4 + $0x28] sm:$0x3]
        %v1452 = vld [vmem:[#allocation6] sm:$0xff]
        %v1453 = vld [vmem:[#allocation6 + $0x8] sm:$0xff]
        %v1454 = vld [vmem:[#allocation6 + $0x10] sm:$0xff]
        %v1455 = vld [vmem:[#allocation6 + $0x18] sm:$0xff]
        %v1456 = vld [vmem:[#allocation6 + $0x20] sm:$0xff]
        %v1457 = vld [vmem:[#allocation6 + $0x28] sm:$0xff]
        %v1458 = vld [vmem:[#allocation6 + $0x30] sm:$0xff]
        %v1459 = vld [vmem:[#allocation6 + $0x38] sm:$0xff]
        %v1460 = vld [vmem:[#allocation6 + $0x40] sm:$0xff]
        %v1461 = vld [vmem:[#allocation6 + $0x48] sm:$0xff]
        %v1462 = vld [vmem:[#allocation6 + $0x50] sm:$0xff]
        %v1463 = vld [vmem:[#allocation6 + $0x58] sm:$0xff]
        %v1464 = vld [vmem:[#allocation6 + $0x60] sm:$0xff]
        %v1465 = vld [vmem:[#allocation6 + $0x68] sm:$0xff]
        %v1466 = vld [vmem:[#allocation6 + $0x70] sm:$0xff]
        %v1467 = vld [vmem:[#allocation6 + $0x78] sm:$0xff]
        %v1468 = vld [vmem:[#allocation6 + $0x80] sm:$0xff]
        %v1469 = vld [vmem:[#allocation6 + $0x88] sm:$0xff]
        %v1470 = vld [vmem:[#allocation6 + $0x90] sm:$0xff]
        %v1471 = vld [vmem:[#allocation6 + $0x98] sm:$0xff]
        %v1472 = vld [vmem:[#allocation6 + $0xa0] sm:$0xff]
        %v1473 = vld [vmem:[#allocation6 + $0xa8] sm:$0xff]
        %v1474 = vld [vmem:[#allocation6 + $0xb0] sm:$0xff]
        %v1475 = vld [vmem:[#allocation6 + $0xb8] sm:$0xff]
        %v1476 = vld [vmem:[#allocation6 + $0xc0] sm:$0xff]
        %v1477 = vld [vmem:[#allocation6 + $0xc8] sm:$0xff]
        %v1478 = vld [vmem:[#allocation6 + $0xd0] sm:$0xff]
        %v1479 = vld [vmem:[#allocation6 + $0xd8] sm:$0xff]
        %v1480 = vld [vmem:[#allocation6 + $0xe0] sm:$0xff]
        %v1481 = vld [vmem:[#allocation6 + $0xe8] sm:$0xff]
        %v1482 = vld [vmem:[#allocation6 + $0xf0] sm:$0xff]
        %v1483 = vld [vmem:[#allocation6 + $0xf8] sm:$0xff]
        %v1484 = vld [vmem:[#allocation6 + $0x100] sm:$0xff]
        %v1485 = vld [vmem:[#allocation6 + $0x108] sm:$0xff]
        %v1486 = vld [vmem:[#allocation6 + $0x110] sm:$0xff]
        %v1487 = vld [vmem:[#allocation6 + $0x118] sm:$0xff]
        %v1488 = vld [vmem:[#allocation6 + $0x120] sm:$0xff]
        %v1489 = vld [vmem:[#allocation6 + $0x128] sm:$0xff]
        %v1490 = vld [vmem:[#allocation6 + $0x130] sm:$0xff]
        %v1491 = vld [vmem:[#allocation6 + $0x138] sm:$0xff]
        %v1492 = vld [vmem:[#allocation6 + $0x140] sm:$0xff]
        %v1493 = vld [vmem:[#allocation6 + $0x148] sm:$0xff]
        %v1494 = vld [vmem:[#allocation6 + $0x150] sm:$0xff]
        %v1495 = vld [vmem:[#allocation6 + $0x158] sm:$0xff]
        %v1496 = vld [vmem:[#allocation6 + $0x160] sm:$0xff]
        %v1497 = vld [vmem:[#allocation6 + $0x168] sm:$0xff]
        %v1498 = vld [vmem:[#allocation6 + $0x170] sm:$0xff]
        %v1499 = vld [vmem:[#allocation6 + $0x178] sm:$0xff]
        %v1500 = vld [vmem:[#allocation6 + $0x180] sm:$0xff]
        %v1501 = vld [vmem:[#allocation6 + $0x188] sm:$0xff]
        %v1502 = vld [vmem:[#allocation6 + $0x190] sm:$0xff]
        %v1503 = vld [vmem:[#allocation6 + $0x198] sm:$0xff]
        %v1504 = vld [vmem:[#allocation6 + $0x1a0] sm:$0xff]
        %v1505 = vld [vmem:[#allocation6 + $0x1a8] sm:$0xff]
        %v1506 = vld [vmem:[#allocation6 + $0x1b0] sm:$0xff]
        %v1507 = vld [vmem:[#allocation6 + $0x1b8] sm:$0xff]
        %v1508 = vld [vmem:[#allocation6 + $0x1c0] sm:$0xff]
        %v1509 = vld [vmem:[#allocation6 + $0x1c8] sm:$0xff]
        %v1510 = vld [vmem:[#allocation6 + $0x1d0] sm:$0xff]
        %v1511 = vld [vmem:[#allocation6 + $0x1d8] sm:$0xff]
        %v1512 = vld [vmem:[#allocation6 + $0x1e0] sm:$0xff]
        %v1513 = vld [vmem:[#allocation6 + $0x1e8] sm:$0xff]
        %v1514 = vld [vmem:[#allocation6 + $0x1f0] sm:$0xff]
        %v1515 = vld [vmem:[#allocation6 + $0x1f8] sm:$0xff]
        %s1516 = scalar_lea.vmem [#allocation6], 512
        %v1517 = vld [vmem:[%s1516] sm:$0xff]
        %v1518 = vld [vmem:[%s1516 + $0x8] sm:$0xff]
        %v1519 = vld [vmem:[%s1516 + $0x10] sm:$0xff]
        %v1520 = vld [vmem:[%s1516 + $0x18] sm:$0xff]
        %v1521 = vld [vmem:[%s1516 + $0x20] sm:$0xff]
        %v1522 = vld [vmem:[%s1516 + $0x28] sm:$0xff]
        %v1523 = vld [vmem:[%s1516 + $0x30] sm:$0xff]
        %v1524 = vld [vmem:[%s1516 + $0x38] sm:$0xff]
        %v1525 = vld [vmem:[%s1516 + $0x40] sm:$0xff]
        %v1526 = vld [vmem:[%s1516 + $0x48] sm:$0xff]
        %v1527 = vld [vmem:[%s1516 + $0x50] sm:$0xff]
        %v1528 = vld [vmem:[%s1516 + $0x58] sm:$0xff]
        %v1529 = vld [vmem:[%s1516 + $0x60] sm:$0xff]
        %v1530 = vld [vmem:[%s1516 + $0x68] sm:$0xff]
        %v1531 = vld [vmem:[%s1516 + $0x70] sm:$0xff]
        %v1532 = vld [vmem:[%s1516 + $0x78] sm:$0xff]
        %v1533 = vld [vmem:[%s1516 + $0x80] sm:$0xff]
        %v1534 = vld [vmem:[%s1516 + $0x88] sm:$0xff]
        %v1535 = vld [vmem:[%s1516 + $0x90] sm:$0xff]
        %v1536 = vld [vmem:[%s1516 + $0x98] sm:$0xff]
        %v1537 = vld [vmem:[%s1516 + $0xa0] sm:$0xff]
        %v1538 = vld [vmem:[%s1516 + $0xa8] sm:$0xff]
        %v1539 = vld [vmem:[%s1516 + $0xb0] sm:$0xff]
        %v1540 = vld [vmem:[%s1516 + $0xb8] sm:$0xff]
        %v1541 = vld [vmem:[%s1516 + $0xc0] sm:$0xff]
        %v1542 = vld [vmem:[%s1516 + $0xc8] sm:$0xff]
        %v1543 = vld [vmem:[%s1516 + $0xd0] sm:$0xff]
        %v1544 = vld [vmem:[%s1516 + $0xd8] sm:$0xff]
        %v1545 = vld [vmem:[%s1516 + $0xe0] sm:$0xff]
        %v1546 = vld [vmem:[%s1516 + $0xe8] sm:$0xff]
        %v1547 = vld [vmem:[%s1516 + $0xf0] sm:$0xff]
        %v1548 = vld [vmem:[%s1516 + $0xf8] sm:$0xff]
        %v1549 = vld [vmem:[%s1516 + $0x100] sm:$0xff]
        %v1550 = vld [vmem:[%s1516 + $0x108] sm:$0xff]
        %v1551 = vld [vmem:[%s1516 + $0x110] sm:$0xff]
        %v1552 = vld [vmem:[%s1516 + $0x118] sm:$0xff]
        %v1553 = vld [vmem:[%s1516 + $0x120] sm:$0xff]
        %v1554 = vld [vmem:[%s1516 + $0x128] sm:$0xff]
        %v1555 = vld [vmem:[%s1516 + $0x130] sm:$0xff]
        %v1556 = vld [vmem:[%s1516 + $0x138] sm:$0xff]
        %v1557 = vld [vmem:[%s1516 + $0x140] sm:$0xff]
        %v1558 = vld [vmem:[%s1516 + $0x148] sm:$0xff]
        %v1559 = vld [vmem:[%s1516 + $0x150] sm:$0xff]
        %v1560 = vld [vmem:[%s1516 + $0x158] sm:$0xff]
        %v1561 = vld [vmem:[%s1516 + $0x160] sm:$0xff]
        %v1562 = vld [vmem:[%s1516 + $0x168] sm:$0xff]
        %v1563 = vld [vmem:[%s1516 + $0x170] sm:$0xff]
        %v1564 = vld [vmem:[%s1516 + $0x178] sm:$0xff]
        %v1565 = vld [vmem:[%s1516 + $0x180] sm:$0xff]
        %v1566 = vld [vmem:[%s1516 + $0x188] sm:$0xff]
        %v1567 = vld [vmem:[%s1516 + $0x190] sm:$0xff]
        %v1568 = vld [vmem:[%s1516 + $0x198] sm:$0xff]
        %v1569 = vld [vmem:[%s1516 + $0x1a0] sm:$0xff]
        %v1570 = vld [vmem:[%s1516 + $0x1a8] sm:$0xff]
        %v1571 = vld [vmem:[%s1516 + $0x1b0] sm:$0xff]
        %v1572 = vld [vmem:[%s1516 + $0x1b8] sm:$0xff]
        %v1573 = vld [vmem:[%s1516 + $0x1c0] sm:$0xff]
        %v1574 = vld [vmem:[%s1516 + $0x1c8] sm:$0xff]
        %v1575 = vld [vmem:[%s1516 + $0x1d0] sm:$0xff]
        %v1576 = vld [vmem:[%s1516 + $0x1d8] sm:$0xff]
        %v1577 = vld [vmem:[%s1516 + $0x1e0] sm:$0xff]
        %v1578 = vld [vmem:[%s1516 + $0x1e8] sm:$0xff]
        %v1579 = vld [vmem:[%s1516 + $0x1f0] sm:$0xff]
        %v1580 = vld [vmem:[%s1516 + $0x1f8] sm:$0xff]
        %v1587 = vrot.slane %v1446, 1
        %v1588 = vrot.slane %v1448, 1
        %v1589 = vsel %vm491, %v1587, %v1588
        %v1590 = vrot.slane %v1447, 1
        %v1591 = vrot.slane %v1449, 1
        %v1592 = vsel %vm491, %v1590, %v1591
        %v1593 = vrot.slane %v1450, 1
        %v1594 = vsel %vm491, %v1588, %v1593
        %v1595 = vrot.slane %v1451, 1
        %v1596 = vsel %vm491, %v1591, %v1595
        %1601 = vmatprep.subr.mxu0 %v1518
        %1602 = vmatpush1.msra.mxu0 %v1517
        %1603 = vmatprep.subr.mxu0 %v1520
        %1604 = vmatpush1.msra.mxu0 %v1519
        %1605 = vmatprep.subr.mxu0 %v1522
        %1606 = vmatpush1.msra.mxu0 %v1521
        %1607 = vmatprep.subr.mxu0 %v1524
        %1608 = vmatpush1.msra.mxu0 %v1523
        %1609 = vmatprep.subr.mxu0 %v1526
        %1610 = vmatpush1.msra.mxu0 %v1525
        %1611 = vmatprep.subr.mxu0 %v1528
        %1612 = vmatpush1.msra.mxu0 %v1527
        %1613 = vmatprep.subr.mxu0 %v1530
        %1614 = vmatpush1.msra.mxu0 %v1529
        %1615 = vmatprep.subr.mxu0 %v1532
        %1616 = vmatpush1.msra.mxu0 %v1531
        %1617 = vmatprep.subr.mxu0 %v1534
        %1618 = vmatpush1.msra.mxu0 %v1533
        %1619 = vmatprep.subr.mxu0 %v1536
        %1620 = vmatpush1.msra.mxu0 %v1535
        %1621 = vmatprep.subr.mxu0 %v1538
        %1622 = vmatpush1.msra.mxu0 %v1537
        %1623 = vmatprep.subr.mxu0 %v1540
        %1624 = vmatpush1.msra.mxu0 %v1539
        %1625 = vmatprep.subr.mxu0 %v1542
        %1626 = vmatpush1.msra.mxu0 %v1541
        %1627 = vmatprep.subr.mxu0 %v1544
        %1628 = vmatpush1.msra.mxu0 %v1543
        %1629 = vmatprep.subr.mxu0 %v1546
        %1630 = vmatpush1.msra.mxu0 %v1545
        %1631 = vmatprep.subr.mxu0 %v1548
        %1632 = vmatpush1.msra.mxu0 %v1547
        %1633 = vmatprep.subr.mxu0 %v1550
        %1634 = vmatpush1.msra.mxu0 %v1549
        %1635 = vmatprep.subr.mxu0 %v1552
        %1636 = vmatpush1.msra.mxu0 %v1551
        %1637 = vmatprep.subr.mxu0 %v1554
        %1638 = vmatpush1.msra.mxu0 %v1553
        %1639 = vmatprep.subr.mxu0 %v1556
        %1640 = vmatpush1.msra.mxu0 %v1555
        %1641 = vmatprep.subr.mxu0 %v1558
        %1642 = vmatpush1.msra.mxu0 %v1557
        %1643 = vmatprep.subr.mxu0 %v1560
        %1644 = vmatpush1.msra.mxu0 %v1559
        %1645 = vmatprep.subr.mxu0 %v1562
        %1646 = vmatpush1.msra.mxu0 %v1561
        %1647 = vmatprep.subr.mxu0 %v1564
        %1648 = vmatpush1.msra.mxu0 %v1563
        %1649 = vmatprep.subr.mxu0 %v1566
        %1650 = vmatpush1.msra.mxu0 %v1565
        %1651 = vmatprep.subr.mxu0 %v1568
        %1652 = vmatpush1.msra.mxu0 %v1567
        %1653 = vmatprep.subr.mxu0 %v1570
        %1654 = vmatpush1.msra.mxu0 %v1569
        %1655 = vmatprep.subr.mxu0 %v1572
        %1656 = vmatpush1.msra.mxu0 %v1571
        %1657 = vmatprep.subr.mxu0 %v1574
        %1658 = vmatpush1.msra.mxu0 %v1573
        %1659 = vmatprep.subr.mxu0 %v1576
        %1660 = vmatpush1.msra.mxu0 %v1575
        %1661 = vmatprep.subr.mxu0 %v1578
        %1662 = vmatpush1.msra.mxu0 %v1577
        %1663 = vmatprep.subr.mxu0 %v1580
        %1664 = vmatpush1.msra.mxu0 %v1579
        %1665 = vmatprep.mubr.f32.mxu0 %v1592
        %1666 = vmatmul.mubr.f32.gmra.mrb[0].mxu0 %v1589
        %v1667 = vpop.f32.mrb[0].mxu0
        %v1668 = vadd.f32 0.0, %v1667
        %v1669 = vpop.f32.mrb[0].mxu0
        %v1670 = vadd.f32 0.0, %v1669
        %1671 = vmatprep.mubr.f32.mxu0 %v1596
        %1672 = vmatmul.mubr.f32.gmra.mrb[0].mxu0 %v1594
        %v1673 = vpop.f32.mrb[0].mxu0
        %v1674 = vadd.f32 0.0, %v1673
        %v1675 = vpop.f32.mrb[0].mxu0
        %v1676 = vadd.f32 0.0, %v1675
        %1677 = vdwg.mxu0
        %1678 = vmatprep.subr.mxu0 %v1453
        %1679 = vmatpush1.msra.mxu0 %v1452
        %1680 = vmatprep.subr.mxu0 %v1455
        %1681 = vmatpush1.msra.mxu0 %v1454
        %1682 = vmatprep.subr.mxu0 %v1457
        %1683 = vmatpush1.msra.mxu0 %v1456
        %1684 = vmatprep.subr.mxu0 %v1459
        %1685 = vmatpush1.msra.mxu0 %v1458
        %1686 = vmatprep.subr.mxu0 %v1461
        %1687 = vmatpush1.msra.mxu0 %v1460
        %1688 = vmatprep.subr.mxu0 %v1463
        %1689 = vmatpush1.msra.mxu0 %v1462
        %1690 = vmatprep.subr.mxu0 %v1465
        %1691 = vmatpush1.msra.mxu0 %v1464
        %1692 = vmatprep.subr.mxu0 %v1467
        %1693 = vmatpush1.msra.mxu0 %v1466
        %1694 = vmatprep.subr.mxu0 %v1469
        %1695 = vmatpush1.msra.mxu0 %v1468
        %1696 = vmatprep.subr.mxu0 %v1471
        %1697 = vmatpush1.msra.mxu0 %v1470
        %1698 = vmatprep.subr.mxu0 %v1473
        %1699 = vmatpush1.msra.mxu0 %v1472
        %1700 = vmatprep.subr.mxu0 %v1475
        %1701 = vmatpush1.msra.mxu0 %v1474
        %1702 = vmatprep.subr.mxu0 %v1477
        %1703 = vmatpush1.msra.mxu0 %v1476
        %1704 = vmatprep.subr.mxu0 %v1479
        %1705 = vmatpush1.msra.mxu0 %v1478
        %1706 = vmatprep.subr.mxu0 %v1481
        %1707 = vmatpush1.msra.mxu0 %v1480
        %1708 = vmatprep.subr.mxu0 %v1483
        %1709 = vmatpush1.msra.mxu0 %v1482
        %1710 = vmatprep.subr.mxu0 %v1485
        %1711 = vmatpush1.msra.mxu0 %v1484
        %1712 = vmatprep.subr.mxu0 %v1487
        %1713 = vmatpush1.msra.mxu0 %v1486
        %1714 = vmatprep.subr.mxu0 %v1489
        %1715 = vmatpush1.msra.mxu0 %v1488
        %1716 = vmatprep.subr.mxu0 %v1491
        %1717 = vmatpush1.msra.mxu0 %v1490
        %1718 = vmatprep.subr.mxu0 %v1493
        %1719 = vmatpush1.msra.mxu0 %v1492
        %1720 = vmatprep.subr.mxu0 %v1495
        %1721 = vmatpush1.msra.mxu0 %v1494
        %1722 = vmatprep.subr.mxu0 %v1497
        %1723 = vmatpush1.msra.mxu0 %v1496
        %1724 = vmatprep.subr.mxu0 %v1499
        %1725 = vmatpush1.msra.mxu0 %v1498
        %1726 = vmatprep.subr.mxu0 %v1501
        %1727 = vmatpush1.msra.mxu0 %v1500
        %1728 = vmatprep.subr.mxu0 %v1503
        %1729 = vmatpush1.msra.mxu0 %v1502
        %1730 = vmatprep.subr.mxu0 %v1505
        %1731 = vmatpush1.msra.mxu0 %v1504
        %1732 = vmatprep.subr.mxu0 %v1507
        %1733 = vmatpush1.msra.mxu0 %v1506
        %1734 = vmatprep.subr.mxu0 %v1509
        %1735 = vmatpush1.msra.mxu0 %v1508
        %1736 = vmatprep.subr.mxu0 %v1511
        %1737 = vmatpush1.msra.mxu0 %v1510
        %1738 = vmatprep.subr.mxu0 %v1513
        %1739 = vmatpush1.msra.mxu0 %v1512
        %1740 = vmatprep.subr.mxu0 %v1515
        %1741 = vmatpush1.msra.mxu0 %v1514
        %1742 = vmatprep.mubr.f32.mxu0 %v1447
        %1743 = vmatmul.mubr.f32.gmra.mrb[0].mxu0 %v1446
        %v1744 = vpop.f32.mrb[0].mxu0
        %v1745 = vadd.f32 %v1668, %v1744
        %v1746 = vpop.f32.mrb[0].mxu0
        %v1747 = vadd.f32 %v1670, %v1746
        %1748 = vmatprep.mubr.f32.mxu0 %v1449
        %1749 = vmatmul.mubr.f32.gmra.mrb[0].mxu0 %v1448
        %v1750 = vpop.f32.mrb[0].mxu0
        %v1751 = vadd.f32 %v1674, %v1750
        %v1752 = vpop.f32.mrb[0].mxu0
        %v1753 = vadd.f32 %v1676, %v1752
        %1754 = vdwg.mxu0
        %s1755 = scalar_lea.vmem [#allocation6], 1024
        %v1756 = vld [vmem:[%s1755] sm:$0xff]
        %v1757 = vld [vmem:[%s1755 + $0x8] sm:$0xff]
        %v1758 = vld [vmem:[%s1755 + $0x10] sm:$0xff]
        %v1759 = vld [vmem:[%s1755 + $0x18] sm:$0xff]
        %v1760 = vld [vmem:[%s1755 + $0x20] sm:$0xff]
        %v1761 = vld [vmem:[%s1755 + $0x28] sm:$0xff]
        %v1762 = vld [vmem:[%s1755 + $0x30] sm:$0xff]
        %v1763 = vld [vmem:[%s1755 + $0x38] sm:$0xff]
        %v1764 = vld [vmem:[%s1755 + $0x40] sm:$0xff]
        %v1765 = vld [vmem:[%s1755 + $0x48] sm:$0xff]
        %v1766 = vld [vmem:[%s1755 + $0x50] sm:$0xff]
        %v1767 = vld [vmem:[%s1755 + $0x58] sm:$0xff]
        %v1768 = vld [vmem:[%s1755 + $0x60] sm:$0xff]
        %v1769 = vld [vmem:[%s1755 + $0x68] sm:$0xff]
        %v1770 = vld [vmem:[%s1755 + $0x70] sm:$0xff]
        %v1771 = vld [vmem:[%s1755 + $0x78] sm:$0xff]
        %v1772 = vld [vmem:[%s1755 + $0x80] sm:$0xff]
        %v1773 = vld [vmem:[%s1755 + $0x88] sm:$0xff]
        %v1774 = vld [vmem:[%s1755 + $0x90] sm:$0xff]
        %v1775 = vld [vmem:[%s1755 + $0x98] sm:$0xff]
        %v1776 = vld [vmem:[%s1755 + $0xa0] sm:$0xff]
        %v1777 = vld [vmem:[%s1755 + $0xa8] sm:$0xff]
        %v1778 = vld [vmem:[%s1755 + $0xb0] sm:$0xff]
        %v1779 = vld [vmem:[%s1755 + $0xb8] sm:$0xff]
        %v1780 = vld [vmem:[%s1755 + $0xc0] sm:$0xff]
        %v1781 = vld [vmem:[%s1755 + $0xc8] sm:$0xff]
        %v1782 = vld [vmem:[%s1755 + $0xd0] sm:$0xff]
        %v1783 = vld [vmem:[%s1755 + $0xd8] sm:$0xff]
        %v1784 = vld [vmem:[%s1755 + $0xe0] sm:$0xff]
        %v1785 = vld [vmem:[%s1755 + $0xe8] sm:$0xff]
        %v1786 = vld [vmem:[%s1755 + $0xf0] sm:$0xff]
        %v1787 = vld [vmem:[%s1755 + $0xf8] sm:$0xff]
        %v1788 = vld [vmem:[%s1755 + $0x100] sm:$0xff]
        %v1789 = vld [vmem:[%s1755 + $0x108] sm:$0xff]
        %v1790 = vld [vmem:[%s1755 + $0x110] sm:$0xff]
        %v1791 = vld [vmem:[%s1755 + $0x118] sm:$0xff]
        %v1792 = vld [vmem:[%s1755 + $0x120] sm:$0xff]
        %v1793 = vld [vmem:[%s1755 + $0x128] sm:$0xff]
        %v1794 = vld [vmem:[%s1755 + $0x130] sm:$0xff]
        %v1795 = vld [vmem:[%s1755 + $0x138] sm:$0xff]
        %v1796 = vld [vmem:[%s1755 + $0x140] sm:$0xff]
        %v1797 = vld [vmem:[%s1755 + $0x148] sm:$0xff]
        %v1798 = vld [vmem:[%s1755 + $0x150] sm:$0xff]
        %v1799 = vld [vmem:[%s1755 + $0x158] sm:$0xff]
        %v1800 = vld [vmem:[%s1755 + $0x160] sm:$0xff]
        %v1801 = vld [vmem:[%s1755 + $0x168] sm:$0xff]
        %v1802 = vld [vmem:[%s1755 + $0x170] sm:$0xff]
        %v1803 = vld [vmem:[%s1755 + $0x178] sm:$0xff]
        %v1804 = vld [vmem:[%s1755 + $0x180] sm:$0xff]
        %v1805 = vld [vmem:[%s1755 + $0x188] sm:$0xff]
        %v1806 = vld [vmem:[%s1755 + $0x190] sm:$0xff]
        %v1807 = vld [vmem:[%s1755 + $0x198] sm:$0xff]
        %v1808 = vld [vmem:[%s1755 + $0x1a0] sm:$0xff]
        %v1809 = vld [vmem:[%s1755 + $0x1a8] sm:$0xff]
        %v1810 = vld [vmem:[%s1755 + $0x1b0] sm:$0xff]
        %v1811 = vld [vmem:[%s1755 + $0x1b8] sm:$0xff]
        %v1812 = vld [vmem:[%s1755 + $0x1c0] sm:$0xff]
        %v1813 = vld [vmem:[%s1755 + $0x1c8] sm:$0xff]
        %v1814 = vld [vmem:[%s1755 + $0x1d0] sm:$0xff]
        %v1815 = vld [vmem:[%s1755 + $0x1d8] sm:$0xff]
        %v1816 = vld [vmem:[%s1755 + $0x1e0] sm:$0xff]
        %v1817 = vld [vmem:[%s1755 + $0x1e8] sm:$0xff]
        %v1818 = vld [vmem:[%s1755 + $0x1f0] sm:$0xff]
        %v1819 = vld [vmem:[%s1755 + $0x1f8] sm:$0xff]
        %v1820 = vrot.slane %v1446, 2
        %v1821 = vrot.slane %v1448, 2
        %v1822 = vsel %vm665, %v1820, %v1821
        %v1823 = vrot.slane %v1447, 2
        %v1824 = vrot.slane %v1449, 2
        %v1825 = vsel %vm665, %v1823, %v1824
        %v1826 = vrot.slane %v1450, 2
        %v1827 = vsel %vm665, %v1821, %v1826
        %v1828 = vrot.slane %v1451, 2
        %v1829 = vsel %vm665, %v1824, %v1828
        %1834 = vmatprep.subr.mxu0 %v1757
        %1835 = vmatpush1.msra.mxu0 %v1756
        %1836 = vmatprep.subr.mxu0 %v1759
        %1837 = vmatpush1.msra.mxu0 %v1758
        %1838 = vmatprep.subr.mxu0 %v1761
        %1839 = vmatpush1.msra.mxu0 %v1760
        %1840 = vmatprep.subr.mxu0 %v1763
        %1841 = vmatpush1.msra.mxu0 %v1762
        %1842 = vmatprep.subr.mxu0 %v1765
        %1843 = vmatpush1.msra.mxu0 %v1764
        %1844 = vmatprep.subr.mxu0 %v1767
        %1845 = vmatpush1.msra.mxu0 %v1766
        %1846 = vmatprep.subr.mxu0 %v1769
        %1847 = vmatpush1.msra.mxu0 %v1768
        %1848 = vmatprep.subr.mxu0 %v1771
        %1849 = vmatpush1.msra.mxu0 %v1770
        %1850 = vmatprep.subr.mxu0 %v1773
        %1851 = vmatpush1.msra.mxu0 %v1772
        %1852 = vmatprep.subr.mxu0 %v1775
        %1853 = vmatpush1.msra.mxu0 %v1774
        %1854 = vmatprep.subr.mxu0 %v1777
        %1855 = vmatpush1.msra.mxu0 %v1776
        %1856 = vmatprep.subr.mxu0 %v1779
        %1857 = vmatpush1.msra.mxu0 %v1778
        %1858 = vmatprep.subr.mxu0 %v1781
        %1859 = vmatpush1.msra.mxu0 %v1780
        %1860 = vmatprep.subr.mxu0 %v1783
        %1861 = vmatpush1.msra.mxu0 %v1782
        %1862 = vmatprep.subr.mxu0 %v1785
        %1863 = vmatpush1.msra.mxu0 %v1784
        %1864 = vmatprep.subr.mxu0 %v1787
        %1865 = vmatpush1.msra.mxu0 %v1786
        %1866 = vmatprep.subr.mxu0 %v1789
        %1867 = vmatpush1.msra.mxu0 %v1788
        %1868 = vmatprep.subr.mxu0 %v1791
        %1869 = vmatpush1.msra.mxu0 %v1790
        %1870 = vmatprep.subr.mxu0 %v1793
        %1871 = vmatpush1.msra.mxu0 %v1792
        %1872 = vmatprep.subr.mxu0 %v1795
        %1873 = vmatpush1.msra.mxu0 %v1794
        %1874 = vmatprep.subr.mxu0 %v1797
        %1875 = vmatpush1.msra.mxu0 %v1796
        %1876 = vmatprep.subr.mxu0 %v1799
        %1877 = vmatpush1.msra.mxu0 %v1798
        %1878 = vmatprep.subr.mxu0 %v1801
        %1879 = vmatpush1.msra.mxu0 %v1800
        %1880 = vmatprep.subr.mxu0 %v1803
        %1881 = vmatpush1.msra.mxu0 %v1802
        %1882 = vmatprep.subr.mxu0 %v1805
        %1883 = vmatpush1.msra.mxu0 %v1804
        %1884 = vmatprep.subr.mxu0 %v1807
        %1885 = vmatpush1.msra.mxu0 %v1806
        %1886 = vmatprep.subr.mxu0 %v1809
        %1887 = vmatpush1.msra.mxu0 %v1808
        %1888 = vmatprep.subr.mxu0 %v1811
        %1889 = vmatpush1.msra.mxu0 %v1810
        %1890 = vmatprep.subr.mxu0 %v1813
        %1891 = vmatpush1.msra.mxu0 %v1812
        %1892 = vmatprep.subr.mxu0 %v1815
        %1893 = vmatpush1.msra.mxu0 %v1814
        %1894 = vmatprep.subr.mxu0 %v1817
        %1895 = vmatpush1.msra.mxu0 %v1816
        %1896 = vmatprep.subr.mxu0 %v1819
        %1897 = vmatpush1.msra.mxu0 %v1818
        %1898 = vmatprep.mubr.f32.mxu0 %v1825
        %1899 = vmatmul.mubr.f32.gmra.mrb[0].mxu0 %v1822
        %v1900 = vpop.f32.mrb[0].mxu0
        %v1901 = vadd.f32 0.0, %v1900
        %v1902 = vpop.f32.mrb[0].mxu0
        %v1903 = vadd.f32 0.0, %v1902
        %1904 = vmatprep.mubr.f32.mxu0 %v1829
        %1905 = vmatmul.mubr.f32.gmra.mrb[0].mxu0 %v1827
        %v1906 = vpop.f32.mrb[0].mxu0
        %v1907 = vadd.f32 0.0, %v1906
        %v1908 = vpop.f32.mrb[0].mxu0
        %v1909 = vadd.f32 0.0, %v1908
        %1910 = vdwg.mxu0
        %v1911 = vadd.f32 %v1745, %v1901
        %v1912 = vadd.f32 %v1747, %v1903
        %v1913 = vadd.f32 %v1751, %v1907
        %v1914 = vadd.f32 %v1753, %v1909
        %v1915 = vld [vmem:[%s8] sm:$0x3]
        %v1917 = vlaneseq
        %v1918 = vshrl.u32 %v1917, 7
        %v1919 = vsub.s32 0, %v1918
        %v1920 = vrot.slane %v1915, %v1919
        %v1921 = vlaneseq
        %v1922 = vshrl.u32 %v1921, 7
        %v1923 = vsub.s32 1, %v1922
        %v1924 = vrot.slane %v1915, %v1923
        %v1927 = vadd.f32 %v1911, %v1920
        %v1928 = vadd.f32 %v1912, %v1924
        %v1929 = vadd.f32 %v1913, %v1920
        %v1930 = vadd.f32 %v1914, %v1924
        %v1931 = vmax.f32 %v1927, 0.0
        %v1932 = vmax.f32 %v1928, 0.0
        %v1933 = vmax.f32 %v1929, 0.0
        %v1934 = vmax.f32 %v1930, 0.0
        %1935 = vst [vmem:[#allocation5] sm:$0xff] 0.0
        %1936 = vst [vmem:[#allocation5 + $0x8] sm:$0xff] 0.0
        %1937 = vst [vmem:[#allocation5 + $0x10] sm:$0xff] 0.0
        %1938 = vst [vmem:[#allocation5 + $0x18] sm:$0xff] 0.0
        %1939 = vst [vmem:[#allocation5 + $0x20] sm:$0x3] 0.0
        %1940 = vst [vmem:[#allocation5 + $0x28] sm:$0x3] 0.0
        %v1945 = vrot.slane %v1931, 7
        %v1946 = vrot.slane %v1932, 7
        %v1947 = vrot.slane %v1933, 7
        %v1948 = vsel %vm1427, %v1945, %v1947
        %v1949 = vrot.slane %v1934, 7
        %v1950 = vsel %vm1427, %v1946, %v1949
        %1957 = vst [vmem:[#allocation5] sm:$0xfe] %v1945
        %1958 = vst [vmem:[#allocation5 + $0x8] sm:$0xfe] %v1946
        %1959 = vst [vmem:[#allocation5 + $0x10] sm:$0xff] %v1948
        %1960 = vst [vmem:[#allocation5 + $0x18] sm:$0xff] %v1950
        %1961 = vst [vmem:[#allocation5 + $0x20] sm:$0x1] %v1947
        %1962 = vst [vmem:[#allocation5 + $0x28] sm:$0x1] %v1949
        %v1963 = vld [vmem:[#allocation5] sm:$0xff]
        %v1964 = vld [vmem:[#allocation5 + $0x8] sm:$0xff]
        %v1965 = vld [vmem:[#allocation5 + $0x10] sm:$0xff]
        %v1966 = vld [vmem:[#allocation5 + $0x18] sm:$0xff]
        %v1967 = vld [vmem:[#allocation5 + $0x20] sm:$0x3]
        %v1968 = vld [vmem:[#allocation5 + $0x28] sm:$0x3]
        %v1969 = vld [vmem:[#allocation9] sm:$0xff]
        %v1970 = vld [vmem:[#allocation9 + $0x8] sm:$0xff]
        %v1971 = vld [vmem:[#allocation9 + $0x10] sm:$0xff]
        %v1972 = vld [vmem:[#allocation9 + $0x18] sm:$0xff]
        %v1973 = vld [vmem:[#allocation9 + $0x20] sm:$0xff]
        %v1974 = vld [vmem:[#allocation9 + $0x28] sm:$0xff]
        %v1975 = vld [vmem:[#allocation9 + $0x30] sm:$0xff]
        %v1976 = vld [vmem:[#allocation9 + $0x38] sm:$0xff]
        %v1977 = vld [vmem:[#allocation9 + $0x40] sm:$0xff]
        %v1978 = vld [vmem:[#allocation9 + $0x48] sm:$0xff]
        %v1979 = vld [vmem:[#allocation9 + $0x50] sm:$0xff]
        %v1980 = vld [vmem:[#allocation9 + $0x58] sm:$0xff]
        %v1981 = vld [vmem:[#allocation9 + $0x60] sm:$0xff]
        %v1982 = vld [vmem:[#allocation9 + $0x68] sm:$0xff]
        %v1983 = vld [vmem:[#allocation9 + $0x70] sm:$0xff]
        %v1984 = vld [vmem:[#allocation9 + $0x78] sm:$0xff]
        %v1985 = vld [vmem:[#allocation9 + $0x80] sm:$0xff]
        %v1986 = vld [vmem:[#allocation9 + $0x88] sm:$0xff]
        %v1987 = vld [vmem:[#allocation9 + $0x90] sm:$0xff]
        %v1988 = vld [vmem:[#allocation9 + $0x98] sm:$0xff]
        %v1989 = vld [vmem:[#allocation9 + $0xa0] sm:$0xff]
        %v1990 = vld [vmem:[#allocation9 + $0xa8] sm:$0xff]
        %v1991 = vld [vmem:[#allocation9 + $0xb0] sm:$0xff]
        %v1992 = vld [vmem:[#allocation9 + $0xb8] sm:$0xff]
        %v1993 = vld [vmem:[#allocation9 + $0xc0] sm:$0xff]
        %v1994 = vld [vmem:[#allocation9 + $0xc8] sm:$0xff]
        %v1995 = vld [vmem:[#allocation9 + $0xd0] sm:$0xff]
        %v1996 = vld [vmem:[#allocation9 + $0xd8] sm:$0xff]
        %v1997 = vld [vmem:[#allocation9 + $0xe0] sm:$0xff]
        %v1998 = vld [vmem:[#allocation9 + $0xe8] sm:$0xff]
        %v1999 = vld [vmem:[#allocation9 + $0xf0] sm:$0xff]
        %v2000 = vld [vmem:[#allocation9 + $0xf8] sm:$0xff]
        %v2001 = vld [vmem:[#allocation9 + $0x100] sm:$0xff]
        %v2002 = vld [vmem:[#allocation9 + $0x108] sm:$0xff]
        %v2003 = vld [vmem:[#allocation9 + $0x110] sm:$0xff]
        %v2004 = vld [vmem:[#allocation9 + $0x118] sm:$0xff]
        %v2005 = vld [vmem:[#allocation9 + $0x120] sm:$0xff]
        %v2006 = vld [vmem:[#allocation9 + $0x128] sm:$0xff]
        %v2007 = vld [vmem:[#allocation9 + $0x130] sm:$0xff]
        %v2008 = vld [vmem:[#allocation9 + $0x138] sm:$0xff]
        %v2009 = vld [vmem:[#allocation9 + $0x140] sm:$0xff]
        %v2010 = vld [vmem:[#allocation9 + $0x148] sm:$0xff]
        %v2011 = vld [vmem:[#allocation9 + $0x150] sm:$0xff]
        %v2012 = vld [vmem:[#allocation9 + $0x158] sm:$0xff]
        %v2013 = vld [vmem:[#allocation9 + $0x160] sm:$0xff]
        %v2014 = vld [vmem:[#allocation9 + $0x168] sm:$0xff]
        %v2015 = vld [vmem:[#allocation9 + $0x170] sm:$0xff]
        %v2016 = vld [vmem:[#allocation9 + $0x178] sm:$0xff]
        %v2017 = vld [vmem:[#allocation9 + $0x180] sm:$0xff]
        %v2018 = vld [vmem:[#allocation9 + $0x188] sm:$0xff]
        %v2019 = vld [vmem:[#allocation9 + $0x190] sm:$0xff]
        %v2020 = vld [vmem:[#allocation9 + $0x198] sm:$0xff]
        %v2021 = vld [vmem:[#allocation9 + $0x1a0] sm:$0xff]
        %v2022 = vld [vmem:[#allocation9 + $0x1a8] sm:$0xff]
        %v2023 = vld [vmem:[#allocation9 + $0x1b0] sm:$0xff]
        %v2024 = vld [vmem:[#allocation9 + $0x1b8] sm:$0xff]
        %v2025 = vld [vmem:[#allocation9 + $0x1c0] sm:$0xff]
        %v2026 = vld [vmem:[#allocation9 + $0x1c8] sm:$0xff]
        %v2027 = vld [vmem:[#allocation9 + $0x1d0] sm:$0xff]
        %v2028 = vld [vmem:[#allocation9 + $0x1d8] sm:$0xff]
        %v2029 = vld [vmem:[#allocation9 + $0x1e0] sm:$0xff]
        %v2030 = vld [vmem:[#allocation9 + $0x1e8] sm:$0xff]
        %v2031 = vld [vmem:[#allocation9 + $0x1f0] sm:$0xff]
        %v2032 = vld [vmem:[#allocation9 + $0x1f8] sm:$0xff]
        %s2033 = scalar_lea.vmem [#allocation9], 512
        %v2034 = vld [vmem:[%s2033] sm:$0xff]
        %v2035 = vld [vmem:[%s2033 + $0x8] sm:$0xff]
        %v2036 = vld [vmem:[%s2033 + $0x10] sm:$0xff]
        %v2037 = vld [vmem:[%s2033 + $0x18] sm:$0xff]
        %v2038 = vld [vmem:[%s2033 + $0x20] sm:$0xff]
        %v2039 = vld [vmem:[%s2033 + $0x28] sm:$0xff]
        %v2040 = vld [vmem:[%s2033 + $0x30] sm:$0xff]
        %v2041 = vld [vmem:[%s2033 + $0x38] sm:$0xff]
        %v2042 = vld [vmem:[%s2033 + $0x40] sm:$0xff]
        %v2043 = vld [vmem:[%s2033 + $0x48] sm:$0xff]
        %v2044 = vld [vmem:[%s2033 + $0x50] sm:$0xff]
        %v2045 = vld [vmem:[%s2033 + $0x58] sm:$0xff]
        %v2046 = vld [vmem:[%s2033 + $0x60] sm:$0xff]
        %v2047 = vld [vmem:[%s2033 + $0x68] sm:$0xff]
        %v2048 = vld [vmem:[%s2033 + $0x70] sm:$0xff]
        %v2049 = vld [vmem:[%s2033 + $0x78] sm:$0xff]
        %v2050 = vld [vmem:[%s2033 + $0x80] sm:$0xff]
        %v2051 = vld [vmem:[%s2033 + $0x88] sm:$0xff]
        %v2052 = vld [vmem:[%s2033 + $0x90] sm:$0xff]
        %v2053 = vld [vmem:[%s2033 + $0x98] sm:$0xff]
        %v2054 = vld [vmem:[%s2033 + $0xa0] sm:$0xff]
        %v2055 = vld [vmem:[%s2033 + $0xa8] sm:$0xff]
        %v2056 = vld [vmem:[%s2033 + $0xb0] sm:$0xff]
        %v2057 = vld [vmem:[%s2033 + $0xb8] sm:$0xff]
        %v2058 = vld [vmem:[%s2033 + $0xc0] sm:$0xff]
        %v2059 = vld [vmem:[%s2033 + $0xc8] sm:$0xff]
        %v2060 = vld [vmem:[%s2033 + $0xd0] sm:$0xff]
        %v2061 = vld [vmem:[%s2033 + $0xd8] sm:$0xff]
        %v2062 = vld [vmem:[%s2033 + $0xe0] sm:$0xff]
        %v2063 = vld [vmem:[%s2033 + $0xe8] sm:$0xff]
        %v2064 = vld [vmem:[%s2033 + $0xf0] sm:$0xff]
        %v2065 = vld [vmem:[%s2033 + $0xf8] sm:$0xff]
        %v2066 = vld [vmem:[%s2033 + $0x100] sm:$0xff]
        %v2067 = vld [vmem:[%s2033 + $0x108] sm:$0xff]
        %v2068 = vld [vmem:[%s2033 + $0x110] sm:$0xff]
        %v2069 = vld [vmem:[%s2033 + $0x118] sm:$0xff]
        %v2070 = vld [vmem:[%s2033 + $0x120] sm:$0xff]
        %v2071 = vld [vmem:[%s2033 + $0x128] sm:$0xff]
        %v2072 = vld [vmem:[%s2033 + $0x130] sm:$0xff]
        %v2073 = vld [vmem:[%s2033 + $0x138] sm:$0xff]
        %v2074 = vld [vmem:[%s2033 + $0x140] sm:$0xff]
        %v2075 = vld [vmem:[%s2033 + $0x148] sm:$0xff]
        %v2076 = vld [vmem:[%s2033 + $0x150] sm:$0xff]
        %v2077 = vld [vmem:[%s2033 + $0x158] sm:$0xff]
        %v2078 = vld [vmem:[%s2033 + $0x160] sm:$0xff]
        %v2079 = vld [vmem:[%s2033 + $0x168] sm:$0xff]
        %v2080 = vld [vmem:[%s2033 + $0x170] sm:$0xff]
        %v2081 = vld [vmem:[%s2033 + $0x178] sm:$0xff]
        %v2082 = vld [vmem:[%s2033 + $0x180] sm:$0xff]
        %v2083 = vld [vmem:[%s2033 + $0x188] sm:$0xff]
        %v2084 = vld [vmem:[%s2033 + $0x190] sm:$0xff]
        %v2085 = vld [vmem:[%s2033 + $0x198] sm:$0xff]
        %v2086 = vld [vmem:[%s2033 + $0x1a0] sm:$0xff]
        %v2087 = vld [vmem:[%s2033 + $0x1a8] sm:$0xff]
        %v2088 = vld [vmem:[%s2033 + $0x1b0] sm:$0xff]
        %v2089 = vld [vmem:[%s2033 + $0x1b8] sm:$0xff]
        %v2090 = vld [vmem:[%s2033 + $0x1c0] sm:$0xff]
        %v2091 = vld [vmem:[%s2033 + $0x1c8] sm:$0xff]
        %v2092 = vld [vmem:[%s2033 + $0x1d0] sm:$0xff]
        %v2093 = vld [vmem:[%s2033 + $0x1d8] sm:$0xff]
        %v2094 = vld [vmem:[%s2033 + $0x1e0] sm:$0xff]
        %v2095 = vld [vmem:[%s2033 + $0x1e8] sm:$0xff]
        %v2096 = vld [vmem:[%s2033 + $0x1f0] sm:$0xff]
        %v2097 = vld [vmem:[%s2033 + $0x1f8] sm:$0xff]
        %v2104 = vrot.slane %v1963, 1
        %v2105 = vrot.slane %v1965, 1
        %v2106 = vsel %vm491, %v2104, %v2105
        %v2107 = vrot.slane %v1964, 1
        %v2108 = vrot.slane %v1966, 1
        %v2109 = vsel %vm491, %v2107, %v2108
        %v2110 = vrot.slane %v1967, 1
        %v2111 = vsel %vm491, %v2105, %v2110
        %v2112 = vrot.slane %v1968, 1
        %v2113 = vsel %vm491, %v2108, %v2112
        %2118 = vmatprep.subr.mxu0 %v2035
        %2119 = vmatpush1.msra.mxu0 %v2034
        %2120 = vmatprep.subr.mxu0 %v2037
        %2121 = vmatpush1.msra.mxu0 %v2036
        %2122 = vmatprep.subr.mxu0 %v2039
        %2123 = vmatpush1.msra.mxu0 %v2038
        %2124 = vmatprep.subr.mxu0 %v2041
        %2125 = vmatpush1.msra.mxu0 %v2040
        %2126 = vmatprep.subr.mxu0 %v2043
        %2127 = vmatpush1.msra.mxu0 %v2042
        %2128 = vmatprep.subr.mxu0 %v2045
        %2129 = vmatpush1.msra.mxu0 %v2044
        %2130 = vmatprep.subr.mxu0 %v2047
        %2131 = vmatpush1.msra.mxu0 %v2046
        %2132 = vmatprep.subr.mxu0 %v2049
        %2133 = vmatpush1.msra.mxu0 %v2048
        %2134 = vmatprep.subr.mxu0 %v2051
        %2135 = vmatpush1.msra.mxu0 %v2050
        %2136 = vmatprep.subr.mxu0 %v2053
        %2137 = vmatpush1.msra.mxu0 %v2052
        %2138 = vmatprep.subr.mxu0 %v2055
        %2139 = vmatpush1.msra.mxu0 %v2054
        %2140 = vmatprep.subr.mxu0 %v2057
        %2141 = vmatpush1.msra.mxu0 %v2056
        %2142 = vmatprep.subr.mxu0 %v2059
        %2143 = vmatpush1.msra.mxu0 %v2058
        %2144 = vmatprep.subr.mxu0 %v2061
        %2145 = vmatpush1.msra.mxu0 %v2060
        %2146 = vmatprep.subr.mxu0 %v2063
        %2147 = vmatpush1.msra.mxu0 %v2062
        %2148 = vmatprep.subr.mxu0 %v2065
        %2149 = vmatpush1.msra.mxu0 %v2064
        %2150 = vmatprep.subr.mxu0 %v2067
        %2151 = vmatpush1.msra.mxu0 %v2066
        %2152 = vmatprep.subr.mxu0 %v2069
        %2153 = vmatpush1.msra.mxu0 %v2068
        %2154 = vmatprep.subr.mxu0 %v2071
        %2155 = vmatpush1.msra.mxu0 %v2070
        %2156 = vmatprep.subr.mxu0 %v2073
        %2157 = vmatpush1.msra.mxu0 %v2072
        %2158 = vmatprep.subr.mxu0 %v2075
        %2159 = vmatpush1.msra.mxu0 %v2074
        %2160 = vmatprep.subr.mxu0 %v2077
        %2161 = vmatpush1.msra.mxu0 %v2076
        %2162 = vmatprep.subr.mxu0 %v2079
        %2163 = vmatpush1.msra.mxu0 %v2078
        %2164 = vmatprep.subr.mxu0 %v2081
        %2165 = vmatpush1.msra.mxu0 %v2080
        %2166 = vmatprep.subr.mxu0 %v2083
        %2167 = vmatpush1.msra.mxu0 %v2082
        %2168 = vmatprep.subr.mxu0 %v2085
        %2169 = vmatpush1.msra.mxu0 %v2084
        %2170 = vmatprep.subr.mxu0 %v2087
        %2171 = vmatpush1.msra.mxu0 %v2086
        %2172 = vmatprep.subr.mxu0 %v2089
        %2173 = vmatpush1.msra.mxu0 %v2088
        %2174 = vmatprep.subr.mxu0 %v2091
        %2175 = vmatpush1.msra.mxu0 %v2090
        %2176 = vmatprep.subr.mxu0 %v2093
        %2177 = vmatpush1.msra.mxu0 %v2092
        %2178 = vmatprep.subr.mxu0 %v2095
        %2179 = vmatpush1.msra.mxu0 %v2094
        %2180 = vmatprep.subr.mxu0 %v2097
        %2181 = vmatpush1.msra.mxu0 %v2096
        %2182 = vmatprep.mubr.f32.mxu0 %v2109
        %2183 = vmatmul.mubr.f32.gmra.mrb[0].mxu0 %v2106
        %v2184 = vpop.f32.mrb[0].mxu0
        %v2185 = vadd.f32 0.0, %v2184
        %v2186 = vpop.f32.mrb[0].mxu0
        %v2187 = vadd.f32 0.0, %v2186
        %2188 = vmatprep.mubr.f32.mxu0 %v2113
        %2189 = vmatmul.mubr.f32.gmra.mrb[0].mxu0 %v2111
        %v2190 = vpop.f32.mrb[0].mxu0
        %v2191 = vadd.f32 0.0, %v2190
        %v2192 = vpop.f32.mrb[0].mxu0
        %v2193 = vadd.f32 0.0, %v2192
        %2194 = vdwg.mxu0
        %2195 = vmatprep.subr.mxu0 %v1970
        %2196 = vmatpush1.msra.mxu0 %v1969
        %2197 = vmatprep.subr.mxu0 %v1972
        %2198 = vmatpush1.msra.mxu0 %v1971
        %2199 = vmatprep.subr.mxu0 %v1974
        %2200 = vmatpush1.msra.mxu0 %v1973
        %2201 = vmatprep.subr.mxu0 %v1976
        %2202 = vmatpush1.msra.mxu0 %v1975
        %2203 = vmatprep.subr.mxu0 %v1978
        %2204 = vmatpush1.msra.mxu0 %v1977
        %2205 = vmatprep.subr.mxu0 %v1980
        %2206 = vmatpush1.msra.mxu0 %v1979
        %2207 = vmatprep.subr.mxu0 %v1982
        %2208 = vmatpush1.msra.mxu0 %v1981
        %2209 = vmatprep.subr.mxu0 %v1984
        %2210 = vmatpush1.msra.mxu0 %v1983
        %2211 = vmatprep.subr.mxu0 %v1986
        %2212 = vmatpush1.msra.mxu0 %v1985
        %2213 = vmatprep.subr.mxu0 %v1988
        %2214 = vmatpush1.msra.mxu0 %v1987
        %2215 = vmatprep.subr.mxu0 %v1990
        %2216 = vmatpush1.msra.mxu0 %v1989
        %2217 = vmatprep.subr.mxu0 %v1992
        %2218 = vmatpush1.msra.mxu0 %v1991
        %2219 = vmatprep.subr.mxu0 %v1994
        %2220 = vmatpush1.msra.mxu0 %v1993
        %2221 = vmatprep.subr.mxu0 %v1996
        %2222 = vmatpush1.msra.mxu0 %v1995
        %2223 = vmatprep.subr.mxu0 %v1998
        %2224 = vmatpush1.msra.mxu0 %v1997
        %2225 = vmatprep.subr.mxu0 %v2000
        %2226 = vmatpush1.msra.mxu0 %v1999
        %2227 = vmatprep.subr.mxu0 %v2002
        %2228 = vmatpush1.msra.mxu0 %v2001
        %2229 = vmatprep.subr.mxu0 %v2004
        %2230 = vmatpush1.msra.mxu0 %v2003
        %2231 = vmatprep.subr.mxu0 %v2006
        %2232 = vmatpush1.msra.mxu0 %v2005
        %2233 = vmatprep.subr.mxu0 %v2008
        %2234 = vmatpush1.msra.mxu0 %v2007
        %2235 = vmatprep.subr.mxu0 %v2010
        %2236 = vmatpush1.msra.mxu0 %v2009
        %2237 = vmatprep.subr.mxu0 %v2012
        %2238 = vmatpush1.msra.mxu0 %v2011
        %2239 = vmatprep.subr.mxu0 %v2014
        %2240 = vmatpush1.msra.mxu0 %v2013
        %2241 = vmatprep.subr.mxu0 %v2016
        %2242 = vmatpush1.msra.mxu0 %v2015
        %2243 = vmatprep.subr.mxu0 %v2018
        %2244 = vmatpush1.msra.mxu0 %v2017
        %2245 = vmatprep.subr.mxu0 %v2020
        %2246 = vmatpush1.msra.mxu0 %v2019
        %2247 = vmatprep.subr.mxu0 %v2022
        %2248 = vmatpush1.msra.mxu0 %v2021
        %2249 = vmatprep.subr.mxu0 %v2024
        %2250 = vmatpush1.msra.mxu0 %v2023
        %2251 = vmatprep.subr.mxu0 %v2026
        %2252 = vmatpush1.msra.mxu0 %v2025
        %2253 = vmatprep.subr.mxu0 %v2028
        %2254 = vmatpush1.msra.mxu0 %v2027
        %2255 = vmatprep.subr.mxu0 %v2030
        %2256 = vmatpush1.msra.mxu0 %v2029
        %2257 = vmatprep.subr.mxu0 %v2032
        %2258 = vmatpush1.msra.mxu0 %v2031
        %2259 = vmatprep.mubr.f32.mxu0 %v1964
        %2260 = vmatmul.mubr.f32.gmra.mrb[0].mxu0 %v1963
        %v2261 = vpop.f32.mrb[0].mxu0
        %v2262 = vadd.f32 %v2185, %v2261
        %v2263 = vpop.f32.mrb[0].mxu0
        %v2264 = vadd.f32 %v2187, %v2263
        %2265 = vmatprep.mubr.f32.mxu0 %v1966
        %2266 = vmatmul.mubr.f32.gmra.mrb[0].mxu0 %v1965
        %v2267 = vpop.f32.mrb[0].mxu0
        %v2268 = vadd.f32 %v2191, %v2267
        %v2269 = vpop.f32.mrb[0].mxu0
        %v2270 = vadd.f32 %v2193, %v2269
        %2271 = vdwg.mxu0
        %s2272 = scalar_lea.vmem [#allocation9], 1024
        %v2273 = vld [vmem:[%s2272] sm:$0xff]
        %v2274 = vld [vmem:[%s2272 + $0x8] sm:$0xff]
        %v2275 = vld [vmem:[%s2272 + $0x10] sm:$0xff]
        %v2276 = vld [vmem:[%s2272 + $0x18] sm:$0xff]
        %v2277 = vld [vmem:[%s2272 + $0x20] sm:$0xff]
        %v2278 = vld [vmem:[%s2272 + $0x28] sm:$0xff]
        %v2279 = vld [vmem:[%s2272 + $0x30] sm:$0xff]
        %v2280 = vld [vmem:[%s2272 + $0x38] sm:$0xff]
        %v2281 = vld [vmem:[%s2272 + $0x40] sm:$0xff]
        %v2282 = vld [vmem:[%s2272 + $0x48] sm:$0xff]
        %v2283 = vld [vmem:[%s2272 + $0x50] sm:$0xff]
        %v2284 = vld [vmem:[%s2272 + $0x58] sm:$0xff]
        %v2285 = vld [vmem:[%s2272 + $0x60] sm:$0xff]
        %v2286 = vld [vmem:[%s2272 + $0x68] sm:$0xff]
        %v2287 = vld [vmem:[%s2272 + $0x70] sm:$0xff]
        %v2288 = vld [vmem:[%s2272 + $0x78] sm:$0xff]
        %v2289 = vld [vmem:[%s2272 + $0x80] sm:$0xff]
        %v2290 = vld [vmem:[%s2272 + $0x88] sm:$0xff]
        %v2291 = vld [vmem:[%s2272 + $0x90] sm:$0xff]
        %v2292 = vld [vmem:[%s2272 + $0x98] sm:$0xff]
        %v2293 = vld [vmem:[%s2272 + $0xa0] sm:$0xff]
        %v2294 = vld [vmem:[%s2272 + $0xa8] sm:$0xff]
        %v2295 = vld [vmem:[%s2272 + $0xb0] sm:$0xff]
        %v2296 = vld [vmem:[%s2272 + $0xb8] sm:$0xff]
        %v2297 = vld [vmem:[%s2272 + $0xc0] sm:$0xff]
        %v2298 = vld [vmem:[%s2272 + $0xc8] sm:$0xff]
        %v2299 = vld [vmem:[%s2272 + $0xd0] sm:$0xff]
        %v2300 = vld [vmem:[%s2272 + $0xd8] sm:$0xff]
        %v2301 = vld [vmem:[%s2272 + $0xe0] sm:$0xff]
        %v2302 = vld [vmem:[%s2272 + $0xe8] sm:$0xff]
        %v2303 = vld [vmem:[%s2272 + $0xf0] sm:$0xff]
        %v2304 = vld [vmem:[%s2272 + $0xf8] sm:$0xff]
        %v2305 = vld [vmem:[%s2272 + $0x100] sm:$0xff]
        %v2306 = vld [vmem:[%s2272 + $0x108] sm:$0xff]
        %v2307 = vld [vmem:[%s2272 + $0x110] sm:$0xff]
        %v2308 = vld [vmem:[%s2272 + $0x118] sm:$0xff]
        %v2309 = vld [vmem:[%s2272 + $0x120] sm:$0xff]
        %v2310 = vld [vmem:[%s2272 + $0x128] sm:$0xff]
        %v2311 = vld [vmem:[%s2272 + $0x130] sm:$0xff]
        %v2312 = vld [vmem:[%s2272 + $0x138] sm:$0xff]
        %v2313 = vld [vmem:[%s2272 + $0x140] sm:$0xff]
        %v2314 = vld [vmem:[%s2272 + $0x148] sm:$0xff]
        %v2315 = vld [vmem:[%s2272 + $0x150] sm:$0xff]
        %v2316 = vld [vmem:[%s2272 + $0x158] sm:$0xff]
        %v2317 = vld [vmem:[%s2272 + $0x160] sm:$0xff]
        %v2318 = vld [vmem:[%s2272 + $0x168] sm:$0xff]
        %v2319 = vld [vmem:[%s2272 + $0x170] sm:$0xff]
        %v2320 = vld [vmem:[%s2272 + $0x178] sm:$0xff]
        %v2321 = vld [vmem:[%s2272 + $0x180] sm:$0xff]
        %v2322 = vld [vmem:[%s2272 + $0x188] sm:$0xff]
        %v2323 = vld [vmem:[%s2272 + $0x190] sm:$0xff]
        %v2324 = vld [vmem:[%s2272 + $0x198] sm:$0xff]
        %v2325 = vld [vmem:[%s2272 + $0x1a0] sm:$0xff]
        %v2326 = vld [vmem:[%s2272 + $0x1a8] sm:$0xff]
        %v2327 = vld [vmem:[%s2272 + $0x1b0] sm:$0xff]
        %v2328 = vld [vmem:[%s2272 + $0x1b8] sm:$0xff]
        %v2329 = vld [vmem:[%s2272 + $0x1c0] sm:$0xff]
        %v2330 = vld [vmem:[%s2272 + $0x1c8] sm:$0xff]
        %v2331 = vld [vmem:[%s2272 + $0x1d0] sm:$0xff]
        %v2332 = vld [vmem:[%s2272 + $0x1d8] sm:$0xff]
        %v2333 = vld [vmem:[%s2272 + $0x1e0] sm:$0xff]
        %v2334 = vld [vmem:[%s2272 + $0x1e8] sm:$0xff]
        %v2335 = vld [vmem:[%s2272 + $0x1f0] sm:$0xff]
        %v2336 = vld [vmem:[%s2272 + $0x1f8] sm:$0xff]
        %v2337 = vrot.slane %v1963, 2
        %v2338 = vrot.slane %v1965, 2
        %v2339 = vsel %vm665, %v2337, %v2338
        %v2340 = vrot.slane %v1964, 2
        %v2341 = vrot.slane %v1966, 2
        %v2342 = vsel %vm665, %v2340, %v2341
        %v2343 = vrot.slane %v1967, 2
        %v2344 = vsel %vm665, %v2338, %v2343
        %v2345 = vrot.slane %v1968, 2
        %v2346 = vsel %vm665, %v2341, %v2345
        %2351 = vmatprep.subr.mxu0 %v2274
        %2352 = vmatpush1.msra.mxu0 %v2273
        %2353 = vmatprep.subr.mxu0 %v2276
        %2354 = vmatpush1.msra.mxu0 %v2275
        %2355 = vmatprep.subr.mxu0 %v2278
        %2356 = vmatpush1.msra.mxu0 %v2277
        %2357 = vmatprep.subr.mxu0 %v2280
        %2358 = vmatpush1.msra.mxu0 %v2279
        %2359 = vmatprep.subr.mxu0 %v2282
        %2360 = vmatpush1.msra.mxu0 %v2281
        %2361 = vmatprep.subr.mxu0 %v2284
        %2362 = vmatpush1.msra.mxu0 %v2283
        %2363 = vmatprep.subr.mxu0 %v2286
        %2364 = vmatpush1.msra.mxu0 %v2285
        %2365 = vmatprep.subr.mxu0 %v2288
        %2366 = vmatpush1.msra.mxu0 %v2287
        %2367 = vmatprep.subr.mxu0 %v2290
        %2368 = vmatpush1.msra.mxu0 %v2289
        %2369 = vmatprep.subr.mxu0 %v2292
        %2370 = vmatpush1.msra.mxu0 %v2291
        %2371 = vmatprep.subr.mxu0 %v2294
        %2372 = vmatpush1.msra.mxu0 %v2293
        %2373 = vmatprep.subr.mxu0 %v2296
        %2374 = vmatpush1.msra.mxu0 %v2295
        %2375 = vmatprep.subr.mxu0 %v2298
        %2376 = vmatpush1.msra.mxu0 %v2297
        %2377 = vmatprep.subr.mxu0 %v2300
        %2378 = vmatpush1.msra.mxu0 %v2299
        %2379 = vmatprep.subr.mxu0 %v2302
        %2380 = vmatpush1.msra.mxu0 %v2301
        %2381 = vmatprep.subr.mxu0 %v2304
        %2382 = vmatpush1.msra.mxu0 %v2303
        %2383 = vmatprep.subr.mxu0 %v2306
        %2384 = vmatpush1.msra.mxu0 %v2305
        %2385 = vmatprep.subr.mxu0 %v2308
        %2386 = vmatpush1.msra.mxu0 %v2307
        %2387 = vmatprep.subr.mxu0 %v2310
        %2388 = vmatpush1.msra.mxu0 %v2309
        %2389 = vmatprep.subr.mxu0 %v2312
        %2390 = vmatpush1.msra.mxu0 %v2311
        %2391 = vmatprep.subr.mxu0 %v2314
        %2392 = vmatpush1.msra.mxu0 %v2313
        %2393 = vmatprep.subr.mxu0 %v2316
        %2394 = vmatpush1.msra.mxu0 %v2315
        %2395 = vmatprep.subr.mxu0 %v2318
        %2396 = vmatpush1.msra.mxu0 %v2317
        %2397 = vmatprep.subr.mxu0 %v2320
        %2398 = vmatpush1.msra.mxu0 %v2319
        %2399 = vmatprep.subr.mxu0 %v2322
        %2400 = vmatpush1.msra.mxu0 %v2321
        %2401 = vmatprep.subr.mxu0 %v2324
        %2402 = vmatpush1.msra.mxu0 %v2323
        %2403 = vmatprep.subr.mxu0 %v2326
        %2404 = vmatpush1.msra.mxu0 %v2325
        %2405 = vmatprep.subr.mxu0 %v2328
        %2406 = vmatpush1.msra.mxu0 %v2327
        %2407 = vmatprep.subr.mxu0 %v2330
        %2408 = vmatpush1.msra.mxu0 %v2329
        %2409 = vmatprep.subr.mxu0 %v2332
        %2410 = vmatpush1.msra.mxu0 %v2331
        %2411 = vmatprep.subr.mxu0 %v2334
        %2412 = vmatpush1.msra.mxu0 %v2333
        %2413 = vmatprep.subr.mxu0 %v2336
        %2414 = vmatpush1.msra.mxu0 %v2335
        %2415 = vmatprep.mubr.f32.mxu0 %v2342
        %2416 = vmatmul.mubr.f32.gmra.mrb[0].mxu0 %v2339
        %v2417 = vpop.f32.mrb[0].mxu0
        %v2418 = vadd.f32 0.0, %v2417
        %v2419 = vpop.f32.mrb[0].mxu0
        %v2420 = vadd.f32 0.0, %v2419
        %2421 = vmatprep.mubr.f32.mxu0 %v2346
        %2422 = vmatmul.mubr.f32.gmra.mrb[0].mxu0 %v2344
        %v2423 = vpop.f32.mrb[0].mxu0
        %v2424 = vadd.f32 0.0, %v2423
        %v2425 = vpop.f32.mrb[0].mxu0
        %v2426 = vadd.f32 0.0, %v2425
        %2427 = vdwg.mxu0
        %v2428 = vadd.f32 %v2262, %v2418
        %v2429 = vadd.f32 %v2264, %v2420
        %v2430 = vadd.f32 %v2268, %v2424
        %v2431 = vadd.f32 %v2270, %v2426
        %v2432 = vld [vmem:[%s10] sm:$0x3]
        %v2434 = vlaneseq
        %v2435 = vshrl.u32 %v2434, 7
        %v2436 = vsub.s32 0, %v2435
        %v2437 = vrot.slane %v2432, %v2436
        %v2438 = vlaneseq
        %v2439 = vshrl.u32 %v2438, 7
        %v2440 = vsub.s32 1, %v2439
        %v2441 = vrot.slane %v2432, %v2440
        %v2444 = vadd.f32 %v2428, %v2437
        %v2445 = vadd.f32 %v2429, %v2441
        %v2446 = vadd.f32 %v2430, %v2437
        %v2447 = vadd.f32 %v2431, %v2441
        %v2448 = vld [vmem:[#allocation4] sm:$0xfe]
        %v2449 = vld [vmem:[#allocation4 + $0x8] sm:$0xfe]
        %v2450 = vld [vmem:[#allocation4 + $0x10] sm:$0xff]
        %v2451 = vld [vmem:[#allocation4 + $0x18] sm:$0xff]
        %v2452 = vld [vmem:[#allocation4 + $0x20] sm:$0x1]
        %v2453 = vld [vmem:[#allocation4 + $0x28] sm:$0x1]
        %v2460 = vrot.slane %v2448, 1
        %v2461 = vrot.slane %v2450, 1
        %v2462 = vsel %vm491, %v2460, %v2461
        %v2463 = vrot.slane %v2449, 1
        %v2464 = vrot.slane %v2451, 1
        %v2465 = vsel %vm491, %v2463, %v2464
        %v2466 = vrot.slane %v2452, 1
        %v2467 = vsel %vm491, %v2461, %v2466
        %v2468 = vrot.slane %v2453, 1
        %v2469 = vsel %vm491, %v2464, %v2468
        %v2474 = vadd.f32 %v2444, %v2462
        %v2475 = vadd.f32 %v2445, %v2465
        %v2476 = vadd.f32 %v2446, %v2467
        %v2477 = vadd.f32 %v2447, %v2469
        %v2478 = vmax.f32 %v2474, 0.0
        %v2479 = vmax.f32 %v2475, 0.0
        %v2480 = vmax.f32 %v2476, 0.0
        %v2481 = vmax.f32 %v2477, 0.0
        %v2482 = vadd.f32 %v2478, %v2480
        %v2483 = vrot.slane %v2482, 4
        %v2484 = vadd.f32 %v2482, %v2483
        %v2485 = vrot.slane %v2484, 2
        %v2486 = vadd.f32 %v2484, %v2485
        %v2487 = vrot.slane %v2486, 1
        %v2488 = vadd.f32 %v2486, %v2487
        %v2489 = vadd.f32 %v2479, %v2481
        %v2490 = vrot.slane %v2489, 4
        %v2491 = vadd.f32 %v2489, %v2490
        %v2492 = vrot.slane %v2491, 2
        %v2493 = vadd.f32 %v2491, %v2492
        %v2494 = vrot.slane %v2493, 1
        %v2495 = vadd.f32 %v2493, %v2494
        %v2496 = vld [vmem:[%s11] sm:$0xff]
        %v2497 = vld [vmem:[%s11 + $0x8] sm:$0xff]
        %v2498 = vld [vmem:[%s11 + $0x10] sm:$0xff]
        %v2499 = vld [vmem:[%s11 + $0x18] sm:$0xff]
        %v2500 = vld [vmem:[%s11 + $0x20] sm:$0xff]
        %v2501 = vld [vmem:[%s11 + $0x28] sm:$0xff]
        %v2502 = vld [vmem:[%s11 + $0x30] sm:$0xff]
        %v2503 = vld [vmem:[%s11 + $0x38] sm:$0xff]
        %v2504 = vld [vmem:[%s11 + $0x40] sm:$0xff]
        %v2505 = vld [vmem:[%s11 + $0x48] sm:$0xff]
        %v2506 = vld [vmem:[%s11 + $0x50] sm:$0xff]
        %v2507 = vld [vmem:[%s11 + $0x58] sm:$0xff]
        %v2508 = vld [vmem:[%s11 + $0x60] sm:$0xff]
        %v2509 = vld [vmem:[%s11 + $0x68] sm:$0xff]
        %v2510 = vld [vmem:[%s11 + $0x70] sm:$0xff]
        %v2511 = vld [vmem:[%s11 + $0x78] sm:$0xff]
        %v2512 = vld [vmem:[%s11 + $0x80] sm:$0xff]
        %v2513 = vld [vmem:[%s11 + $0x88] sm:$0xff]
        %v2514 = vld [vmem:[%s11 + $0x90] sm:$0xff]
        %v2515 = vld [vmem:[%s11 + $0x98] sm:$0xff]
        %v2516 = vld [vmem:[%s11 + $0xa0] sm:$0xff]
        %v2517 = vld [vmem:[%s11 + $0xa8] sm:$0xff]
        %v2518 = vld [vmem:[%s11 + $0xb0] sm:$0xff]
        %v2519 = vld [vmem:[%s11 + $0xb8] sm:$0xff]
        %v2520 = vld [vmem:[%s11 + $0xc0] sm:$0xff]
        %v2521 = vld [vmem:[%s11 + $0xc8] sm:$0xff]
        %v2522 = vld [vmem:[%s11 + $0xd0] sm:$0xff]
        %v2523 = vld [vmem:[%s11 + $0xd8] sm:$0xff]
        %v2524 = vld [vmem:[%s11 + $0xe0] sm:$0xff]
        %v2525 = vld [vmem:[%s11 + $0xe8] sm:$0xff]
        %v2526 = vld [vmem:[%s11 + $0xf0] sm:$0xff]
        %v2527 = vld [vmem:[%s11 + $0xf8] sm:$0xff]
        %v2528 = vld [vmem:[%s12] sm:$0x1]
        %2529 = vmatprep.subr.mxu0 0.0
        %2530 = vmatpush1.msra.mxu0 %v2496
        %2531 = vmatprep.subr.mxu0 0.0
        %2532 = vmatpush1.msra.mxu0 %v2497
        %2533 = vmatprep.subr.mxu0 0.0
        %2534 = vmatpush1.msra.mxu0 %v2498
        %2535 = vmatprep.subr.mxu0 0.0
        %2536 = vmatpush1.msra.mxu0 %v2499
        %2537 = vmatprep.subr.mxu0 0.0
        %2538 = vmatpush1.msra.mxu0 %v2500
        %2539 = vmatprep.subr.mxu0 0.0
        %2540 = vmatpush1.msra.mxu0 %v2501
        %2541 = vmatprep.subr.mxu0 0.0
        %2542 = vmatpush1.msra.mxu0 %v2502
        %2543 = vmatprep.subr.mxu0 0.0
        %2544 = vmatpush1.msra.mxu0 %v2503
        %2545 = vmatprep.subr.mxu0 0.0
        %2546 = vmatpush1.msra.mxu0 %v2504
        %2547 = vmatprep.subr.mxu0 0.0
        %2548 = vmatpush1.msra.mxu0 %v2505
        %2549 = vmatprep.subr.mxu0 0.0
        %2550 = vmatpush1.msra.mxu0 %v2506
        %2551 = vmatprep.subr.mxu0 0.0
        %2552 = vmatpush1.msra.mxu0 %v2507
        %2553 = vmatprep.subr.mxu0 0.0
        %2554 = vmatpush1.msra.mxu0 %v2508
        %2555 = vmatprep.subr.mxu0 0.0
        %2556 = vmatpush1.msra.mxu0 %v2509
        %2557 = vmatprep.subr.mxu0 0.0
        %2558 = vmatpush1.msra.mxu0 %v2510
        %2559 = vmatprep.subr.mxu0 0.0
        %2560 = vmatpush1.msra.mxu0 %v2511
        %2561 = vmatprep.subr.mxu0 0.0
        %2562 = vmatpush1.msra.mxu0 %v2512
        %2563 = vmatprep.subr.mxu0 0.0
        %2564 = vmatpush1.msra.mxu0 %v2513
        %2565 = vmatprep.subr.mxu0 0.0
        %2566 = vmatpush1.msra.mxu0 %v2514
        %2567 = vmatprep.subr.mxu0 0.0
        %2568 = vmatpush1.msra.mxu0 %v2515
        %2569 = vmatprep.subr.mxu0 0.0
        %2570 = vmatpush1.msra.mxu0 %v2516
        %2571 = vmatprep.subr.mxu0 0.0
        %2572 = vmatpush1.msra.mxu0 %v2517
        %2573 = vmatprep.subr.mxu0 0.0
        %2574 = vmatpush1.msra.mxu0 %v2518
        %2575 = vmatprep.subr.mxu0 0.0
        %2576 = vmatpush1.msra.mxu0 %v2519
        %2577 = vmatprep.subr.mxu0 0.0
        %2578 = vmatpush1.msra.mxu0 %v2520
        %2579 = vmatprep.subr.mxu0 0.0
        %2580 = vmatpush1.msra.mxu0 %v2521
        %2581 = vmatprep.subr.mxu0 0.0
        %2582 = vmatpush1.msra.mxu0 %v2522
        %2583 = vmatprep.subr.mxu0 0.0
        %2584 = vmatpush1.msra.mxu0 %v2523
        %2585 = vmatprep.subr.mxu0 0.0
        %2586 = vmatpush1.msra.mxu0 %v2524
        %2587 = vmatprep.subr.mxu0 0.0
        %2588 = vmatpush1.msra.mxu0 %v2525
        %2589 = vmatprep.subr.mxu0 0.0
        %2590 = vmatpush1.msra.mxu0 %v2526
        %2591 = vmatprep.subr.mxu0 0.0
        %2592 = vmatpush1.msra.mxu0 %v2527
        %2593 = vmatprep.mubr.f32.mxu0 %v2495
        %2594 = vmatmul.mubr.f32.gmra.mrb[0].mxu0 %v2488
        %v2595 = vpop.f32.mrb[0].mxu0
        %v2596 = vadd.f32 %v2528, %v2595
        %v2597 = vpop.f32.mrb[0].mxu0
        %2598 = vdwg.mxu0
        %v2599 = vxor.u32 %v2596, 2147483648
        %v2600 = vmul.f32 %v2599, 1.442695
        %v2601 = vpow.pop %v2600
        %v2602 = vadd.f32 %v2601, 1.0
        %v2603 = vrcp.pop %v2602
        %v2604 = vmul.f32 1.0, %v2603
        %vm2605 = vcmask 237568
        %2606 = vst.msk [vmem:[%s462] sm:$0x1] %vm2605, %v2604
        %s2607 = sand.u32 %s315, 1
        %s2608 = scalar_lea.sflag [#allocation8], %s2607
        %s2609 = sand.u32 %s315, 1
        %s2610 = scalar_lea.vmem [#allocation11], %s2609
        // Predicated region
        $region81: #{tpu_custom_call.1} parent=71 // pred_check
          %p2611 = pneg %p325
        $region82: #{tpu_custom_call.1} parent=71 // pred_check_branch
          %2613 = sbr.rel (%p2611) target = $region84
        $region83: #{tpu_custom_call.1} parent=71 // pred_region
          %s2615 = ssub.s32 16, 16
          %2616 = vsyncadd %s2608, %s2615
          %s2617 = smul.addr %s29, 16
          %s2618 = scalar_lea.hbm %s13, %s2617
          %s2620 = sshll.u32 %s2610, 4
          %s2621 = int_to_ptr.vmem [resolvable:$true] %s2620
          %2623 = dma.vmem_to_hbm [thread:$0]  %s2621, 16, %s2618, %s2608
        $region84: #{tpu_custom_call.1} parent=71 // pred_fallthru
          _
      $region72: #{tpu_custom_call.1} parent=5 // pred_fallthru
        _
      %p2624 = scmp.le.s32.totalorder 2, %s24
      // Predicated region
      $region85: #{tpu_custom_call.1} parent=5 // pred_check
        %p2625 = pneg %p2624
      $region86: #{tpu_custom_call.1} parent=5 // pred_check_branch
        %2627 = sbr.rel (%p2625) target = $region88
      $region87: #{tpu_custom_call.1} parent=5 // pred_region
        %s2628 = ssub.s32 %s24, 2
        // Predicated region
        $region89: #{tpu_custom_call.1} parent=87 // pred_check
          %p2629 = pneg %p331
        $region90: #{tpu_custom_call.1} parent=87 // pred_check_branch
          %2631 = sbr.rel (%p2629) target = $region92
        $region91: #{tpu_custom_call.1} parent=87 // pred_region
          %s2632 = sand.u32 %s316, 1
          %s2633 = scalar_lea.sflag [#allocation8], %s2632
          %s2634 = sand.u32 %s316, 1
          %s2635 = scalar_lea.vmem [#allocation11], %s2634
          %2636 = dma.done %s2633, 16
        $region92: #{tpu_custom_call.1} parent=87 // pred_fallthru
          _
      $region88: #{tpu_custom_call.1} parent=5 // pred_fallthru
        _
    $region6: #{tpu_custom_call.1} parent=1 // loop_footer
      %s28 = sadd.s32 1, %s24
    $region7: #{tpu_custom_call.1} parent=1 // loop_footer_branch
      %23 = sbr.rel target = $region3
    $region8: #{tpu_custom_call.1} parent=1 // loop_exit
      _
    %2637 = vsyncpa [#allocation7], 1
    %s2638 = scalar_lea.sflag [#allocation7], 1
    %2639 = vsyncpa %s2638, 1
    %2640 = vsyncpa [#allocation10], 1
    %2641 = vsyncpa [#allocation8], 1
    %s2642 = scalar_lea.sflag [#allocation8], 1
    %2643 = vsyncpa %s2642, 1

</llo_original>
